<compile_context>
chip_gen: v7x
topology: tpu7x:2x2x1
jax: 0.10.0
libtpu: 0.0.40
codegen_flags: <defaults>
</compile_context>

<pallas_src>
import math

import jax
import jax.numpy as jnp
from jax.experimental import pallas as pl
from jax.experimental.pallas import tpu as pltpu

IN_FEATURES = 64 * 64
LAYER_SIZES = [(IN_FEATURES, 256), (256, 512), (512, 1024), (1024, 10)]
PADDED_LAST_N = 128      # lane-dense last layer; slice [:, :10] outside the kernel
NUM_CLASSES = 10


def _fused_mlp_kernel(x_ref, w1_ref, b1_ref, w2_ref, b2_ref,
                      w3_ref, b3_ref, w4_ref, b4_ref, o_ref):
    """Four fused Linear(+ReLU) layers; activations stay in VMEM/vregs."""
    # Layer 1: (TB,4096) @ (4096,256), bf16 operands, f32 MXU accumulation.
    h = jnp.dot(x_ref[...], w1_ref[...], preferred_element_type=jnp.float32)
    h = jnp.maximum(h + b1_ref[...], 0.0)          # bias + ReLU in f32
    # Layer 2: (TB,256) @ (256,512)
    h = jnp.dot(h.astype(jnp.bfloat16), w2_ref[...], preferred_element_type=jnp.float32)
    h = jnp.maximum(h + b2_ref[...], 0.0)
    # Layer 3: (TB,512) @ (512,1024)
    h = jnp.dot(h.astype(jnp.bfloat16), w3_ref[...], preferred_element_type=jnp.float32)
    h = jnp.maximum(h + b3_ref[...], 0.0)
    # Layer 4 (activation=False): (TB,1024) @ (1024,128-padded)
    h = jnp.dot(h.astype(jnp.bfloat16), w4_ref[...], preferred_element_type=jnp.float32)
    o_ref[...] = (h + b4_ref[...]).astype(o_ref.dtype)


def fused_classifier(x2d, params, *, batch_tile=256):
    """x2d: (B, 4096) f32. params: [(w_bf16 (K,N), b_f32 (1,N)) x 4], last N padded to 128."""
    B, K = x2d.shape
    assert K == IN_FEATURES
    x_bf16 = x2d.astype(jnp.bfloat16)

    if B > batch_tile:
        tb = batch_tile
        bp = pl.cdiv(B, tb) * tb
        if bp != B:                                   # zero-pad batch to a tile multiple
            x_bf16 = jnp.pad(x_bf16, ((0, bp - B), (0, 0)))
    else:
        tb, bp = B, B                                 # single full-batch block

    n_out = params[-1][0].shape[1]                    # 128 (padded)
    grid = (bp // tb,)

    # Activations streamed per batch tile; weights/biases resident across grid steps.
    in_specs = [pl.BlockSpec((tb, K), lambda i: (i, 0))]
    args = [x_bf16]
    for w, b in params:
        in_specs.append(pl.BlockSpec(w.shape, lambda i: (0, 0)))
        in_specs.append(pl.BlockSpec(b.shape, lambda i: (0, 0)))
        args += [w, b]

    flops = 2 * bp * sum(w.shape[0] * w.shape[1] for w, _ in params)
    bytes_accessed = (x_bf16.size * x_bf16.dtype.itemsize
                      + sum(w.size * w.dtype.itemsize + b.size * b.dtype.itemsize
                            for w, b in params)
                      + bp * n_out * 4)

    out = pl.pallas_call(
        _fused_mlp_kernel,
        out_shape=jax.ShapeDtypeStruct((bp, n_out), jnp.float32),
        grid=grid,
        in_specs=in_specs,
        out_specs=pl.BlockSpec((tb, n_out), lambda i: (i, 0)),
        compiler_params=pltpu.CompilerParams(
            dimension_semantics=("parallel",),        # batch tiles independent (v7x 2 TCs)
            vmem_limit_bytes=32 << 20,                # ~10 MiB footprint + headroom
        ),
        cost_estimate=pl.CostEstimate(flops=flops, transcendentals=0,
                                      bytes_accessed=bytes_accessed),
    )(*args)

    return out[:B, :NUM_CLASSES]


def init_params(key):
    """PyTorch nn.Linear default init; weights stored (in,out) bf16, biases f32."""
    params = []
    for li, (fan_in, fan_out) in enumerate(LAYER_SIZES):
        key, kw, kb = jax.random.split(key, 3)
        bound = 1.0 / math.sqrt(fan_in)
        w = jax.random.uniform(kw, (fan_in, fan_out), jnp.float32, -bound, bound)
        b = jax.random.uniform(kb, (1, fan_out), jnp.float32, -bound, bound)
        if li == len(LAYER_SIZES) - 1:                # pad 10 -> 128 lanes with zeros
            w = jnp.pad(w, ((0, 0), (0, PADDED_LAST_N - fan_out)))
            b = jnp.pad(b, ((0, 0), (0, PADDED_LAST_N - fan_out)))
        params.append((w.astype(jnp.bfloat16), b))
    return params


def classifier_forward(x, params):
    """Matches classifier.forward: net1(x.view(-1, 64*64)) -> (B, 10)."""
    return fused_classifier(x.reshape(-1, IN_FEATURES).astype(jnp.float32), params)


if __name__ == "__main__":
    key = jax.random.PRNGKey(0)
    kx, kp = jax.random.split(key)

    # Batch=2 images of 64x64 (module flattens to (2, 4096)).
    x = jax.random.normal(kx, (2, 64, 64), dtype=jnp.float32)
    params = init_params(kp)

    out = jax.block_until_ready(classifier_forward(x, params))
    assert out.shape == (2, NUM_CLASSES), out.shape

    # Pure-JAX reference with identical bf16 quantization and f32 accumulation.
    h = x.reshape(-1, IN_FEATURES)
    for i, (w, b) in enumerate(params):
        h = h.astype(jnp.bfloat16).astype(jnp.float32) @ w.astype(jnp.float32) + b
        if i < len(params) - 1:
            h = jnp.maximum(h, 0.0)
    ref = h[:, :NUM_CLASSES]
    assert jnp.allclose(out, ref, atol=1e-3, rtol=1e-3)

    print("KERNEL_OK")
</pallas_src>

<mosaic_0001>
module attributes {stable_mosaic.version = 11 : i64} {
  func.func @_fused_mlp_kernel(%arg0: i32, %arg1: memref<2x4096xbf16, #tpu.memory_space<vmem>>, %arg2: memref<4096x256xbf16, #tpu.memory_space<vmem>>, %arg3: memref<1x256xf32, #tpu.memory_space<vmem>>, %arg4: memref<256x512xbf16, #tpu.memory_space<vmem>>, %arg5: memref<1x512xf32, #tpu.memory_space<vmem>>, %arg6: memref<512x1024xbf16, #tpu.memory_space<vmem>>, %arg7: memref<1x1024xf32, #tpu.memory_space<vmem>>, %arg8: memref<1024x128xbf16, #tpu.memory_space<vmem>>, %arg9: memref<1x128xf32, #tpu.memory_space<vmem>>, %arg10: memref<2x128xf32, #tpu.memory_space<vmem>>) attributes {dimension_semantics = [#tpu.dimension_semantics<parallel>], iteration_bounds = array<i64: 1>, scalar_prefetch = 0 : i64, scratch_operands = 0 : i64, tpu.core_type = #tpu.core_type<tc>, window_params = [{transform_indices = @transform_0, window_bounds = array<i64: 2, 4096>}, {pipeline_mode = #tpu.pipeline_mode<synchronous>, transform_indices = @transform_1, window_bounds = array<i64: 4096, 256>}, {pipeline_mode = #tpu.pipeline_mode<synchronous>, transform_indices = @transform_2, window_bounds = array<i64: 1, 256>}, {pipeline_mode = #tpu.pipeline_mode<synchronous>, transform_indices = @transform_3, window_bounds = array<i64: 256, 512>}, {pipeline_mode = #tpu.pipeline_mode<synchronous>, transform_indices = @transform_4, window_bounds = array<i64: 1, 512>}, {pipeline_mode = #tpu.pipeline_mode<synchronous>, transform_indices = @transform_5, window_bounds = array<i64: 512, 1024>}, {pipeline_mode = #tpu.pipeline_mode<synchronous>, transform_indices = @transform_6, window_bounds = array<i64: 1, 1024>}, {pipeline_mode = #tpu.pipeline_mode<synchronous>, transform_indices = @transform_7, window_bounds = array<i64: 1024, 128>}, {pipeline_mode = #tpu.pipeline_mode<synchronous>, transform_indices = @transform_8, window_bounds = array<i64: 1, 128>}, {transform_indices = @transform_9, window_bounds = array<i64: 2, 128>}]} {
    %c0 = arith.constant 0 : index
    %c0_0 = arith.constant 0 : index
    %0 = vector.load %arg1[%c0, %c0_0] : memref<2x4096xbf16, #tpu.memory_space<vmem>>, vector<2x4096xbf16>
    %c0_1 = arith.constant 0 : index
    %c0_2 = arith.constant 0 : index
    %1 = vector.load %arg2[%c0_1, %c0_2] : memref<4096x256xbf16, #tpu.memory_space<vmem>>, vector<4096x256xbf16>
    %cst = arith.constant dense<0.000000e+00> : vector<2x256xf32>
    %2 = tpu.matmul %0, %1, %cst {dimension_numbers = #tpu.dot_dimension_numbers<[1], [0], [0], [1], [0, 0, 1, 1], [], []>} : vector<2x4096xbf16>, vector<4096x256xbf16>, vector<2x256xf32> -> vector<2x256xf32>
    %c0_3 = arith.constant 0 : index
    %c0_4 = arith.constant 0 : index
    %3 = vector.load %arg3[%c0_3, %c0_4] : memref<1x256xf32, #tpu.memory_space<vmem>>, vector<1x256xf32>
    %4 = vector.broadcast %3 : vector<1x256xf32> to vector<2x256xf32>
    %5 = arith.addf %2, %4 : vector<2x256xf32>
    %cst_5 = arith.constant 0.000000e+00 : f32
    %6 = vector.broadcast %cst_5 : f32 to vector<2x256xf32>
    %7 = arith.maximumf %5, %6 : vector<2x256xf32>
    %8 = arith.truncf %7 : vector<2x256xf32> to vector<2x256xbf16>
    %c0_6 = arith.constant 0 : index
    %c0_7 = arith.constant 0 : index
    %9 = vector.load %arg4[%c0_6, %c0_7] : memref<256x512xbf16, #tpu.memory_space<vmem>>, vector<256x512xbf16>
    %cst_8 = arith.constant dense<0.000000e+00> : vector<2x512xf32>
    %10 = tpu.matmul %8, %9, %cst_8 {dimension_numbers = #tpu.dot_dimension_numbers<[1], [0], [0], [1], [0, 0, 1, 1], [], []>} : vector<2x256xbf16>, vector<256x512xbf16>, vector<2x512xf32> -> vector<2x512xf32>
    %c0_9 = arith.constant 0 : index
    %c0_10 = arith.constant 0 : index
    %11 = vector.load %arg5[%c0_9, %c0_10] : memref<1x512xf32, #tpu.memory_space<vmem>>, vector<1x512xf32>
    %12 = vector.broadcast %11 : vector<1x512xf32> to vector<2x512xf32>
    %13 = arith.addf %10, %12 : vector<2x512xf32>
    %cst_11 = arith.constant 0.000000e+00 : f32
    %14 = vector.broadcast %cst_11 : f32 to vector<2x512xf32>
    %15 = arith.maximumf %13, %14 : vector<2x512xf32>
    %16 = arith.truncf %15 : vector<2x512xf32> to vector<2x512xbf16>
    %c0_12 = arith.constant 0 : index
    %c0_13 = arith.constant 0 : index
    %17 = vector.load %arg6[%c0_12, %c0_13] : memref<512x1024xbf16, #tpu.memory_space<vmem>>, vector<512x1024xbf16>
    %cst_14 = arith.constant dense<0.000000e+00> : vector<2x1024xf32>
    %18 = tpu.matmul %16, %17, %cst_14 {dimension_numbers = #tpu.dot_dimension_numbers<[1], [0], [0], [1], [0, 0, 1, 1], [], []>} : vector<2x512xbf16>, vector<512x1024xbf16>, vector<2x1024xf32> -> vector<2x1024xf32>
    %c0_15 = arith.constant 0 : index
    %c0_16 = arith.constant 0 : index
    %19 = vector.load %arg7[%c0_15, %c0_16] : memref<1x1024xf32, #tpu.memory_space<vmem>>, vector<1x1024xf32>
    %20 = vector.broadcast %19 : vector<1x1024xf32> to vector<2x1024xf32>
    %21 = arith.addf %18, %20 : vector<2x1024xf32>
    %cst_17 = arith.constant 0.000000e+00 : f32
    %22 = vector.broadcast %cst_17 : f32 to vector<2x1024xf32>
    %23 = arith.maximumf %21, %22 : vector<2x1024xf32>
    %24 = arith.truncf %23 : vector<2x1024xf32> to vector<2x1024xbf16>
    %c0_18 = arith.constant 0 : index
    %c0_19 = arith.constant 0 : index
    %25 = vector.load %arg8[%c0_18, %c0_19] : memref<1024x128xbf16, #tpu.memory_space<vmem>>, vector<1024x128xbf16>
    %cst_20 = arith.constant dense<0.000000e+00> : vector<2x128xf32>
    %26 = tpu.matmul %24, %25, %cst_20 {dimension_numbers = #tpu.dot_dimension_numbers<[1], [0], [0], [1], [0, 0, 1, 1], [], []>} : vector<2x1024xbf16>, vector<1024x128xbf16>, vector<2x128xf32> -> vector<2x128xf32>
    %c0_21 = arith.constant 0 : index
    %c0_22 = arith.constant 0 : index
    %27 = vector.load %arg9[%c0_21, %c0_22] : memref<1x128xf32, #tpu.memory_space<vmem>>, vector<1x128xf32>
    %28 = vector.broadcast %27 : vector<1x128xf32> to vector<2x128xf32>
    %29 = arith.addf %26, %28 : vector<2x128xf32>
    %c0_23 = arith.constant 0 : index
    %c0_24 = arith.constant 0 : index
    %30 = vector.load %arg10[%c0_23, %c0_24] : memref<2x128xf32, #tpu.memory_space<vmem>>, vector<2x128xf32>
    tpu.vector_store %arg10[%c0_23, %c0_24], %29 {strides = array<i32>} : memref<2x128xf32, #tpu.memory_space<vmem>>, vector<2x128xf32>,
    return
  }
  func.func @transform_0(%arg0: i32) -> (i32, i32) {
    %c0_i32 = arith.constant 0 : i32
    %c0_i32_0 = arith.constant 0 : i32
    return %arg0, %c0_i32 : i32, i32
  }
  func.func @transform_1(%arg0: i32) -> (i32, i32) {
    %c0_i32 = arith.constant 0 : i32
    %c0_i32_0 = arith.constant 0 : i32
    %c0_i32_1 = arith.constant 0 : i32
    return %c0_i32, %c0_i32_0 : i32, i32
  }
  func.func @transform_2(%arg0: i32) -> (i32, i32) {
    %c0_i32 = arith.constant 0 : i32
    %c0_i32_0 = arith.constant 0 : i32
    %c0_i32_1 = arith.constant 0 : i32
    return %c0_i32, %c0_i32_0 : i32, i32
  }
  func.func @transform_3(%arg0: i32) -> (i32, i32) {
    %c0_i32 = arith.constant 0 : i32
    %c0_i32_0 = arith.constant 0 : i32
    %c0_i32_1 = arith.constant 0 : i32
    return %c0_i32, %c0_i32_0 : i32, i32
  }
  func.func @transform_4(%arg0: i32) -> (i32, i32) {
    %c0_i32 = arith.constant 0 : i32
    %c0_i32_0 = arith.constant 0 : i32
    %c0_i32_1 = arith.constant 0 : i32
    return %c0_i32, %c0_i32_0 : i32, i32
  }
  func.func @transform_5(%arg0: i32) -> (i32, i32) {
    %c0_i32 = arith.constant 0 : i32
    %c0_i32_0 = arith.constant 0 : i32
    %c0_i32_1 = arith.constant 0 : i32
    return %c0_i32, %c0_i32_0 : i32, i32
  }
  func.func @transform_6(%arg0: i32) -> (i32, i32) {
    %c0_i32 = arith.constant 0 : i32
    %c0_i32_0 = arith.constant 0 : i32
    %c0_i32_1 = arith.constant 0 : i32
    return %c0_i32, %c0_i32_0 : i32, i32
  }
  func.func @transform_7(%arg0: i32) -> (i32, i32) {
    %c0_i32 = arith.constant 0 : i32
    %c0_i32_0 = arith.constant 0 : i32
    %c0_i32_1 = arith.constant 0 : i32
    return %c0_i32, %c0_i32_0 : i32, i32
  }
  func.func @transform_8(%arg0: i32) -> (i32, i32) {
    %c0_i32 = arith.constant 0 : i32
    %c0_i32_0 = arith.constant 0 : i32
    %c0_i32_1 = arith.constant 0 : i32
    return %c0_i32, %c0_i32_0 : i32, i32
  }
  func.func @transform_9(%arg0: i32) -> (i32, i32) {
    %c0_i32 = arith.constant 0 : i32
    %c0_i32_0 = arith.constant 0 : i32
    return %arg0, %c0_i32 : i32, i32
  }
}

</mosaic_0001>

<llo_original>
// kernel: tpu_custom_call.1
$region0: #{tpu_custom_call.1}
  #allocation0 [shape = 'u32[]', space=smem, size = 0x4, offset = 0x4, fixed_abs, tag = 'smem constant byte address 0x4 - core index']
  #allocation1 [shape = 'u32[144,128]{1,0:T(1,128)}', space=vmem, size = 0x12000, scoped, tag = 'internal scratch']
  %s0 = inlined_call_operand.hbm [shape: bf16[2,4096], index: 0, kind: input, shape index: {}]
  %s1 = inlined_call_operand.hbm [shape: bf16[4096,256], index: 1, kind: input, shape index: {}]
  %s2 = inlined_call_operand.hbm [shape: f32[1,256], index: 2, kind: input, shape index: {}]
  %s3 = inlined_call_operand.hbm [shape: bf16[256,512], index: 3, kind: input, shape index: {}]
  %s4 = inlined_call_operand.hbm [shape: f32[1,512], index: 4, kind: input, shape index: {}]
  %s5 = inlined_call_operand.hbm [shape: bf16[512,1024], index: 5, kind: input, shape index: {}]
  %s6 = inlined_call_operand.hbm [shape: f32[1,1024], index: 6, kind: input, shape index: {}]
  %s7 = inlined_call_operand.hbm [shape: bf16[1024,128], index: 7, kind: input, shape index: {}]
  %s8 = inlined_call_operand.hbm [shape: f32[1,128], index: 8, kind: input, shape index: {}]
  %s9 = inlined_call_operand.hbm [shape: f32[2,128], index: 9, kind: output, shape index: {}]
  %s10 = sld [smem:[#allocation0]]
  $region82: #{tpu_custom_call.1} parent=0
    _
  %s12 = ssub.s32 1, %s10
  %s13 = scalar_select 0, %s12, %s10
  $region1: #{tpu_custom_call.1} parent=0
    #allocation2 [shape = 'u8[16384]{0}', space=vmem, size = 0x4000, scoped, tag = 'input window, operand 0, single buffered']
    #allocation3 [shape = 's32[1]{0}', space=sflag, size = 0x4, scoped, tag = 'scoped memory for tpu_custom_call.1']
    #allocation4 [shape = 's32[1]{0}', space=sflag, size = 0x4, scoped, tag = 'scoped memory for tpu_custom_call.1']
    #allocation5 [shape = 'u8[2097152]{0}', space=vmem, size = 0x200000, scoped, tag = 'input window, operand 1, single buffered']
    #allocation6 [shape = 's32[1]{0}', space=sflag, size = 0x4, scoped, tag = 'scoped memory for tpu_custom_call.1']
    #allocation7 [shape = 'u8[1024]{0}', space=vmem, size = 0x400, scoped, tag = 'input window, operand 2, single buffered']
    #allocation8 [shape = 'u8[262144]{0}', space=vmem, size = 0x40000, scoped, tag = 'input window, operand 3, single buffered']
    #allocation9 [shape = 's32[1]{0}', space=sflag, size = 0x4, scoped, tag = 'scoped memory for tpu_custom_call.1']
    #allocation10 [shape = 'u8[2048]{0}', space=vmem, size = 0x800, scoped, tag = 'input window, operand 4, single buffered']
    #allocation11 [shape = 'u8[1048576]{0}', space=vmem, size = 0x100000, scoped, tag = 'input window, operand 5, single buffered']
    #allocation12 [shape = 's32[1]{0}', space=sflag, size = 0x4, scoped, tag = 'scoped memory for tpu_custom_call.1']
    #allocation13 [shape = 'u8[4096]{0}', space=vmem, size = 0x1000, scoped, tag = 'input window, operand 6, single buffered']
    #allocation14 [shape = 'u8[262144]{0}', space=vmem, size = 0x40000, scoped, tag = 'input window, operand 7, single buffered']
    #allocation15 [shape = 's32[1]{0}', space=sflag, size = 0x4, scoped, tag = 'scoped memory for tpu_custom_call.1']
    #allocation16 [shape = 'u8[512]{0}', space=vmem, size = 0x400, scoped, tag = 'input window, operand 8, single buffered']
    #allocation17 [shape = 'u8[1024]{0}', space=vmem, size = 0x400, scoped, tag = 'output window, operand 0, single buffered']
    %14 = vsyncpa [#allocation3], 0
    %15 = vsyncpa [#allocation6], 0
    %16 = vsyncpa [#allocation9], 0
    %17 = vsyncpa [#allocation12], 0
    %18 = vsyncpa [#allocation15], 0
    %19 = vsyncpa [#allocation4], 0
    // Predicated region
    $region2: #{tpu_custom_call.1} parent=1 // pred_check
      _
    $region3: #{tpu_custom_call.1} parent=1 // pred_check_branch
      %21 = sbr.rel (0) target = $region5
    $region4: #{tpu_custom_call.1} parent=1 // pred_region
      %s23 = ssub.s32 512, 512
      %24 = vsyncadd [#allocation3], %s23
      %s26 = sshll.u32 [#allocation2], 4
      %s27 = int_to_ptr.vmem [resolvable:$true] %s26
      %29 = dma.hbm_to_vmem [thread:$0]  %s0, 512, %s27, [#allocation3]
    $region5: #{tpu_custom_call.1} parent=1 // pred_fallthru
      _
    // Predicated region
    $region6: #{tpu_custom_call.1} parent=1 // pred_check
      _
    $region7: #{tpu_custom_call.1} parent=1 // pred_check_branch
      %31 = sbr.rel (0) target = $region9
    $region8: #{tpu_custom_call.1} parent=1 // pred_region
      %s33 = ssub.s32 65536, 65536
      %34 = vsyncadd [#allocation6], %s33
      %s35 = sshll.u32 [#allocation5], 4
      %s36 = int_to_ptr.vmem [resolvable:$true] %s35
      %41 = dma.hbm_to_vmem [thread:$0]  %s1, 65536, %s36, [#allocation6], 128, 128, 8
    $region9: #{tpu_custom_call.1} parent=1 // pred_fallthru
      _
    // Predicated region
    $region10: #{tpu_custom_call.1} parent=1 // pred_check
      _
    $region11: #{tpu_custom_call.1} parent=1 // pred_check_branch
      %43 = sbr.rel (0) target = $region13
    $region12: #{tpu_custom_call.1} parent=1 // pred_region
      %s45 = ssub.s32 32, 32
      %46 = vsyncadd [#allocation6], %s45
      %s48 = sshll.u32 [#allocation7], 4
      %s49 = int_to_ptr.vmem [resolvable:$true] %s48
      %51 = dma.hbm_to_vmem [thread:$0]  %s2, 32, %s49, [#allocation6]
    $region13: #{tpu_custom_call.1} parent=1 // pred_fallthru
      _
    // Predicated region
    $region14: #{tpu_custom_call.1} parent=1 // pred_check
      _
    $region15: #{tpu_custom_call.1} parent=1 // pred_check_branch
      %53 = sbr.rel (0) target = $region17
    $region16: #{tpu_custom_call.1} parent=1 // pred_region
      %s55 = ssub.s32 8192, 8192
      %56 = vsyncadd [#allocation9], %s55
      %s57 = sshll.u32 [#allocation8], 4
      %s58 = int_to_ptr.vmem [resolvable:$true] %s57
      %63 = dma.hbm_to_vmem [thread:$0]  %s3, 8192, %s58, [#allocation9], 256, 256, 16
    $region17: #{tpu_custom_call.1} parent=1 // pred_fallthru
      _
    // Predicated region
    $region18: #{tpu_custom_call.1} parent=1 // pred_check
      _
    $region19: #{tpu_custom_call.1} parent=1 // pred_check_branch
      %65 = sbr.rel (0) target = $region21
    $region20: #{tpu_custom_call.1} parent=1 // pred_region
      %s67 = ssub.s32 64, 64
      %68 = vsyncadd [#allocation9], %s67
      %s70 = sshll.u32 [#allocation10], 4
      %s71 = int_to_ptr.vmem [resolvable:$true] %s70
      %73 = dma.hbm_to_vmem [thread:$0]  %s4, 64, %s71, [#allocation9]
    $region21: #{tpu_custom_call.1} parent=1 // pred_fallthru
      _
    // Predicated region
    $region22: #{tpu_custom_call.1} parent=1 // pred_check
      _
    $region23: #{tpu_custom_call.1} parent=1 // pred_check_branch
      %75 = sbr.rel (0) target = $region25
    $region24: #{tpu_custom_call.1} parent=1 // pred_region
      %s77 = ssub.s32 32768, 32768
      %78 = vsyncadd [#allocation12], %s77
      %s79 = sshll.u32 [#allocation11], 4
      %s80 = int_to_ptr.vmem [resolvable:$true] %s79
      %85 = dma.hbm_to_vmem [thread:$0]  %s5, 32768, %s80, [#allocation12], 512, 512, 32
    $region25: #{tpu_custom_call.1} parent=1 // pred_fallthru
      _
    // Predicated region
    $region26: #{tpu_custom_call.1} parent=1 // pred_check
      _
    $region27: #{tpu_custom_call.1} parent=1 // pred_check_branch
      %87 = sbr.rel (0) target = $region29
    $region28: #{tpu_custom_call.1} parent=1 // pred_region
      %s89 = ssub.s32 128, 128
      %90 = vsyncadd [#allocation12], %s89
      %s92 = sshll.u32 [#allocation13], 4
      %s93 = int_to_ptr.vmem [resolvable:$true] %s92
      %95 = dma.hbm_to_vmem [thread:$0]  %s6, 128, %s93, [#allocation12]
    $region29: #{tpu_custom_call.1} parent=1 // pred_fallthru
      _
    // Predicated region
    $region30: #{tpu_custom_call.1} parent=1 // pred_check
      _
    $region31: #{tpu_custom_call.1} parent=1 // pred_check_branch
      %97 = sbr.rel (0) target = $region33
    $region32: #{tpu_custom_call.1} parent=1 // pred_region
      %s99 = ssub.s32 8192, 8192
      %100 = vsyncadd [#allocation15], %s99
      %s101 = sshll.u32 [#allocation14], 4
      %s102 = int_to_ptr.vmem [resolvable:$true] %s101
      %107 = dma.hbm_to_vmem [thread:$0]  %s7, 8192, %s102, [#allocation15], 64, 64, 4
    $region33: #{tpu_custom_call.1} parent=1 // pred_fallthru
      _
    // Predicated region
    $region34: #{tpu_custom_call.1} parent=1 // pred_check
      _
    $region35: #{tpu_custom_call.1} parent=1 // pred_check_branch
      %109 = sbr.rel (0) target = $region37
    $region36: #{tpu_custom_call.1} parent=1 // pred_region
      %s111 = ssub.s32 16, 16
      %112 = vsyncadd [#allocation15], %s111
      %s114 = sshll.u32 [#allocation16], 4
      %s115 = int_to_ptr.vmem [resolvable:$true] %s114
      %117 = dma.hbm_to_vmem [thread:$0]  %s8, 16, %s115, [#allocation15]
    $region37: #{tpu_custom_call.1} parent=1 // pred_fallthru
      _
    // Predicated region
    $region38: #{tpu_custom_call.1} parent=1 // pred_check
      _
    $region39: #{tpu_custom_call.1} parent=1 // pred_check_branch
      %119 = sbr.rel (0) target = $region41
    $region40: #{tpu_custom_call.1} parent=1 // pred_region
      %120 = dma.done [#allocation3], 512
    $region41: #{tpu_custom_call.1} parent=1 // pred_fallthru
      _
    // Predicated region
    $region42: #{tpu_custom_call.1} parent=1 // pred_check
      _
    $region43: #{tpu_custom_call.1} parent=1 // pred_check_branch
      %122 = sbr.rel (0) target = $region45
    $region44: #{tpu_custom_call.1} parent=1 // pred_region
      %123 = dma.done [#allocation6], 65536
    $region45: #{tpu_custom_call.1} parent=1 // pred_fallthru
      _
    // Predicated region
    $region46: #{tpu_custom_call.1} parent=1 // pred_check
      _
    $region47: #{tpu_custom_call.1} parent=1 // pred_check_branch
      %125 = sbr.rel (0) target = $region49
    $region48: #{tpu_custom_call.1} parent=1 // pred_region
      %126 = dma.done [#allocation6], 32
    $region49: #{tpu_custom_call.1} parent=1 // pred_fallthru
      _
    // Predicated region
    $region50: #{tpu_custom_call.1} parent=1 // pred_check
      _
    $region51: #{tpu_custom_call.1} parent=1 // pred_check_branch
      %128 = sbr.rel (0) target = $region53
    $region52: #{tpu_custom_call.1} parent=1 // pred_region
      %129 = dma.done [#allocation9], 8192
    $region53: #{tpu_custom_call.1} parent=1 // pred_fallthru
      _
    // Predicated region
    $region54: #{tpu_custom_call.1} parent=1 // pred_check
      _
    $region55: #{tpu_custom_call.1} parent=1 // pred_check_branch
      %131 = sbr.rel (0) target = $region57
    $region56: #{tpu_custom_call.1} parent=1 // pred_region
      %132 = dma.done [#allocation9], 64
    $region57: #{tpu_custom_call.1} parent=1 // pred_fallthru
      _
    // Predicated region
    $region58: #{tpu_custom_call.1} parent=1 // pred_check
      _
    $region59: #{tpu_custom_call.1} parent=1 // pred_check_branch
      %134 = sbr.rel (0) target = $region61
    $region60: #{tpu_custom_call.1} parent=1 // pred_region
      %135 = dma.done [#allocation12], 32768
    $region61: #{tpu_custom_call.1} parent=1 // pred_fallthru
      _
    // Predicated region
    $region62: #{tpu_custom_call.1} parent=1 // pred_check
      _
    $region63: #{tpu_custom_call.1} parent=1 // pred_check_branch
      %137 = sbr.rel (0) target = $region65
    $region64: #{tpu_custom_call.1} parent=1 // pred_region
      %138 = dma.done [#allocation12], 128
    $region65: #{tpu_custom_call.1} parent=1 // pred_fallthru
      _
    // Predicated region
    $region66: #{tpu_custom_call.1} parent=1 // pred_check
      _
    $region67: #{tpu_custom_call.1} parent=1 // pred_check_branch
      %140 = sbr.rel (0) target = $region69
    $region68: #{tpu_custom_call.1} parent=1 // pred_region
      %141 = dma.done [#allocation15], 8192
    $region69: #{tpu_custom_call.1} parent=1 // pred_fallthru
      _
    // Predicated region
    $region70: #{tpu_custom_call.1} parent=1 // pred_check
      _
    $region71: #{tpu_custom_call.1} parent=1 // pred_check_branch
      %143 = sbr.rel (0) target = $region73
    $region72: #{tpu_custom_call.1} parent=1 // pred_region
      %144 = dma.done [#allocation15], 16
    $region73: #{tpu_custom_call.1} parent=1 // pred_fallthru
      _
    %v146 = vld [vmem:[#allocation2] sm:$0xff]
    %v147 = vld [vmem:[#allocation2 + $0x8] sm:$0xff]
    %v148 = vld [vmem:[#allocation2 + $0x10] sm:$0xff]
    %v149 = vld [vmem:[#allocation2 + $0x18] sm:$0xff]
    %v150 = vld [vmem:[#allocation5] sm:$0xff]
    %v151 = vld [vmem:[#allocation5 + $0x8] sm:$0xff]
    %v152 = vld [vmem:[#allocation5 + $0x10] sm:$0xff]
    %v153 = vld [vmem:[#allocation5 + $0x18] sm:$0xff]
    %v154 = vld [vmem:[#allocation5 + $0x20] sm:$0xff]
    %v155 = vld [vmem:[#allocation5 + $0x28] sm:$0xff]
    %v156 = vld [vmem:[#allocation5 + $0x30] sm:$0xff]
    %v157 = vld [vmem:[#allocation5 + $0x38] sm:$0xff]
    %v158 = vld [vmem:[#allocation5 + $0x40] sm:$0xff]
    %v159 = vld [vmem:[#allocation5 + $0x48] sm:$0xff]
    %v160 = vld [vmem:[#allocation5 + $0x50] sm:$0xff]
    %v161 = vld [vmem:[#allocation5 + $0x58] sm:$0xff]
    %v162 = vld [vmem:[#allocation5 + $0x60] sm:$0xff]
    %v163 = vld [vmem:[#allocation5 + $0x68] sm:$0xff]
    %v164 = vld [vmem:[#allocation5 + $0x70] sm:$0xff]
    %v165 = vld [vmem:[#allocation5 + $0x78] sm:$0xff]
    %v166 = vld [vmem:[#allocation5 + $0x80] sm:$0xff]
    %v167 = vld [vmem:[#allocation5 + $0x88] sm:$0xff]
    %v168 = vld [vmem:[#allocation5 + $0x90] sm:$0xff]
    %v169 = vld [vmem:[#allocation5 + $0x98] sm:$0xff]
    %v170 = vld [vmem:[#allocation5 + $0xa0] sm:$0xff]
    %v171 = vld [vmem:[#allocation5 + $0xa8] sm:$0xff]
    %v172 = vld [vmem:[#allocation5 + $0xb0] sm:$0xff]
    %v173 = vld [vmem:[#allocation5 + $0xb8] sm:$0xff]
    %v174 = vld [vmem:[#allocation5 + $0xc0] sm:$0xff]
    %v175 = vld [vmem:[#allocation5 + $0xc8] sm:$0xff]
    %v176 = vld [vmem:[#allocation5 + $0xd0] sm:$0xff]
    %v177 = vld [vmem:[#allocation5 + $0xd8] sm:$0xff]
    %v178 = vld [vmem:[#allocation5 + $0xe0] sm:$0xff]
    %v179 = vld [vmem:[#allocation5 + $0xe8] sm:$0xff]
    %v180 = vld [vmem:[#allocation5 + $0xf0] sm:$0xff]
    %v181 = vld [vmem:[#allocation5 + $0xf8] sm:$0xff]
    %v182 = vld [vmem:[#allocation5 + $0x100] sm:$0xff]
    %v183 = vld [vmem:[#allocation5 + $0x108] sm:$0xff]
    %v184 = vld [vmem:[#allocation5 + $0x110] sm:$0xff]
    %v185 = vld [vmem:[#allocation5 + $0x118] sm:$0xff]
    %v186 = vld [vmem:[#allocation5 + $0x120] sm:$0xff]
    %v187 = vld [vmem:[#allocation5 + $0x128] sm:$0xff]
    %v188 = vld [vmem:[#allocation5 + $0x130] sm:$0xff]
    %v189 = vld [vmem:[#allocation5 + $0x138] sm:$0xff]
    %v190 = vld [vmem:[#allocation5 + $0x140] sm:$0xff]
    %v191 = vld [vmem:[#allocation5 + $0x148] sm:$0xff]
    %v192 = vld [vmem:[#allocation5 + $0x150] sm:$0xff]
    %v193 = vld [vmem:[#allocation5 + $0x158] sm:$0xff]
    %v194 = vld [vmem:[#allocation5 + $0x160] sm:$0xff]
    %v195 = vld [vmem:[#allocation5 + $0x168] sm:$0xff]
    %v196 = vld [vmem:[#allocation5 + $0x170] sm:$0xff]
    %v197 = vld [vmem:[#allocation5 + $0x178] sm:$0xff]
    %v198 = vld [vmem:[#allocation5 + $0x180] sm:$0xff]
    %v199 = vld [vmem:[#allocation5 + $0x188] sm:$0xff]
    %v200 = vld [vmem:[#allocation5 + $0x190] sm:$0xff]
    %v201 = vld [vmem:[#allocation5 + $0x198] sm:$0xff]
    %v202 = vld [vmem:[#allocation5 + $0x1a0] sm:$0xff]
    %v203 = vld [vmem:[#allocation5 + $0x1a8] sm:$0xff]
    %v204 = vld [vmem:[#allocation5 + $0x1b0] sm:$0xff]
    %v205 = vld [vmem:[#allocation5 + $0x1b8] sm:$0xff]
    %v206 = vld [vmem:[#allocation5 + $0x1c0] sm:$0xff]
    %v207 = vld [vmem:[#allocation5 + $0x1c8] sm:$0xff]
    %v208 = vld [vmem:[#allocation5 + $0x1d0] sm:$0xff]
    %v209 = vld [vmem:[#allocation5 + $0x1d8] sm:$0xff]
    %v210 = vld [vmem:[#allocation5 + $0x1e0] sm:$0xff]
    %v211 = vld [vmem:[#allocation5 + $0x1e8] sm:$0xff]
    %v212 = vld [vmem:[#allocation5 + $0x1f0] sm:$0xff]
    %v213 = vld [vmem:[#allocation5 + $0x1f8] sm:$0xff]
    %v214 = vld [vmem:[#allocation5 + $0x200] sm:$0xff]
    %v215 = vld [vmem:[#allocation5 + $0x208] sm:$0xff]
    %v216 = vld [vmem:[#allocation5 + $0x210] sm:$0xff]
    %v217 = vld [vmem:[#allocation5 + $0x218] sm:$0xff]
    %v218 = vld [vmem:[#allocation5 + $0x220] sm:$0xff]
    %v219 = vld [vmem:[#allocation5 + $0x228] sm:$0xff]
    %v220 = vld [vmem:[#allocation5 + $0x230] sm:$0xff]
    %v221 = vld [vmem:[#allocation5 + $0x238] sm:$0xff]
    %v222 = vld [vmem:[#allocation5 + $0x240] sm:$0xff]
    %v223 = vld [vmem:[#allocation5 + $0x248] sm:$0xff]
    %v224 = vld [vmem:[#allocation5 + $0x250] sm:$0xff]
    %v225 = vld [vmem:[#allocation5 + $0x258] sm:$0xff]
    %v226 = vld [vmem:[#allocation5 + $0x260] sm:$0xff]
    %v227 = vld [vmem:[#allocation5 + $0x268] sm:$0xff]
    %v228 = vld [vmem:[#allocation5 + $0x270] sm:$0xff]
    %v229 = vld [vmem:[#allocation5 + $0x278] sm:$0xff]
    %v230 = vld [vmem:[#allocation5 + $0x280] sm:$0xff]
    %v231 = vld [vmem:[#allocation5 + $0x288] sm:$0xff]
    %v232 = vld [vmem:[#allocation5 + $0x290] sm:$0xff]
    %v233 = vld [vmem:[#allocation5 + $0x298] sm:$0xff]
    %v234 = vld [vmem:[#allocation5 + $0x2a0] sm:$0xff]
    %v235 = vld [vmem:[#allocation5 + $0x2a8] sm:$0xff]
    %v236 = vld [vmem:[#allocation5 + $0x2b0] sm:$0xff]
    %v237 = vld [vmem:[#allocation5 + $0x2b8] sm:$0xff]
    %v238 = vld [vmem:[#allocation5 + $0x2c0] sm:$0xff]
    %v239 = vld [vmem:[#allocation5 + $0x2c8] sm:$0xff]
    %v240 = vld [vmem:[#allocation5 + $0x2d0] sm:$0xff]
    %v241 = vld [vmem:[#allocation5 + $0x2d8] sm:$0xff]
    %v242 = vld [vmem:[#allocation5 + $0x2e0] sm:$0xff]
    %v243 = vld [vmem:[#allocation5 + $0x2e8] sm:$0xff]
    %v244 = vld [vmem:[#allocation5 + $0x2f0] sm:$0xff]
    %v245 = vld [vmem:[#allocation5 + $0x2f8] sm:$0xff]
    %v246 = vld [vmem:[#allocation5 + $0x300] sm:$0xff]
    %v247 = vld [vmem:[#allocation5 + $0x308] sm:$0xff]
    %v248 = vld [vmem:[#allocation5 + $0x310] sm:$0xff]
    %v249 = vld [vmem:[#allocation5 + $0x318] sm:$0xff]
    %v250 = vld [vmem:[#allocation5 + $0x320] sm:$0xff]
    %v251 = vld [vmem:[#allocation5 + $0x328] sm:$0xff]
    %v252 = vld [vmem:[#allocation5 + $0x330] sm:$0xff]
    %v253 = vld [vmem:[#allocation5 + $0x338] sm:$0xff]
    %v254 = vld [vmem:[#allocation5 + $0x340] sm:$0xff]
    %v255 = vld [vmem:[#allocation5 + $0x348] sm:$0xff]
    %v256 = vld [vmem:[#allocation5 + $0x350] sm:$0xff]
    %v257 = vld [vmem:[#allocation5 + $0x358] sm:$0xff]
    %v258 = vld [vmem:[#allocation5 + $0x360] sm:$0xff]
    %v259 = vld [vmem:[#allocation5 + $0x368] sm:$0xff]
    %v260 = vld [vmem:[#allocation5 + $0x370] sm:$0xff]
    %v261 = vld [vmem:[#allocation5 + $0x378] sm:$0xff]
    %v262 = vld [vmem:[#allocation5 + $0x380] sm:$0xff]
    %v263 = vld [vmem:[#allocation5 + $0x388] sm:$0xff]
    %v264 = vld [vmem:[#allocation5 + $0x390] sm:$0xff]
    %v265 = vld [vmem:[#allocation5 + $0x398] sm:$0xff]
    %v266 = vld [vmem:[#allocation5 + $0x3a0] sm:$0xff]
    %v267 = vld [vmem:[#allocation5 + $0x3a8] sm:$0xff]
    %v268 = vld [vmem:[#allocation5 + $0x3b0] sm:$0xff]
    %v269 = vld [vmem:[#allocation5 + $0x3b8] sm:$0xff]
    %v270 = vld [vmem:[#allocation5 + $0x3c0] sm:$0xff]
    %v271 = vld [vmem:[#allocation5 + $0x3c8] sm:$0xff]
    %v272 = vld [vmem:[#allocation5 + $0x3d0] sm:$0xff]
    %v273 = vld [vmem:[#allocation5 + $0x3d8] sm:$0xff]
    %v274 = vld [vmem:[#allocation5 + $0x3e0] sm:$0xff]
    %v275 = vld [vmem:[#allocation5 + $0x3e8] sm:$0xff]
    %v276 = vld [vmem:[#allocation5 + $0x3f0] sm:$0xff]
    %v277 = vld [vmem:[#allocation5 + $0x3f8] sm:$0xff]
    %v278 = vld [vmem:[#allocation5 + $0x400] sm:$0xff]
    %v279 = vld [vmem:[#allocation5 + $0x408] sm:$0xff]
    %v280 = vld [vmem:[#allocation5 + $0x410] sm:$0xff]
    %v281 = vld [vmem:[#allocation5 + $0x418] sm:$0xff]
    %v282 = vld [vmem:[#allocation5 + $0x420] sm:$0xff]
    %v283 = vld [vmem:[#allocation5 + $0x428] sm:$0xff]
    %v284 = vld [vmem:[#allocation5 + $0x430] sm:$0xff]
    %v285 = vld [vmem:[#allocation5 + $0x438] sm:$0xff]
    %v286 = vld [vmem:[#allocation5 + $0x440] sm:$0xff]
    %v287 = vld [vmem:[#allocation5 + $0x448] sm:$0xff]
    %v288 = vld [vmem:[#allocation5 + $0x450] sm:$0xff]
    %v289 = vld [vmem:[#allocation5 + $0x458] sm:$0xff]
    %v290 = vld [vmem:[#allocation5 + $0x460] sm:$0xff]
    %v291 = vld [vmem:[#allocation5 + $0x468] sm:$0xff]
    %v292 = vld [vmem:[#allocation5 + $0x470] sm:$0xff]
    %v293 = vld [vmem:[#allocation5 + $0x478] sm:$0xff]
    %v294 = vld [vmem:[#allocation5 + $0x480] sm:$0xff]
    %v295 = vld [vmem:[#allocation5 + $0x488] sm:$0xff]
    %v296 = vld [vmem:[#allocation5 + $0x490] sm:$0xff]
    %v297 = vld [vmem:[#allocation5 + $0x498] sm:$0xff]
    %v298 = vld [vmem:[#allocation5 + $0x4a0] sm:$0xff]
    %v299 = vld [vmem:[#allocation5 + $0x4a8] sm:$0xff]
    %v300 = vld [vmem:[#allocation5 + $0x4b0] sm:$0xff]
    %v301 = vld [vmem:[#allocation5 + $0x4b8] sm:$0xff]
    %v302 = vld [vmem:[#allocation5 + $0x4c0] sm:$0xff]
    %v303 = vld [vmem:[#allocation5 + $0x4c8] sm:$0xff]
    %v304 = vld [vmem:[#allocation5 + $0x4d0] sm:$0xff]
    %v305 = vld [vmem:[#allocation5 + $0x4d8] sm:$0xff]
    %v306 = vld [vmem:[#allocation5 + $0x4e0] sm:$0xff]
    %v307 = vld [vmem:[#allocation5 + $0x4e8] sm:$0xff]
    %v308 = vld [vmem:[#allocation5 + $0x4f0] sm:$0xff]
    %v309 = vld [vmem:[#allocation5 + $0x4f8] sm:$0xff]
    %v310 = vld [vmem:[#allocation5 + $0x500] sm:$0xff]
    %v311 = vld [vmem:[#allocation5 + $0x508] sm:$0xff]
    %v312 = vld [vmem:[#allocation5 + $0x510] sm:$0xff]
    %v313 = vld [vmem:[#allocation5 + $0x518] sm:$0xff]
    %v314 = vld [vmem:[#allocation5 + $0x520] sm:$0xff]
    %v315 = vld [vmem:[#allocation5 + $0x528] sm:$0xff]
    %v316 = vld [vmem:[#allocation5 + $0x530] sm:$0xff]
    %v317 = vld [vmem:[#allocation5 + $0x538] sm:$0xff]
    %v318 = vld [vmem:[#allocation5 + $0x540] sm:$0xff]
    %v319 = vld [vmem:[#allocation5 + $0x548] sm:$0xff]
    %v320 = vld [vmem:[#allocation5 + $0x550] sm:$0xff]
    %v321 = vld [vmem:[#allocation5 + $0x558] sm:$0xff]
    %v322 = vld [vmem:[#allocation5 + $0x560] sm:$0xff]
    %v323 = vld [vmem:[#allocation5 + $0x568] sm:$0xff]
    %v324 = vld [vmem:[#allocation5 + $0x570] sm:$0xff]
    %v325 = vld [vmem:[#allocation5 + $0x578] sm:$0xff]
    %v326 = vld [vmem:[#allocation5 + $0x580] sm:$0xff]
    %v327 = vld [vmem:[#allocation5 + $0x588] sm:$0xff]
    %v328 = vld [vmem:[#allocation5 + $0x590] sm:$0xff]
    %v329 = vld [vmem:[#allocation5 + $0x598] sm:$0xff]
    %v330 = vld [vmem:[#allocation5 + $0x5a0] sm:$0xff]
    %v331 = vld [vmem:[#allocation5 + $0x5a8] sm:$0xff]
    %v332 = vld [vmem:[#allocation5 + $0x5b0] sm:$0xff]
    %v333 = vld [vmem:[#allocation5 + $0x5b8] sm:$0xff]
    %v334 = vld [vmem:[#allocation5 + $0x5c0] sm:$0xff]
    %v335 = vld [vmem:[#allocation5 + $0x5c8] sm:$0xff]
    %v336 = vld [vmem:[#allocation5 + $0x5d0] sm:$0xff]
    %v337 = vld [vmem:[#allocation5 + $0x5d8] sm:$0xff]
    %v338 = vld [vmem:[#allocation5 + $0x5e0] sm:$0xff]
    %v339 = vld [vmem:[#allocation5 + $0x5e8] sm:$0xff]
    %v340 = vld [vmem:[#allocation5 + $0x5f0] sm:$0xff]
    %v341 = vld [vmem:[#allocation5 + $0x5f8] sm:$0xff]
    %v342 = vld [vmem:[#allocation5 + $0x600] sm:$0xff]
    %v343 = vld [vmem:[#allocation5 + $0x608] sm:$0xff]
    %v344 = vld [vmem:[#allocation5 + $0x610] sm:$0xff]
    %v345 = vld [vmem:[#allocation5 + $0x618] sm:$0xff]
    %v346 = vld [vmem:[#allocation5 + $0x620] sm:$0xff]
    %v347 = vld [vmem:[#allocation5 + $0x628] sm:$0xff]
    %v348 = vld [vmem:[#allocation5 + $0x630] sm:$0xff]
    %v349 = vld [vmem:[#allocation5 + $0x638] sm:$0xff]
    %v350 = vld [vmem:[#allocation5 + $0x640] sm:$0xff]
    %v351 = vld [vmem:[#allocation5 + $0x648] sm:$0xff]
    %v352 = vld [vmem:[#allocation5 + $0x650] sm:$0xff]
    %v353 = vld [vmem:[#allocation5 + $0x658] sm:$0xff]
    %v354 = vld [vmem:[#allocation5 + $0x660] sm:$0xff]
    %v355 = vld [vmem:[#allocation5 + $0x668] sm:$0xff]
    %v356 = vld [vmem:[#allocation5 + $0x670] sm:$0xff]
    %v357 = vld [vmem:[#allocation5 + $0x678] sm:$0xff]
    %v358 = vld [vmem:[#allocation5 + $0x680] sm:$0xff]
    %v359 = vld [vmem:[#allocation5 + $0x688] sm:$0xff]
    %v360 = vld [vmem:[#allocation5 + $0x690] sm:$0xff]
    %v361 = vld [vmem:[#allocation5 + $0x698] sm:$0xff]
    %v362 = vld [vmem:[#allocation5 + $0x6a0] sm:$0xff]
    %v363 = vld [vmem:[#allocation5 + $0x6a8] sm:$0xff]
    %v364 = vld [vmem:[#allocation5 + $0x6b0] sm:$0xff]
    %v365 = vld [vmem:[#allocation5 + $0x6b8] sm:$0xff]
    %v366 = vld [vmem:[#allocation5 + $0x6c0] sm:$0xff]
    %v367 = vld [vmem:[#allocation5 + $0x6c8] sm:$0xff]
    %v368 = vld [vmem:[#allocation5 + $0x6d0] sm:$0xff]
    %v369 = vld [vmem:[#allocation5 + $0x6d8] sm:$0xff]
    %v370 = vld [vmem:[#allocation5 + $0x6e0] sm:$0xff]
    %v371 = vld [vmem:[#allocation5 + $0x6e8] sm:$0xff]
    %v372 = vld [vmem:[#allocation5 + $0x6f0] sm:$0xff]
    %v373 = vld [vmem:[#allocation5 + $0x6f8] sm:$0xff]
    %v374 = vld [vmem:[#allocation5 + $0x700] sm:$0xff]
    %v375 = vld [vmem:[#allocation5 + $0x708] sm:$0xff]
    %v376 = vld [vmem:[#allocation5 + $0x710] sm:$0xff]
    %v377 = vld [vmem:[#allocation5 + $0x718] sm:$0xff]
    %v378 = vld [vmem:[#allocation5 + $0x720] sm:$0xff]
    %v379 = vld [vmem:[#allocation5 + $0x728] sm:$0xff]
    %v380 = vld [vmem:[#allocation5 + $0x730] sm:$0xff]
    %v381 = vld [vmem:[#allocation5 + $0x738] sm:$0xff]
    %v382 = vld [vmem:[#allocation5 + $0x740] sm:$0xff]
    %v383 = vld [vmem:[#allocation5 + $0x748] sm:$0xff]
    %v384 = vld [vmem:[#allocation5 + $0x750] sm:$0xff]
    %v385 = vld [vmem:[#allocation5 + $0x758] sm:$0xff]
    %v386 = vld [vmem:[#allocation5 + $0x760] sm:$0xff]
    %v387 = vld [vmem:[#allocation5 + $0x768] sm:$0xff]
    %v388 = vld [vmem:[#allocation5 + $0x770] sm:$0xff]
    %v389 = vld [vmem:[#allocation5 + $0x778] sm:$0xff]
    %v390 = vld [vmem:[#allocation5 + $0x780] sm:$0xff]
    %v391 = vld [vmem:[#allocation5 + $0x788] sm:$0xff]
    %v392 = vld [vmem:[#allocation5 + $0x790] sm:$0xff]
    %v393 = vld [vmem:[#allocation5 + $0x798] sm:$0xff]
    %v394 = vld [vmem:[#allocation5 + $0x7a0] sm:$0xff]
    %v395 = vld [vmem:[#allocation5 + $0x7a8] sm:$0xff]
    %v396 = vld [vmem:[#allocation5 + $0x7b0] sm:$0xff]
    %v397 = vld [vmem:[#allocation5 + $0x7b8] sm:$0xff]
    %v398 = vld [vmem:[#allocation5 + $0x7c0] sm:$0xff]
    %v399 = vld [vmem:[#allocation5 + $0x7c8] sm:$0xff]
    %v400 = vld [vmem:[#allocation5 + $0x7d0] sm:$0xff]
    %v401 = vld [vmem:[#allocation5 + $0x7d8] sm:$0xff]
    %v402 = vld [vmem:[#allocation5 + $0x7e0] sm:$0xff]
    %v403 = vld [vmem:[#allocation5 + $0x7e8] sm:$0xff]
    %v404 = vld [vmem:[#allocation5 + $0x7f0] sm:$0xff]
    %v405 = vld [vmem:[#allocation5 + $0x7f8] sm:$0xff]
    %v406 = vld [vmem:[#allocation5 + $0x800] sm:$0xff]
    %v407 = vld [vmem:[#allocation5 + $0x808] sm:$0xff]
    %v408 = vld [vmem:[#allocation5 + $0x810] sm:$0xff]
    %v409 = vld [vmem:[#allocation5 + $0x818] sm:$0xff]
    %v410 = vld [vmem:[#allocation5 + $0x820] sm:$0xff]
    %v411 = vld [vmem:[#allocation5 + $0x828] sm:$0xff]
    %v412 = vld [vmem:[#allocation5 + $0x830] sm:$0xff]
    %v413 = vld [vmem:[#allocation5 + $0x838] sm:$0xff]
    %v414 = vld [vmem:[#allocation5 + $0x840] sm:$0xff]
    %v415 = vld [vmem:[#allocation5 + $0x848] sm:$0xff]
    %v416 = vld [vmem:[#allocation5 + $0x850] sm:$0xff]
    %v417 = vld [vmem:[#allocation5 + $0x858] sm:$0xff]
    %v418 = vld [vmem:[#allocation5 + $0x860] sm:$0xff]
    %v419 = vld [vmem:[#allocation5 + $0x868] sm:$0xff]
    %v420 = vld [vmem:[#allocation5 + $0x870] sm:$0xff]
    %v421 = vld [vmem:[#allocation5 + $0x878] sm:$0xff]
    %v422 = vld [vmem:[#allocation5 + $0x880] sm:$0xff]
    %v423 = vld [vmem:[#allocation5 + $0x888] sm:$0xff]
    %v424 = vld [vmem:[#allocation5 + $0x890] sm:$0xff]
    %v425 = vld [vmem:[#allocation5 + $0x898] sm:$0xff]
    %v426 = vld [vmem:[#allocation5 + $0x8a0] sm:$0xff]
    %v427 = vld [vmem:[#allocation5 + $0x8a8] sm:$0xff]
    %v428 = vld [vmem:[#allocation5 + $0x8b0] sm:$0xff]
    %v429 = vld [vmem:[#allocation5 + $0x8b8] sm:$0xff]
    %v430 = vld [vmem:[#allocation5 + $0x8c0] sm:$0xff]
    %v431 = vld [vmem:[#allocation5 + $0x8c8] sm:$0xff]
    %v432 = vld [vmem:[#allocation5 + $0x8d0] sm:$0xff]
    %v433 = vld [vmem:[#allocation5 + $0x8d8] sm:$0xff]
    %v434 = vld [vmem:[#allocation5 + $0x8e0] sm:$0xff]
    %v435 = vld [vmem:[#allocation5 + $0x8e8] sm:$0xff]
    %v436 = vld [vmem:[#allocation5 + $0x8f0] sm:$0xff]
    %v437 = vld [vmem:[#allocation5 + $0x8f8] sm:$0xff]
    %v438 = vld [vmem:[#allocation5 + $0x900] sm:$0xff]
    %v439 = vld [vmem:[#allocation5 + $0x908] sm:$0xff]
    %v440 = vld [vmem:[#allocation5 + $0x910] sm:$0xff]
    %v441 = vld [vmem:[#allocation5 + $0x918] sm:$0xff]
    %v442 = vld [vmem:[#allocation5 + $0x920] sm:$0xff]
    %v443 = vld [vmem:[#allocation5 + $0x928] sm:$0xff]
    %v444 = vld [vmem:[#allocation5 + $0x930] sm:$0xff]
    %v445 = vld [vmem:[#allocation5 + $0x938] sm:$0xff]
    %v446 = vld [vmem:[#allocation5 + $0x940] sm:$0xff]
    %v447 = vld [vmem:[#allocation5 + $0x948] sm:$0xff]
    %v448 = vld [vmem:[#allocation5 + $0x950] sm:$0xff]
    %v449 = vld [vmem:[#allocation5 + $0x958] sm:$0xff]
    %v450 = vld [vmem:[#allocation5 + $0x960] sm:$0xff]
    %v451 = vld [vmem:[#allocation5 + $0x968] sm:$0xff]
    %v452 = vld [vmem:[#allocation5 + $0x970] sm:$0xff]
    %v453 = vld [vmem:[#allocation5 + $0x978] sm:$0xff]
    %v454 = vld [vmem:[#allocation5 + $0x980] sm:$0xff]
    %v455 = vld [vmem:[#allocation5 + $0x988] sm:$0xff]
    %v456 = vld [vmem:[#allocation5 + $0x990] sm:$0xff]
    %v457 = vld [vmem:[#allocation5 + $0x998] sm:$0xff]
    %v458 = vld [vmem:[#allocation5 + $0x9a0] sm:$0xff]
    %v459 = vld [vmem:[#allocation5 + $0x9a8] sm:$0xff]
    %v460 = vld [vmem:[#allocation5 + $0x9b0] sm:$0xff]
    %v461 = vld [vmem:[#allocation5 + $0x9b8] sm:$0xff]
    %v462 = vld [vmem:[#allocation5 + $0x9c0] sm:$0xff]
    %v463 = vld [vmem:[#allocation5 + $0x9c8] sm:$0xff]
    %v464 = vld [vmem:[#allocation5 + $0x9d0] sm:$0xff]
    %v465 = vld [vmem:[#allocation5 + $0x9d8] sm:$0xff]
    %v466 = vld [vmem:[#allocation5 + $0x9e0] sm:$0xff]
    %v467 = vld [vmem:[#allocation5 + $0x9e8] sm:$0xff]
    %v468 = vld [vmem:[#allocation5 + $0x9f0] sm:$0xff]
    %v469 = vld [vmem:[#allocation5 + $0x9f8] sm:$0xff]
    %v470 = vld [vmem:[#allocation5 + $0xa00] sm:$0xff]
    %v471 = vld [vmem:[#allocation5 + $0xa08] sm:$0xff]
    %v472 = vld [vmem:[#allocation5 + $0xa10] sm:$0xff]
    %v473 = vld [vmem:[#allocation5 + $0xa18] sm:$0xff]
    %v474 = vld [vmem:[#allocation5 + $0xa20] sm:$0xff]
    %v475 = vld [vmem:[#allocation5 + $0xa28] sm:$0xff]
    %v476 = vld [vmem:[#allocation5 + $0xa30] sm:$0xff]
    %v477 = vld [vmem:[#allocation5 + $0xa38] sm:$0xff]
    %v478 = vld [vmem:[#allocation5 + $0xa40] sm:$0xff]
    %v479 = vld [vmem:[#allocation5 + $0xa48] sm:$0xff]
    %v480 = vld [vmem:[#allocation5 + $0xa50] sm:$0xff]
    %v481 = vld [vmem:[#allocation5 + $0xa58] sm:$0xff]
    %v482 = vld [vmem:[#allocation5 + $0xa60] sm:$0xff]
    %v483 = vld [vmem:[#allocation5 + $0xa68] sm:$0xff]
    %v484 = vld [vmem:[#allocation5 + $0xa70] sm:$0xff]
    %v485 = vld [vmem:[#allocation5 + $0xa78] sm:$0xff]
    %v486 = vld [vmem:[#allocation5 + $0xa80] sm:$0xff]
    %v487 = vld [vmem:[#allocation5 + $0xa88] sm:$0xff]
    %v488 = vld [vmem:[#allocation5 + $0xa90] sm:$0xff]
    %v489 = vld [vmem:[#allocation5 + $0xa98] sm:$0xff]
    %v490 = vld [vmem:[#allocation5 + $0xaa0] sm:$0xff]
    %v491 = vld [vmem:[#allocation5 + $0xaa8] sm:$0xff]
    %v492 = vld [vmem:[#allocation5 + $0xab0] sm:$0xff]
    %v493 = vld [vmem:[#allocation5 + $0xab8] sm:$0xff]
    %v494 = vld [vmem:[#allocation5 + $0xac0] sm:$0xff]
    %v495 = vld [vmem:[#allocation5 + $0xac8] sm:$0xff]
    %v496 = vld [vmem:[#allocation5 + $0xad0] sm:$0xff]
    %v497 = vld [vmem:[#allocation5 + $0xad8] sm:$0xff]
    %v498 = vld [vmem:[#allocation5 + $0xae0] sm:$0xff]
    %v499 = vld [vmem:[#allocation5 + $0xae8] sm:$0xff]
    %v500 = vld [vmem:[#allocation5 + $0xaf0] sm:$0xff]
    %v501 = vld [vmem:[#allocation5 + $0xaf8] sm:$0xff]
    %v502 = vld [vmem:[#allocation5 + $0xb00] sm:$0xff]
    %v503 = vld [vmem:[#allocation5 + $0xb08] sm:$0xff]
    %v504 = vld [vmem:[#allocation5 + $0xb10] sm:$0xff]
    %v505 = vld [vmem:[#allocation5 + $0xb18] sm:$0xff]
    %v506 = vld [vmem:[#allocation5 + $0xb20] sm:$0xff]
    %v507 = vld [vmem:[#allocation5 + $0xb28] sm:$0xff]
    %v508 = vld [vmem:[#allocation5 + $0xb30] sm:$0xff]
    %v509 = vld [vmem:[#allocation5 + $0xb38] sm:$0xff]
    %v510 = vld [vmem:[#allocation5 + $0xb40] sm:$0xff]
    %v511 = vld [vmem:[#allocation5 + $0xb48] sm:$0xff]
    %v512 = vld [vmem:[#allocation5 + $0xb50] sm:$0xff]
    %v513 = vld [vmem:[#allocation5 + $0xb58] sm:$0xff]
    %v514 = vld [vmem:[#allocation5 + $0xb60] sm:$0xff]
    %v515 = vld [vmem:[#allocation5 + $0xb68] sm:$0xff]
    %v516 = vld [vmem:[#allocation5 + $0xb70] sm:$0xff]
    %v517 = vld [vmem:[#allocation5 + $0xb78] sm:$0xff]
    %v518 = vld [vmem:[#allocation5 + $0xb80] sm:$0xff]
    %v519 = vld [vmem:[#allocation5 + $0xb88] sm:$0xff]
    %v520 = vld [vmem:[#allocation5 + $0xb90] sm:$0xff]
    %v521 = vld [vmem:[#allocation5 + $0xb98] sm:$0xff]
    %v522 = vld [vmem:[#allocation5 + $0xba0] sm:$0xff]
    %v523 = vld [vmem:[#allocation5 + $0xba8] sm:$0xff]
    %v524 = vld [vmem:[#allocation5 + $0xbb0] sm:$0xff]
    %v525 = vld [vmem:[#allocation5 + $0xbb8] sm:$0xff]
    %v526 = vld [vmem:[#allocation5 + $0xbc0] sm:$0xff]
    %v527 = vld [vmem:[#allocation5 + $0xbc8] sm:$0xff]
    %v528 = vld [vmem:[#allocation5 + $0xbd0] sm:$0xff]
    %v529 = vld [vmem:[#allocation5 + $0xbd8] sm:$0xff]
    %v530 = vld [vmem:[#allocation5 + $0xbe0] sm:$0xff]
    %v531 = vld [vmem:[#allocation5 + $0xbe8] sm:$0xff]
    %v532 = vld [vmem:[#allocation5 + $0xbf0] sm:$0xff]
    %v533 = vld [vmem:[#allocation5 + $0xbf8] sm:$0xff]
    %v534 = vld [vmem:[#allocation5 + $0xc00] sm:$0xff]
    %v535 = vld [vmem:[#allocation5 + $0xc08] sm:$0xff]
    %v536 = vld [vmem:[#allocation5 + $0xc10] sm:$0xff]
    %v537 = vld [vmem:[#allocation5 + $0xc18] sm:$0xff]
    %v538 = vld [vmem:[#allocation5 + $0xc20] sm:$0xff]
    %v539 = vld [vmem:[#allocation5 + $0xc28] sm:$0xff]
    %v540 = vld [vmem:[#allocation5 + $0xc30] sm:$0xff]
    %v541 = vld [vmem:[#allocation5 + $0xc38] sm:$0xff]
    %v542 = vld [vmem:[#allocation5 + $0xc40] sm:$0xff]
    %v543 = vld [vmem:[#allocation5 + $0xc48] sm:$0xff]
    %v544 = vld [vmem:[#allocation5 + $0xc50] sm:$0xff]
    %v545 = vld [vmem:[#allocation5 + $0xc58] sm:$0xff]
    %v546 = vld [vmem:[#allocation5 + $0xc60] sm:$0xff]
    %v547 = vld [vmem:[#allocation5 + $0xc68] sm:$0xff]
    %v548 = vld [vmem:[#allocation5 + $0xc70] sm:$0xff]
    %v549 = vld [vmem:[#allocation5 + $0xc78] sm:$0xff]
    %v550 = vld [vmem:[#allocation5 + $0xc80] sm:$0xff]
    %v551 = vld [vmem:[#allocation5 + $0xc88] sm:$0xff]
    %v552 = vld [vmem:[#allocation5 + $0xc90] sm:$0xff]
    %v553 = vld [vmem:[#allocation5 + $0xc98] sm:$0xff]
    %v554 = vld [vmem:[#allocation5 + $0xca0] sm:$0xff]
    %v555 = vld [vmem:[#allocation5 + $0xca8] sm:$0xff]
    %v556 = vld [vmem:[#allocation5 + $0xcb0] sm:$0xff]
    %v557 = vld [vmem:[#allocation5 + $0xcb8] sm:$0xff]
    %v558 = vld [vmem:[#allocation5 + $0xcc0] sm:$0xff]
    %v559 = vld [vmem:[#allocation5 + $0xcc8] sm:$0xff]
    %v560 = vld [vmem:[#allocation5 + $0xcd0] sm:$0xff]
    %v561 = vld [vmem:[#allocation5 + $0xcd8] sm:$0xff]
    %v562 = vld [vmem:[#allocation5 + $0xce0] sm:$0xff]
    %v563 = vld [vmem:[#allocation5 + $0xce8] sm:$0xff]
    %v564 = vld [vmem:[#allocation5 + $0xcf0] sm:$0xff]
    %v565 = vld [vmem:[#allocation5 + $0xcf8] sm:$0xff]
    %v566 = vld [vmem:[#allocation5 + $0xd00] sm:$0xff]
    %v567 = vld [vmem:[#allocation5 + $0xd08] sm:$0xff]
    %v568 = vld [vmem:[#allocation5 + $0xd10] sm:$0xff]
    %v569 = vld [vmem:[#allocation5 + $0xd18] sm:$0xff]
    %v570 = vld [vmem:[#allocation5 + $0xd20] sm:$0xff]
    %v571 = vld [vmem:[#allocation5 + $0xd28] sm:$0xff]
    %v572 = vld [vmem:[#allocation5 + $0xd30] sm:$0xff]
    %v573 = vld [vmem:[#allocation5 + $0xd38] sm:$0xff]
    %v574 = vld [vmem:[#allocation5 + $0xd40] sm:$0xff]
    %v575 = vld [vmem:[#allocation5 + $0xd48] sm:$0xff]
    %v576 = vld [vmem:[#allocation5 + $0xd50] sm:$0xff]
    %v577 = vld [vmem:[#allocation5 + $0xd58] sm:$0xff]
    %v578 = vld [vmem:[#allocation5 + $0xd60] sm:$0xff]
    %v579 = vld [vmem:[#allocation5 + $0xd68] sm:$0xff]
    %v580 = vld [vmem:[#allocation5 + $0xd70] sm:$0xff]
    %v581 = vld [vmem:[#allocation5 + $0xd78] sm:$0xff]
    %v582 = vld [vmem:[#allocation5 + $0xd80] sm:$0xff]
    %v583 = vld [vmem:[#allocation5 + $0xd88] sm:$0xff]
    %v584 = vld [vmem:[#allocation5 + $0xd90] sm:$0xff]
    %v585 = vld [vmem:[#allocation5 + $0xd98] sm:$0xff]
    %v586 = vld [vmem:[#allocation5 + $0xda0] sm:$0xff]
    %v587 = vld [vmem:[#allocation5 + $0xda8] sm:$0xff]
    %v588 = vld [vmem:[#allocation5 + $0xdb0] sm:$0xff]
    %v589 = vld [vmem:[#allocation5 + $0xdb8] sm:$0xff]
    %v590 = vld [vmem:[#allocation5 + $0xdc0] sm:$0xff]
    %v591 = vld [vmem:[#allocation5 + $0xdc8] sm:$0xff]
    %v592 = vld [vmem:[#allocation5 + $0xdd0] sm:$0xff]
    %v593 = vld [vmem:[#allocation5 + $0xdd8] sm:$0xff]
    %v594 = vld [vmem:[#allocation5 + $0xde0] sm:$0xff]
    %v595 = vld [vmem:[#allocation5 + $0xde8] sm:$0xff]
    %v596 = vld [vmem:[#allocation5 + $0xdf0] sm:$0xff]
    %v597 = vld [vmem:[#allocation5 + $0xdf8] sm:$0xff]
    %v598 = vld [vmem:[#allocation5 + $0xe00] sm:$0xff]
    %v599 = vld [vmem:[#allocation5 + $0xe08] sm:$0xff]
    %v600 = vld [vmem:[#allocation5 + $0xe10] sm:$0xff]
    %v601 = vld [vmem:[#allocation5 + $0xe18] sm:$0xff]
    %v602 = vld [vmem:[#allocation5 + $0xe20] sm:$0xff]
    %v603 = vld [vmem:[#allocation5 + $0xe28] sm:$0xff]
    %v604 = vld [vmem:[#allocation5 + $0xe30] sm:$0xff]
    %v605 = vld [vmem:[#allocation5 + $0xe38] sm:$0xff]
    %v606 = vld [vmem:[#allocation5 + $0xe40] sm:$0xff]
    %v607 = vld [vmem:[#allocation5 + $0xe48] sm:$0xff]
    %v608 = vld [vmem:[#allocation5 + $0xe50] sm:$0xff]
    %v609 = vld [vmem:[#allocation5 + $0xe58] sm:$0xff]
    %v610 = vld [vmem:[#allocation5 + $0xe60] sm:$0xff]
    %v611 = vld [vmem:[#allocation5 + $0xe68] sm:$0xff]
    %v612 = vld [vmem:[#allocation5 + $0xe70] sm:$0xff]
    %v613 = vld [vmem:[#allocation5 + $0xe78] sm:$0xff]
    %v614 = vld [vmem:[#allocation5 + $0xe80] sm:$0xff]
    %v615 = vld [vmem:[#allocation5 + $0xe88] sm:$0xff]
    %v616 = vld [vmem:[#allocation5 + $0xe90] sm:$0xff]
    %v617 = vld [vmem:[#allocation5 + $0xe98] sm:$0xff]
    %v618 = vld [vmem:[#allocation5 + $0xea0] sm:$0xff]
    %v619 = vld [vmem:[#allocation5 + $0xea8] sm:$0xff]
    %v620 = vld [vmem:[#allocation5 + $0xeb0] sm:$0xff]
    %v621 = vld [vmem:[#allocation5 + $0xeb8] sm:$0xff]
    %v622 = vld [vmem:[#allocation5 + $0xec0] sm:$0xff]
    %v623 = vld [vmem:[#allocation5 + $0xec8] sm:$0xff]
    %v624 = vld [vmem:[#allocation5 + $0xed0] sm:$0xff]
    %v625 = vld [vmem:[#allocation5 + $0xed8] sm:$0xff]
    %v626 = vld [vmem:[#allocation5 + $0xee0] sm:$0xff]
    %v627 = vld [vmem:[#allocation5 + $0xee8] sm:$0xff]
    %v628 = vld [vmem:[#allocation5 + $0xef0] sm:$0xff]
    %v629 = vld [vmem:[#allocation5 + $0xef8] sm:$0xff]
    %v630 = vld [vmem:[#allocation5 + $0xf00] sm:$0xff]
    %v631 = vld [vmem:[#allocation5 + $0xf08] sm:$0xff]
    %v632 = vld [vmem:[#allocation5 + $0xf10] sm:$0xff]
    %v633 = vld [vmem:[#allocation5 + $0xf18] sm:$0xff]
    %v634 = vld [vmem:[#allocation5 + $0xf20] sm:$0xff]
    %v635 = vld [vmem:[#allocation5 + $0xf28] sm:$0xff]
    %v636 = vld [vmem:[#allocation5 + $0xf30] sm:$0xff]
    %v637 = vld [vmem:[#allocation5 + $0xf38] sm:$0xff]
    %v638 = vld [vmem:[#allocation5 + $0xf40] sm:$0xff]
    %v639 = vld [vmem:[#allocation5 + $0xf48] sm:$0xff]
    %v640 = vld [vmem:[#allocation5 + $0xf50] sm:$0xff]
    %v641 = vld [vmem:[#allocation5 + $0xf58] sm:$0xff]
    %v642 = vld [vmem:[#allocation5 + $0xf60] sm:$0xff]
    %v643 = vld [vmem:[#allocation5 + $0xf68] sm:$0xff]
    %v644 = vld [vmem:[#allocation5 + $0xf70] sm:$0xff]
    %v645 = vld [vmem:[#allocation5 + $0xf78] sm:$0xff]
    %v646 = vld [vmem:[#allocation5 + $0xf80] sm:$0xff]
    %v647 = vld [vmem:[#allocation5 + $0xf88] sm:$0xff]
    %v648 = vld [vmem:[#allocation5 + $0xf90] sm:$0xff]
    %v649 = vld [vmem:[#allocation5 + $0xf98] sm:$0xff]
    %v650 = vld [vmem:[#allocation5 + $0xfa0] sm:$0xff]
    %v651 = vld [vmem:[#allocation5 + $0xfa8] sm:$0xff]
    %v652 = vld [vmem:[#allocation5 + $0xfb0] sm:$0xff]
    %v653 = vld [vmem:[#allocation5 + $0xfb8] sm:$0xff]
    %v654 = vld [vmem:[#allocation5 + $0xfc0] sm:$0xff]
    %v655 = vld [vmem:[#allocation5 + $0xfc8] sm:$0xff]
    %v656 = vld [vmem:[#allocation5 + $0xfd0] sm:$0xff]
    %v657 = vld [vmem:[#allocation5 + $0xfd8] sm:$0xff]
    %v658 = vld [vmem:[#allocation5 + $0xfe0] sm:$0xff]
    %v659 = vld [vmem:[#allocation5 + $0xfe8] sm:$0xff]
    %v660 = vld [vmem:[#allocation5 + $0xff0] sm:$0xff]
    %v661 = vld [vmem:[#allocation5 + $0xff8] sm:$0xff]
    %v662 = vld [vmem:[#allocation7] sm:$0x3]
    %v664 = vlaneseq
    %v665 = vshrl.u32 %v664, 7
    %v666 = vsub.s32 0, %v665
    %v667 = vrot.slane %v662, %v666
    %v668 = vlaneseq
    %v669 = vshrl.u32 %v668, 7
    %v670 = vsub.s32 1, %v669
    %v671 = vrot.slane %v662, %v670
    %v678 = vcombine.high %v146, %v146
    %v680 = vunpack.c.l.s4 1966171168
    %v681 = vunpack.c.0.s8 %v680
    %v682 = vlaneseq
    %v683 = vshrl.u32 %v682, 7
    %v684 = vsub.s32 %v681, %v683
    %v685 = vrot.slane %v146, %v684
    %v687 = vunpack.c.l.s4 1966171168
    %v688 = vunpack.c.0.s8 %v687
    %v689 = vlaneseq
    %v690 = vshrl.u32 %v689, 7
    %v691 = vsub.s32 %v688, %v690
    %v692 = vrot.slane %v678, %v691
    %v693 = vcombine.high %v685, %v685
    %v694 = vcombine.high %v692, %v692
    %v696 = vunpack.c.l.s4 1966171168
    %v697 = vunpack.c.0.s8 %v696
    %v698 = vlaneseq
    %v699 = vshrl.u32 %v698, 7
    %v700 = vsub.s32 %v697, %v699
    %v701 = vrot.slane %v685, %v700
    %v703 = vunpack.c.l.s4 1966171168
    %v704 = vunpack.c.0.s8 %v703
    %v705 = vlaneseq
    %v706 = vshrl.u32 %v705, 7
    %v707 = vsub.s32 %v704, %v706
    %v708 = vrot.slane %v692, %v707
    %v710 = vunpack.c.l.s4 1966171168
    %v711 = vunpack.c.0.s8 %v710
    %v712 = vlaneseq
    %v713 = vshrl.u32 %v712, 7
    %v714 = vsub.s32 %v711, %v713
    %v715 = vrot.slane %v693, %v714
    %v717 = vunpack.c.l.s4 1966171168
    %v718 = vunpack.c.0.s8 %v717
    %v719 = vlaneseq
    %v720 = vshrl.u32 %v719, 7
    %v721 = vsub.s32 %v718, %v720
    %v722 = vrot.slane %v694, %v721
    %v723 = vcombine.high %v701, %v701
    %v724 = vcombine.high %v708, %v708
    %v725 = vcombine.high %v715, %v715
    %v726 = vcombine.high %v722, %v722
    %v727 = vcombine.high %v147, %v147
    %v729 = vunpack.c.l.s4 1966171168
    %v730 = vunpack.c.0.s8 %v729
    %v731 = vlaneseq
    %v732 = vshrl.u32 %v731, 7
    %v733 = vsub.s32 %v730, %v732
    %v734 = vrot.slane %v147, %v733
    %v736 = vunpack.c.l.s4 1966171168
    %v737 = vunpack.c.0.s8 %v736
    %v738 = vlaneseq
    %v739 = vshrl.u32 %v738, 7
    %v740 = vsub.s32 %v737, %v739
    %v741 = vrot.slane %v727, %v740
    %v742 = vcombine.high %v734, %v734
    %v743 = vcombine.high %v741, %v741
    %v745 = vunpack.c.l.s4 1966171168
    %v746 = vunpack.c.0.s8 %v745
    %v747 = vlaneseq
    %v748 = vshrl.u32 %v747, 7
    %v749 = vsub.s32 %v746, %v748
    %v750 = vrot.slane %v734, %v749
    %v752 = vunpack.c.l.s4 1966171168
    %v753 = vunpack.c.0.s8 %v752
    %v754 = vlaneseq
    %v755 = vshrl.u32 %v754, 7
    %v756 = vsub.s32 %v753, %v755
    %v757 = vrot.slane %v741, %v756
    %v759 = vunpack.c.l.s4 1966171168
    %v760 = vunpack.c.0.s8 %v759
    %v761 = vlaneseq
    %v762 = vshrl.u32 %v761, 7
    %v763 = vsub.s32 %v760, %v762
    %v764 = vrot.slane %v742, %v763
    %v766 = vunpack.c.l.s4 1966171168
    %v767 = vunpack.c.0.s8 %v766
    %v768 = vlaneseq
    %v769 = vshrl.u32 %v768, 7
    %v770 = vsub.s32 %v767, %v769
    %v771 = vrot.slane %v743, %v770
    %v772 = vcombine.high %v750, %v750
    %v773 = vcombine.high %v757, %v757
    %v774 = vcombine.high %v764, %v764
    %v775 = vcombine.high %v771, %v771
    %v776 = vcombine.high %v148, %v148
    %v778 = vunpack.c.l.s4 1966171168
    %v779 = vunpack.c.0.s8 %v778
    %v780 = vlaneseq
    %v781 = vshrl.u32 %v780, 7
    %v782 = vsub.s32 %v779, %v781
    %v783 = vrot.slane %v148, %v782
    %v785 = vunpack.c.l.s4 1966171168
    %v786 = vunpack.c.0.s8 %v785
    %v787 = vlaneseq
    %v788 = vshrl.u32 %v787, 7
    %v789 = vsub.s32 %v786, %v788
    %v790 = vrot.slane %v776, %v789
    %v791 = vcombine.high %v783, %v783
    %v792 = vcombine.high %v790, %v790
    %v794 = vunpack.c.l.s4 1966171168
    %v795 = vunpack.c.0.s8 %v794
    %v796 = vlaneseq
    %v797 = vshrl.u32 %v796, 7
    %v798 = vsub.s32 %v795, %v797
    %v799 = vrot.slane %v783, %v798
    %v801 = vunpack.c.l.s4 1966171168
    %v802 = vunpack.c.0.s8 %v801
    %v803 = vlaneseq
    %v804 = vshrl.u32 %v803, 7
    %v805 = vsub.s32 %v802, %v804
    %v806 = vrot.slane %v790, %v805
    %v808 = vunpack.c.l.s4 1966171168
    %v809 = vunpack.c.0.s8 %v808
    %v810 = vlaneseq
    %v811 = vshrl.u32 %v810, 7
    %v812 = vsub.s32 %v809, %v811
    %v813 = vrot.slane %v791, %v812
    %v815 = vunpack.c.l.s4 1966171168
    %v816 = vunpack.c.0.s8 %v815
    %v817 = vlaneseq
    %v818 = vshrl.u32 %v817, 7
    %v819 = vsub.s32 %v816, %v818
    %v820 = vrot.slane %v792, %v819
    %v821 = vcombine.high %v799, %v799
    %v822 = vcombine.high %v806, %v806
    %v823 = vcombine.high %v813, %v813
    %v824 = vcombine.high %v820, %v820
    %v825 = vcombine.high %v149, %v149
    %v827 = vunpack.c.l.s4 1966171168
    %v828 = vunpack.c.0.s8 %v827
    %v829 = vlaneseq
    %v830 = vshrl.u32 %v829, 7
    %v831 = vsub.s32 %v828, %v830
    %v832 = vrot.slane %v149, %v831
    %v834 = vunpack.c.l.s4 1966171168
    %v835 = vunpack.c.0.s8 %v834
    %v836 = vlaneseq
    %v837 = vshrl.u32 %v836, 7
    %v838 = vsub.s32 %v835, %v837
    %v839 = vrot.slane %v825, %v838
    %v840 = vcombine.high %v832, %v832
    %v841 = vcombine.high %v839, %v839
    %v843 = vunpack.c.l.s4 1966171168
    %v844 = vunpack.c.0.s8 %v843
    %v845 = vlaneseq
    %v846 = vshrl.u32 %v845, 7
    %v847 = vsub.s32 %v844, %v846
    %v848 = vrot.slane %v832, %v847
    %v850 = vunpack.c.l.s4 1966171168
    %v851 = vunpack.c.0.s8 %v850
    %v852 = vlaneseq
    %v853 = vshrl.u32 %v852, 7
    %v854 = vsub.s32 %v851, %v853
    %v855 = vrot.slane %v839, %v854
    %v857 = vunpack.c.l.s4 1966171168
    %v858 = vunpack.c.0.s8 %v857
    %v859 = vlaneseq
    %v860 = vshrl.u32 %v859, 7
    %v861 = vsub.s32 %v858, %v860
    %v862 = vrot.slane %v840, %v861
    %v864 = vunpack.c.l.s4 1966171168
    %v865 = vunpack.c.0.s8 %v864
    %v866 = vlaneseq
    %v867 = vshrl.u32 %v866, 7
    %v868 = vsub.s32 %v865, %v867
    %v869 = vrot.slane %v841, %v868
    %v870 = vcombine.high %v848, %v848
    %v871 = vcombine.high %v855, %v855
    %v872 = vcombine.high %v862, %v862
    %v873 = vcombine.high %v869, %v869
    %v1418 = vunpack.c.l.b16 %v150
    %v1419 = vunpack.c.h.b16 %v150
    %v1420 = vunpack.c.l.b16 %v151
    %v1421 = vunpack.c.h.b16 %v151
    %v1422 = vunpack.c.l.b16 %v152
    %v1423 = vunpack.c.h.b16 %v152
    %v1424 = vunpack.c.l.b16 %v153
    %v1425 = vunpack.c.h.b16 %v153
    %v1426 = vunpack.c.l.b16 %v154
    %v1427 = vunpack.c.h.b16 %v154
    %v1428 = vunpack.c.l.b16 %v155
    %v1429 = vunpack.c.h.b16 %v155
    %v1430 = vunpack.c.l.b16 %v156
    %v1431 = vunpack.c.h.b16 %v156
    %v1432 = vunpack.c.l.b16 %v157
    %v1433 = vunpack.c.h.b16 %v157
    %v1434 = vunpack.c.l.b16 %v158
    %v1435 = vunpack.c.h.b16 %v158
    %v1436 = vunpack.c.l.b16 %v159
    %v1437 = vunpack.c.h.b16 %v159
    %v1438 = vunpack.c.l.b16 %v160
    %v1439 = vunpack.c.h.b16 %v160
    %v1440 = vunpack.c.l.b16 %v161
    %v1441 = vunpack.c.h.b16 %v161
    %v1442 = vunpack.c.l.b16 %v162
    %v1443 = vunpack.c.h.b16 %v162
    %v1444 = vunpack.c.l.b16 %v163
    %v1445 = vunpack.c.h.b16 %v163
    %v1446 = vunpack.c.l.b16 %v164
    %v1447 = vunpack.c.h.b16 %v164
    %v1448 = vunpack.c.l.b16 %v165
    %v1449 = vunpack.c.h.b16 %v165
    %v1450 = vunpack.c.l.b16 %v166
    %v1451 = vunpack.c.h.b16 %v166
    %v1452 = vunpack.c.l.b16 %v167
    %v1453 = vunpack.c.h.b16 %v167
    %v1454 = vunpack.c.l.b16 %v168
    %v1455 = vunpack.c.h.b16 %v168
    %v1456 = vunpack.c.l.b16 %v169
    %v1457 = vunpack.c.h.b16 %v169
    %v1458 = vunpack.c.l.b16 %v170
    %v1459 = vunpack.c.h.b16 %v170
    %v1460 = vunpack.c.l.b16 %v171
    %v1461 = vunpack.c.h.b16 %v171
    %v1462 = vunpack.c.l.b16 %v172
    %v1463 = vunpack.c.h.b16 %v172
    %v1464 = vunpack.c.l.b16 %v173
    %v1465 = vunpack.c.h.b16 %v173
    %v1466 = vunpack.c.l.b16 %v174
    %v1467 = vunpack.c.h.b16 %v174
    %v1468 = vunpack.c.l.b16 %v175
    %v1469 = vunpack.c.h.b16 %v175
    %v1470 = vunpack.c.l.b16 %v176
    %v1471 = vunpack.c.h.b16 %v176
    %v1472 = vunpack.c.l.b16 %v177
    %v1473 = vunpack.c.h.b16 %v177
    %v1474 = vunpack.c.l.b16 %v178
    %v1475 = vunpack.c.h.b16 %v178
    %v1476 = vunpack.c.l.b16 %v179
    %v1477 = vunpack.c.h.b16 %v179
    %v1478 = vunpack.c.l.b16 %v180
    %v1479 = vunpack.c.h.b16 %v180
    %v1480 = vunpack.c.l.b16 %v181
    %v1481 = vunpack.c.h.b16 %v181
    %v1482 = vunpack.c.l.b16 %v182
    %v1483 = vunpack.c.h.b16 %v182
    %v1484 = vunpack.c.l.b16 %v183
    %v1485 = vunpack.c.h.b16 %v183
    %v1486 = vunpack.c.l.b16 %v184
    %v1487 = vunpack.c.h.b16 %v184
    %v1488 = vunpack.c.l.b16 %v185
    %v1489 = vunpack.c.h.b16 %v185
    %v1490 = vunpack.c.l.b16 %v186
    %v1491 = vunpack.c.h.b16 %v186
    %v1492 = vunpack.c.l.b16 %v187
    %v1493 = vunpack.c.h.b16 %v187
    %v1494 = vunpack.c.l.b16 %v188
    %v1495 = vunpack.c.h.b16 %v188
    %v1496 = vunpack.c.l.b16 %v189
    %v1497 = vunpack.c.h.b16 %v189
    %v1498 = vunpack.c.l.b16 %v190
    %v1499 = vunpack.c.h.b16 %v190
    %v1500 = vunpack.c.l.b16 %v191
    %v1501 = vunpack.c.h.b16 %v191
    %v1502 = vunpack.c.l.b16 %v192
    %v1503 = vunpack.c.h.b16 %v192
    %v1504 = vunpack.c.l.b16 %v193
    %v1505 = vunpack.c.h.b16 %v193
    %v1506 = vunpack.c.l.b16 %v194
    %v1507 = vunpack.c.h.b16 %v194
    %v1508 = vunpack.c.l.b16 %v195
    %v1509 = vunpack.c.h.b16 %v195
    %v1510 = vunpack.c.l.b16 %v196
    %v1511 = vunpack.c.h.b16 %v196
    %v1512 = vunpack.c.l.b16 %v197
    %v1513 = vunpack.c.h.b16 %v197
    %v1514 = vunpack.c.l.b16 %v198
    %v1515 = vunpack.c.h.b16 %v198
    %v1516 = vunpack.c.l.b16 %v199
    %v1517 = vunpack.c.h.b16 %v199
    %v1518 = vunpack.c.l.b16 %v200
    %v1519 = vunpack.c.h.b16 %v200
    %v1520 = vunpack.c.l.b16 %v201
    %v1521 = vunpack.c.h.b16 %v201
    %v1522 = vunpack.c.l.b16 %v202
    %v1523 = vunpack.c.h.b16 %v202
    %v1524 = vunpack.c.l.b16 %v203
    %v1525 = vunpack.c.h.b16 %v203
    %v1526 = vunpack.c.l.b16 %v204
    %v1527 = vunpack.c.h.b16 %v204
    %v1528 = vunpack.c.l.b16 %v205
    %v1529 = vunpack.c.h.b16 %v205
    %v1530 = vunpack.c.l.b16 %v206
    %v1531 = vunpack.c.h.b16 %v206
    %v1532 = vunpack.c.l.b16 %v207
    %v1533 = vunpack.c.h.b16 %v207
    %v1534 = vunpack.c.l.b16 %v208
    %v1535 = vunpack.c.h.b16 %v208
    %v1536 = vunpack.c.l.b16 %v209
    %v1537 = vunpack.c.h.b16 %v209
    %v1538 = vunpack.c.l.b16 %v210
    %v1539 = vunpack.c.h.b16 %v210
    %v1540 = vunpack.c.l.b16 %v211
    %v1541 = vunpack.c.h.b16 %v211
    %v1542 = vunpack.c.l.b16 %v212
    %v1543 = vunpack.c.h.b16 %v212
    %v1544 = vunpack.c.l.b16 %v213
    %v1545 = vunpack.c.h.b16 %v213
    %v1546 = vunpack.c.l.b16 %v214
    %v1547 = vunpack.c.h.b16 %v214
    %v1548 = vunpack.c.l.b16 %v215
    %v1549 = vunpack.c.h.b16 %v215
    %v1550 = vunpack.c.l.b16 %v216
    %v1551 = vunpack.c.h.b16 %v216
    %v1552 = vunpack.c.l.b16 %v217
    %v1553 = vunpack.c.h.b16 %v217
    %v1554 = vunpack.c.l.b16 %v218
    %v1555 = vunpack.c.h.b16 %v218
    %v1556 = vunpack.c.l.b16 %v219
    %v1557 = vunpack.c.h.b16 %v219
    %v1558 = vunpack.c.l.b16 %v220
    %v1559 = vunpack.c.h.b16 %v220
    %v1560 = vunpack.c.l.b16 %v221
    %v1561 = vunpack.c.h.b16 %v221
    %v1562 = vunpack.c.l.b16 %v222
    %v1563 = vunpack.c.h.b16 %v222
    %v1564 = vunpack.c.l.b16 %v223
    %v1565 = vunpack.c.h.b16 %v223
    %v1566 = vunpack.c.l.b16 %v224
    %v1567 = vunpack.c.h.b16 %v224
    %v1568 = vunpack.c.l.b16 %v225
    %v1569 = vunpack.c.h.b16 %v225
    %v1570 = vunpack.c.l.b16 %v226
    %v1571 = vunpack.c.h.b16 %v226
    %v1572 = vunpack.c.l.b16 %v227
    %v1573 = vunpack.c.h.b16 %v227
    %v1574 = vunpack.c.l.b16 %v228
    %v1575 = vunpack.c.h.b16 %v228
    %v1576 = vunpack.c.l.b16 %v229
    %v1577 = vunpack.c.h.b16 %v229
    %v1578 = vunpack.c.l.b16 %v230
    %v1579 = vunpack.c.h.b16 %v230
    %v1580 = vunpack.c.l.b16 %v231
    %v1581 = vunpack.c.h.b16 %v231
    %v1582 = vunpack.c.l.b16 %v232
    %v1583 = vunpack.c.h.b16 %v232
    %v1584 = vunpack.c.l.b16 %v233
    %v1585 = vunpack.c.h.b16 %v233
    %v1586 = vunpack.c.l.b16 %v234
    %v1587 = vunpack.c.h.b16 %v234
    %v1588 = vunpack.c.l.b16 %v235
    %v1589 = vunpack.c.h.b16 %v235
    %v1590 = vunpack.c.l.b16 %v236
    %v1591 = vunpack.c.h.b16 %v236
    %v1592 = vunpack.c.l.b16 %v237
    %v1593 = vunpack.c.h.b16 %v237
    %v1594 = vunpack.c.l.b16 %v238
    %v1595 = vunpack.c.h.b16 %v238
    %v1596 = vunpack.c.l.b16 %v239
    %v1597 = vunpack.c.h.b16 %v239
    %v1598 = vunpack.c.l.b16 %v240
    %v1599 = vunpack.c.h.b16 %v240
    %v1600 = vunpack.c.l.b16 %v241
    %v1601 = vunpack.c.h.b16 %v241
    %v1602 = vunpack.c.l.b16 %v242
    %v1603 = vunpack.c.h.b16 %v242
    %v1604 = vunpack.c.l.b16 %v243
    %v1605 = vunpack.c.h.b16 %v243
    %v1606 = vunpack.c.l.b16 %v244
    %v1607 = vunpack.c.h.b16 %v244
    %v1608 = vunpack.c.l.b16 %v245
    %v1609 = vunpack.c.h.b16 %v245
    %v1610 = vunpack.c.l.b16 %v246
    %v1611 = vunpack.c.h.b16 %v246
    %v1612 = vunpack.c.l.b16 %v247
    %v1613 = vunpack.c.h.b16 %v247
    %v1614 = vunpack.c.l.b16 %v248
    %v1615 = vunpack.c.h.b16 %v248
    %v1616 = vunpack.c.l.b16 %v249
    %v1617 = vunpack.c.h.b16 %v249
    %v1618 = vunpack.c.l.b16 %v250
    %v1619 = vunpack.c.h.b16 %v250
    %v1620 = vunpack.c.l.b16 %v251
    %v1621 = vunpack.c.h.b16 %v251
    %v1622 = vunpack.c.l.b16 %v252
    %v1623 = vunpack.c.h.b16 %v252
    %v1624 = vunpack.c.l.b16 %v253
    %v1625 = vunpack.c.h.b16 %v253
    %v1626 = vunpack.c.l.b16 %v254
    %v1627 = vunpack.c.h.b16 %v254
    %v1628 = vunpack.c.l.b16 %v255
    %v1629 = vunpack.c.h.b16 %v255
    %v1630 = vunpack.c.l.b16 %v256
    %v1631 = vunpack.c.h.b16 %v256
    %v1632 = vunpack.c.l.b16 %v257
    %v1633 = vunpack.c.h.b16 %v257
    %v1634 = vunpack.c.l.b16 %v258
    %v1635 = vunpack.c.h.b16 %v258
    %v1636 = vunpack.c.l.b16 %v259
    %v1637 = vunpack.c.h.b16 %v259
    %v1638 = vunpack.c.l.b16 %v260
    %v1639 = vunpack.c.h.b16 %v260
    %v1640 = vunpack.c.l.b16 %v261
    %v1641 = vunpack.c.h.b16 %v261
    %v1642 = vunpack.c.l.b16 %v262
    %v1643 = vunpack.c.h.b16 %v262
    %v1644 = vunpack.c.l.b16 %v263
    %v1645 = vunpack.c.h.b16 %v263
    %v1646 = vunpack.c.l.b16 %v264
    %v1647 = vunpack.c.h.b16 %v264
    %v1648 = vunpack.c.l.b16 %v265
    %v1649 = vunpack.c.h.b16 %v265
    %v1650 = vunpack.c.l.b16 %v266
    %v1651 = vunpack.c.h.b16 %v266
    %v1652 = vunpack.c.l.b16 %v267
    %v1653 = vunpack.c.h.b16 %v267
    %v1654 = vunpack.c.l.b16 %v268
    %v1655 = vunpack.c.h.b16 %v268
    %v1656 = vunpack.c.l.b16 %v269
    %v1657 = vunpack.c.h.b16 %v269
    %v1658 = vunpack.c.l.b16 %v270
    %v1659 = vunpack.c.h.b16 %v270
    %v1660 = vunpack.c.l.b16 %v271
    %v1661 = vunpack.c.h.b16 %v271
    %v1662 = vunpack.c.l.b16 %v272
    %v1663 = vunpack.c.h.b16 %v272
    %v1664 = vunpack.c.l.b16 %v273
    %v1665 = vunpack.c.h.b16 %v273
    %v1666 = vunpack.c.l.b16 %v274
    %v1667 = vunpack.c.h.b16 %v274
    %v1668 = vunpack.c.l.b16 %v275
    %v1669 = vunpack.c.h.b16 %v275
    %v1670 = vunpack.c.l.b16 %v276
    %v1671 = vunpack.c.h.b16 %v276
    %v1672 = vunpack.c.l.b16 %v277
    %v1673 = vunpack.c.h.b16 %v277
    %v1674 = vunpack.c.l.b16 %v278
    %v1675 = vunpack.c.h.b16 %v278
    %v1676 = vunpack.c.l.b16 %v279
    %v1677 = vunpack.c.h.b16 %v279
    %v1678 = vunpack.c.l.b16 %v280
    %v1679 = vunpack.c.h.b16 %v280
    %v1680 = vunpack.c.l.b16 %v281
    %v1681 = vunpack.c.h.b16 %v281
    %v1682 = vunpack.c.l.b16 %v282
    %v1683 = vunpack.c.h.b16 %v282
    %v1684 = vunpack.c.l.b16 %v283
    %v1685 = vunpack.c.h.b16 %v283
    %v1686 = vunpack.c.l.b16 %v284
    %v1687 = vunpack.c.h.b16 %v284
    %v1688 = vunpack.c.l.b16 %v285
    %v1689 = vunpack.c.h.b16 %v285
    %v1690 = vunpack.c.l.b16 %v286
    %v1691 = vunpack.c.h.b16 %v286
    %v1692 = vunpack.c.l.b16 %v287
    %v1693 = vunpack.c.h.b16 %v287
    %v1694 = vunpack.c.l.b16 %v288
    %v1695 = vunpack.c.h.b16 %v288
    %v1696 = vunpack.c.l.b16 %v289
    %v1697 = vunpack.c.h.b16 %v289
    %v1698 = vunpack.c.l.b16 %v290
    %v1699 = vunpack.c.h.b16 %v290
    %v1700 = vunpack.c.l.b16 %v291
    %v1701 = vunpack.c.h.b16 %v291
    %v1702 = vunpack.c.l.b16 %v292
    %v1703 = vunpack.c.h.b16 %v292
    %v1704 = vunpack.c.l.b16 %v293
    %v1705 = vunpack.c.h.b16 %v293
    %v1706 = vunpack.c.l.b16 %v294
    %v1707 = vunpack.c.h.b16 %v294
    %v1708 = vunpack.c.l.b16 %v295
    %v1709 = vunpack.c.h.b16 %v295
    %v1710 = vunpack.c.l.b16 %v296
    %v1711 = vunpack.c.h.b16 %v296
    %v1712 = vunpack.c.l.b16 %v297
    %v1713 = vunpack.c.h.b16 %v297
    %v1714 = vunpack.c.l.b16 %v298
    %v1715 = vunpack.c.h.b16 %v298
    %v1716 = vunpack.c.l.b16 %v299
    %v1717 = vunpack.c.h.b16 %v299
    %v1718 = vunpack.c.l.b16 %v300
    %v1719 = vunpack.c.h.b16 %v300
    %v1720 = vunpack.c.l.b16 %v301
    %v1721 = vunpack.c.h.b16 %v301
    %v1722 = vunpack.c.l.b16 %v302
    %v1723 = vunpack.c.h.b16 %v302
    %v1724 = vunpack.c.l.b16 %v303
    %v1725 = vunpack.c.h.b16 %v303
    %v1726 = vunpack.c.l.b16 %v304
    %v1727 = vunpack.c.h.b16 %v304
    %v1728 = vunpack.c.l.b16 %v305
    %v1729 = vunpack.c.h.b16 %v305
    %v1730 = vunpack.c.l.b16 %v306
    %v1731 = vunpack.c.h.b16 %v306
    %v1732 = vunpack.c.l.b16 %v307
    %v1733 = vunpack.c.h.b16 %v307
    %v1734 = vunpack.c.l.b16 %v308
    %v1735 = vunpack.c.h.b16 %v308
    %v1736 = vunpack.c.l.b16 %v309
    %v1737 = vunpack.c.h.b16 %v309
    %v1738 = vunpack.c.l.b16 %v310
    %v1739 = vunpack.c.h.b16 %v310
    %v1740 = vunpack.c.l.b16 %v311
    %v1741 = vunpack.c.h.b16 %v311
    %v1742 = vunpack.c.l.b16 %v312
    %v1743 = vunpack.c.h.b16 %v312
    %v1744 = vunpack.c.l.b16 %v313
    %v1745 = vunpack.c.h.b16 %v313
    %v1746 = vunpack.c.l.b16 %v314
    %v1747 = vunpack.c.h.b16 %v314
    %v1748 = vunpack.c.l.b16 %v315
    %v1749 = vunpack.c.h.b16 %v315
    %v1750 = vunpack.c.l.b16 %v316
    %v1751 = vunpack.c.h.b16 %v316
    %v1752 = vunpack.c.l.b16 %v317
    %v1753 = vunpack.c.h.b16 %v317
    %v1754 = vunpack.c.l.b16 %v318
    %v1755 = vunpack.c.h.b16 %v318
    %v1756 = vunpack.c.l.b16 %v319
    %v1757 = vunpack.c.h.b16 %v319
    %v1758 = vunpack.c.l.b16 %v320
    %v1759 = vunpack.c.h.b16 %v320
    %v1760 = vunpack.c.l.b16 %v321
    %v1761 = vunpack.c.h.b16 %v321
    %v1762 = vunpack.c.l.b16 %v322
    %v1763 = vunpack.c.h.b16 %v322
    %v1764 = vunpack.c.l.b16 %v323
    %v1765 = vunpack.c.h.b16 %v323
    %v1766 = vunpack.c.l.b16 %v324
    %v1767 = vunpack.c.h.b16 %v324
    %v1768 = vunpack.c.l.b16 %v325
    %v1769 = vunpack.c.h.b16 %v325
    %v1770 = vunpack.c.l.b16 %v326
    %v1771 = vunpack.c.h.b16 %v326
    %v1772 = vunpack.c.l.b16 %v327
    %v1773 = vunpack.c.h.b16 %v327
    %v1774 = vunpack.c.l.b16 %v328
    %v1775 = vunpack.c.h.b16 %v328
    %v1776 = vunpack.c.l.b16 %v329
    %v1777 = vunpack.c.h.b16 %v329
    %v1778 = vunpack.c.l.b16 %v330
    %v1779 = vunpack.c.h.b16 %v330
    %v1780 = vunpack.c.l.b16 %v331
    %v1781 = vunpack.c.h.b16 %v331
    %v1782 = vunpack.c.l.b16 %v332
    %v1783 = vunpack.c.h.b16 %v332
    %v1784 = vunpack.c.l.b16 %v333
    %v1785 = vunpack.c.h.b16 %v333
    %v1786 = vunpack.c.l.b16 %v334
    %v1787 = vunpack.c.h.b16 %v334
    %v1788 = vunpack.c.l.b16 %v335
    %v1789 = vunpack.c.h.b16 %v335
    %v1790 = vunpack.c.l.b16 %v336
    %v1791 = vunpack.c.h.b16 %v336
    %v1792 = vunpack.c.l.b16 %v337
    %v1793 = vunpack.c.h.b16 %v337
    %v1794 = vunpack.c.l.b16 %v338
    %v1795 = vunpack.c.h.b16 %v338
    %v1796 = vunpack.c.l.b16 %v339
    %v1797 = vunpack.c.h.b16 %v339
    %v1798 = vunpack.c.l.b16 %v340
    %v1799 = vunpack.c.h.b16 %v340
    %v1800 = vunpack.c.l.b16 %v341
    %v1801 = vunpack.c.h.b16 %v341
    %v1802 = vunpack.c.l.b16 %v342
    %v1803 = vunpack.c.h.b16 %v342
    %v1804 = vunpack.c.l.b16 %v343
    %v1805 = vunpack.c.h.b16 %v343
    %v1806 = vunpack.c.l.b16 %v344
    %v1807 = vunpack.c.h.b16 %v344
    %v1808 = vunpack.c.l.b16 %v345
    %v1809 = vunpack.c.h.b16 %v345
    %v1810 = vunpack.c.l.b16 %v346
    %v1811 = vunpack.c.h.b16 %v346
    %v1812 = vunpack.c.l.b16 %v347
    %v1813 = vunpack.c.h.b16 %v347
    %v1814 = vunpack.c.l.b16 %v348
    %v1815 = vunpack.c.h.b16 %v348
    %v1816 = vunpack.c.l.b16 %v349
    %v1817 = vunpack.c.h.b16 %v349
    %v1818 = vunpack.c.l.b16 %v350
    %v1819 = vunpack.c.h.b16 %v350
    %v1820 = vunpack.c.l.b16 %v351
    %v1821 = vunpack.c.h.b16 %v351
    %v1822 = vunpack.c.l.b16 %v352
    %v1823 = vunpack.c.h.b16 %v352
    %v1824 = vunpack.c.l.b16 %v353
    %v1825 = vunpack.c.h.b16 %v353
    %v1826 = vunpack.c.l.b16 %v354
    %v1827 = vunpack.c.h.b16 %v354
    %v1828 = vunpack.c.l.b16 %v355
    %v1829 = vunpack.c.h.b16 %v355
    %v1830 = vunpack.c.l.b16 %v356
    %v1831 = vunpack.c.h.b16 %v356
    %v1832 = vunpack.c.l.b16 %v357
    %v1833 = vunpack.c.h.b16 %v357
    %v1834 = vunpack.c.l.b16 %v358
    %v1835 = vunpack.c.h.b16 %v358
    %v1836 = vunpack.c.l.b16 %v359
    %v1837 = vunpack.c.h.b16 %v359
    %v1838 = vunpack.c.l.b16 %v360
    %v1839 = vunpack.c.h.b16 %v360
    %v1840 = vunpack.c.l.b16 %v361
    %v1841 = vunpack.c.h.b16 %v361
    %v1842 = vunpack.c.l.b16 %v362
    %v1843 = vunpack.c.h.b16 %v362
    %v1844 = vunpack.c.l.b16 %v363
    %v1845 = vunpack.c.h.b16 %v363
    %v1846 = vunpack.c.l.b16 %v364
    %v1847 = vunpack.c.h.b16 %v364
    %v1848 = vunpack.c.l.b16 %v365
    %v1849 = vunpack.c.h.b16 %v365
    %v1850 = vunpack.c.l.b16 %v366
    %v1851 = vunpack.c.h.b16 %v366
    %v1852 = vunpack.c.l.b16 %v367
    %v1853 = vunpack.c.h.b16 %v367
    %v1854 = vunpack.c.l.b16 %v368
    %v1855 = vunpack.c.h.b16 %v368
    %v1856 = vunpack.c.l.b16 %v369
    %v1857 = vunpack.c.h.b16 %v369
    %v1858 = vunpack.c.l.b16 %v370
    %v1859 = vunpack.c.h.b16 %v370
    %v1860 = vunpack.c.l.b16 %v371
    %v1861 = vunpack.c.h.b16 %v371
    %v1862 = vunpack.c.l.b16 %v372
    %v1863 = vunpack.c.h.b16 %v372
    %v1864 = vunpack.c.l.b16 %v373
    %v1865 = vunpack.c.h.b16 %v373
    %v1866 = vunpack.c.l.b16 %v374
    %v1867 = vunpack.c.h.b16 %v374
    %v1868 = vunpack.c.l.b16 %v375
    %v1869 = vunpack.c.h.b16 %v375
    %v1870 = vunpack.c.l.b16 %v376
    %v1871 = vunpack.c.h.b16 %v376
    %v1872 = vunpack.c.l.b16 %v377
    %v1873 = vunpack.c.h.b16 %v377
    %v1874 = vunpack.c.l.b16 %v378
    %v1875 = vunpack.c.h.b16 %v378
    %v1876 = vunpack.c.l.b16 %v379
    %v1877 = vunpack.c.h.b16 %v379
    %v1878 = vunpack.c.l.b16 %v380
    %v1879 = vunpack.c.h.b16 %v380
    %v1880 = vunpack.c.l.b16 %v381
    %v1881 = vunpack.c.h.b16 %v381
    %v1882 = vunpack.c.l.b16 %v382
    %v1883 = vunpack.c.h.b16 %v382
    %v1884 = vunpack.c.l.b16 %v383
    %v1885 = vunpack.c.h.b16 %v383
    %v1886 = vunpack.c.l.b16 %v384
    %v1887 = vunpack.c.h.b16 %v384
    %v1888 = vunpack.c.l.b16 %v385
    %v1889 = vunpack.c.h.b16 %v385
    %v1890 = vunpack.c.l.b16 %v386
    %v1891 = vunpack.c.h.b16 %v386
    %v1892 = vunpack.c.l.b16 %v387
    %v1893 = vunpack.c.h.b16 %v387
    %v1894 = vunpack.c.l.b16 %v388
    %v1895 = vunpack.c.h.b16 %v388
    %v1896 = vunpack.c.l.b16 %v389
    %v1897 = vunpack.c.h.b16 %v389
    %v1898 = vunpack.c.l.b16 %v390
    %v1899 = vunpack.c.h.b16 %v390
    %v1900 = vunpack.c.l.b16 %v391
    %v1901 = vunpack.c.h.b16 %v391
    %v1902 = vunpack.c.l.b16 %v392
    %v1903 = vunpack.c.h.b16 %v392
    %v1904 = vunpack.c.l.b16 %v393
    %v1905 = vunpack.c.h.b16 %v393
    %v1906 = vunpack.c.l.b16 %v394
    %v1907 = vunpack.c.h.b16 %v394
    %v1908 = vunpack.c.l.b16 %v395
    %v1909 = vunpack.c.h.b16 %v395
    %v1910 = vunpack.c.l.b16 %v396
    %v1911 = vunpack.c.h.b16 %v396
    %v1912 = vunpack.c.l.b16 %v397
    %v1913 = vunpack.c.h.b16 %v397
    %v1914 = vunpack.c.l.b16 %v398
    %v1915 = vunpack.c.h.b16 %v398
    %v1916 = vunpack.c.l.b16 %v399
    %v1917 = vunpack.c.h.b16 %v399
    %v1918 = vunpack.c.l.b16 %v400
    %v1919 = vunpack.c.h.b16 %v400
    %v1920 = vunpack.c.l.b16 %v401
    %v1921 = vunpack.c.h.b16 %v401
    %v1922 = vunpack.c.l.b16 %v402
    %v1923 = vunpack.c.h.b16 %v402
    %v1924 = vunpack.c.l.b16 %v403
    %v1925 = vunpack.c.h.b16 %v403
    %v1926 = vunpack.c.l.b16 %v404
    %v1927 = vunpack.c.h.b16 %v404
    %v1928 = vunpack.c.l.b16 %v405
    %v1929 = vunpack.c.h.b16 %v405
    %v1930 = vunpack.c.l.b16 %v406
    %v1931 = vunpack.c.h.b16 %v406
    %v1932 = vunpack.c.l.b16 %v407
    %v1933 = vunpack.c.h.b16 %v407
    %v1934 = vunpack.c.l.b16 %v408
    %v1935 = vunpack.c.h.b16 %v408
    %v1936 = vunpack.c.l.b16 %v409
    %v1937 = vunpack.c.h.b16 %v409
    %v1938 = vunpack.c.l.b16 %v410
    %v1939 = vunpack.c.h.b16 %v410
    %v1940 = vunpack.c.l.b16 %v411
    %v1941 = vunpack.c.h.b16 %v411
    %v1942 = vunpack.c.l.b16 %v412
    %v1943 = vunpack.c.h.b16 %v412
    %v1944 = vunpack.c.l.b16 %v413
    %v1945 = vunpack.c.h.b16 %v413
    %v1946 = vunpack.c.l.b16 %v414
    %v1947 = vunpack.c.h.b16 %v414
    %v1948 = vunpack.c.l.b16 %v415
    %v1949 = vunpack.c.h.b16 %v415
    %v1950 = vunpack.c.l.b16 %v416
    %v1951 = vunpack.c.h.b16 %v416
    %v1952 = vunpack.c.l.b16 %v417
    %v1953 = vunpack.c.h.b16 %v417
    %v1954 = vunpack.c.l.b16 %v418
    %v1955 = vunpack.c.h.b16 %v418
    %v1956 = vunpack.c.l.b16 %v419
    %v1957 = vunpack.c.h.b16 %v419
    %v1958 = vunpack.c.l.b16 %v420
    %v1959 = vunpack.c.h.b16 %v420
    %v1960 = vunpack.c.l.b16 %v421
    %v1961 = vunpack.c.h.b16 %v421
    %v1962 = vunpack.c.l.b16 %v422
    %v1963 = vunpack.c.h.b16 %v422
    %v1964 = vunpack.c.l.b16 %v423
    %v1965 = vunpack.c.h.b16 %v423
    %v1966 = vunpack.c.l.b16 %v424
    %v1967 = vunpack.c.h.b16 %v424
    %v1968 = vunpack.c.l.b16 %v425
    %v1969 = vunpack.c.h.b16 %v425
    %v1970 = vunpack.c.l.b16 %v426
    %v1971 = vunpack.c.h.b16 %v426
    %v1972 = vunpack.c.l.b16 %v427
    %v1973 = vunpack.c.h.b16 %v427
    %v1974 = vunpack.c.l.b16 %v428
    %v1975 = vunpack.c.h.b16 %v428
    %v1976 = vunpack.c.l.b16 %v429
    %v1977 = vunpack.c.h.b16 %v429
    %v1978 = vunpack.c.l.b16 %v430
    %v1979 = vunpack.c.h.b16 %v430
    %v1980 = vunpack.c.l.b16 %v431
    %v1981 = vunpack.c.h.b16 %v431
    %v1982 = vunpack.c.l.b16 %v432
    %v1983 = vunpack.c.h.b16 %v432
    %v1984 = vunpack.c.l.b16 %v433
    %v1985 = vunpack.c.h.b16 %v433
    %v1986 = vunpack.c.l.b16 %v434
    %v1987 = vunpack.c.h.b16 %v434
    %v1988 = vunpack.c.l.b16 %v435
    %v1989 = vunpack.c.h.b16 %v435
    %v1990 = vunpack.c.l.b16 %v436
    %v1991 = vunpack.c.h.b16 %v436
    %v1992 = vunpack.c.l.b16 %v437
    %v1993 = vunpack.c.h.b16 %v437
    %v1994 = vunpack.c.l.b16 %v438
    %v1995 = vunpack.c.h.b16 %v438
    %v1996 = vunpack.c.l.b16 %v439
    %v1997 = vunpack.c.h.b16 %v439
    %v1998 = vunpack.c.l.b16 %v440
    %v1999 = vunpack.c.h.b16 %v440
    %v2000 = vunpack.c.l.b16 %v441
    %v2001 = vunpack.c.h.b16 %v441
    %v2002 = vunpack.c.l.b16 %v442
    %v2003 = vunpack.c.h.b16 %v442
    %v2004 = vunpack.c.l.b16 %v443
    %v2005 = vunpack.c.h.b16 %v443
    %v2006 = vunpack.c.l.b16 %v444
    %v2007 = vunpack.c.h.b16 %v444
    %v2008 = vunpack.c.l.b16 %v445
    %v2009 = vunpack.c.h.b16 %v445
    %v2010 = vunpack.c.l.b16 %v446
    %v2011 = vunpack.c.h.b16 %v446
    %v2012 = vunpack.c.l.b16 %v447
    %v2013 = vunpack.c.h.b16 %v447
    %v2014 = vunpack.c.l.b16 %v448
    %v2015 = vunpack.c.h.b16 %v448
    %v2016 = vunpack.c.l.b16 %v449
    %v2017 = vunpack.c.h.b16 %v449
    %v2018 = vunpack.c.l.b16 %v450
    %v2019 = vunpack.c.h.b16 %v450
    %v2020 = vunpack.c.l.b16 %v451
    %v2021 = vunpack.c.h.b16 %v451
    %v2022 = vunpack.c.l.b16 %v452
    %v2023 = vunpack.c.h.b16 %v452
    %v2024 = vunpack.c.l.b16 %v453
    %v2025 = vunpack.c.h.b16 %v453
    %v2026 = vunpack.c.l.b16 %v454
    %v2027 = vunpack.c.h.b16 %v454
    %v2028 = vunpack.c.l.b16 %v455
    %v2029 = vunpack.c.h.b16 %v455
    %v2030 = vunpack.c.l.b16 %v456
    %v2031 = vunpack.c.h.b16 %v456
    %v2032 = vunpack.c.l.b16 %v457
    %v2033 = vunpack.c.h.b16 %v457
    %v2034 = vunpack.c.l.b16 %v458
    %v2035 = vunpack.c.h.b16 %v458
    %v2036 = vunpack.c.l.b16 %v459
    %v2037 = vunpack.c.h.b16 %v459
    %v2038 = vunpack.c.l.b16 %v460
    %v2039 = vunpack.c.h.b16 %v460
    %v2040 = vunpack.c.l.b16 %v461
    %v2041 = vunpack.c.h.b16 %v461
    %v2042 = vunpack.c.l.b16 %v462
    %v2043 = vunpack.c.h.b16 %v462
    %v2044 = vunpack.c.l.b16 %v463
    %v2045 = vunpack.c.h.b16 %v463
    %v2046 = vunpack.c.l.b16 %v464
    %v2047 = vunpack.c.h.b16 %v464
    %v2048 = vunpack.c.l.b16 %v465
    %v2049 = vunpack.c.h.b16 %v465
    %v2050 = vunpack.c.l.b16 %v466
    %v2051 = vunpack.c.h.b16 %v466
    %v2052 = vunpack.c.l.b16 %v467
    %v2053 = vunpack.c.h.b16 %v467
    %v2054 = vunpack.c.l.b16 %v468
    %v2055 = vunpack.c.h.b16 %v468
    %v2056 = vunpack.c.l.b16 %v469
    %v2057 = vunpack.c.h.b16 %v469
    %v2058 = vunpack.c.l.b16 %v470
    %v2059 = vunpack.c.h.b16 %v470
    %v2060 = vunpack.c.l.b16 %v471
    %v2061 = vunpack.c.h.b16 %v471
    %v2062 = vunpack.c.l.b16 %v472
    %v2063 = vunpack.c.h.b16 %v472
    %v2064 = vunpack.c.l.b16 %v473
    %v2065 = vunpack.c.h.b16 %v473
    %v2066 = vunpack.c.l.b16 %v474
    %v2067 = vunpack.c.h.b16 %v474
    %v2068 = vunpack.c.l.b16 %v475
    %v2069 = vunpack.c.h.b16 %v475
    %v2070 = vunpack.c.l.b16 %v476
    %v2071 = vunpack.c.h.b16 %v476
    %v2072 = vunpack.c.l.b16 %v477
    %v2073 = vunpack.c.h.b16 %v477
    %v2074 = vunpack.c.l.b16 %v478
    %v2075 = vunpack.c.h.b16 %v478
    %v2076 = vunpack.c.l.b16 %v479
    %v2077 = vunpack.c.h.b16 %v479
    %v2078 = vunpack.c.l.b16 %v480
    %v2079 = vunpack.c.h.b16 %v480
    %v2080 = vunpack.c.l.b16 %v481
    %v2081 = vunpack.c.h.b16 %v481
    %v2082 = vunpack.c.l.b16 %v482
    %v2083 = vunpack.c.h.b16 %v482
    %v2084 = vunpack.c.l.b16 %v483
    %v2085 = vunpack.c.h.b16 %v483
    %v2086 = vunpack.c.l.b16 %v484
    %v2087 = vunpack.c.h.b16 %v484
    %v2088 = vunpack.c.l.b16 %v485
    %v2089 = vunpack.c.h.b16 %v485
    %v2090 = vunpack.c.l.b16 %v486
    %v2091 = vunpack.c.h.b16 %v486
    %v2092 = vunpack.c.l.b16 %v487
    %v2093 = vunpack.c.h.b16 %v487
    %v2094 = vunpack.c.l.b16 %v488
    %v2095 = vunpack.c.h.b16 %v488
    %v2096 = vunpack.c.l.b16 %v489
    %v2097 = vunpack.c.h.b16 %v489
    %v2098 = vunpack.c.l.b16 %v490
    %v2099 = vunpack.c.h.b16 %v490
    %v2100 = vunpack.c.l.b16 %v491
    %v2101 = vunpack.c.h.b16 %v491
    %v2102 = vunpack.c.l.b16 %v492
    %v2103 = vunpack.c.h.b16 %v492
    %v2104 = vunpack.c.l.b16 %v493
    %v2105 = vunpack.c.h.b16 %v493
    %v2106 = vunpack.c.l.b16 %v494
    %v2107 = vunpack.c.h.b16 %v494
    %v2108 = vunpack.c.l.b16 %v495
    %v2109 = vunpack.c.h.b16 %v495
    %v2110 = vunpack.c.l.b16 %v496
    %v2111 = vunpack.c.h.b16 %v496
    %v2112 = vunpack.c.l.b16 %v497
    %v2113 = vunpack.c.h.b16 %v497
    %v2114 = vunpack.c.l.b16 %v498
    %v2115 = vunpack.c.h.b16 %v498
    %v2116 = vunpack.c.l.b16 %v499
    %v2117 = vunpack.c.h.b16 %v499
    %v2118 = vunpack.c.l.b16 %v500
    %v2119 = vunpack.c.h.b16 %v500
    %v2120 = vunpack.c.l.b16 %v501
    %v2121 = vunpack.c.h.b16 %v501
    %v2122 = vunpack.c.l.b16 %v502
    %v2123 = vunpack.c.h.b16 %v502
    %v2124 = vunpack.c.l.b16 %v503
    %v2125 = vunpack.c.h.b16 %v503
    %v2126 = vunpack.c.l.b16 %v504
    %v2127 = vunpack.c.h.b16 %v504
    %v2128 = vunpack.c.l.b16 %v505
    %v2129 = vunpack.c.h.b16 %v505
    %v2130 = vunpack.c.l.b16 %v506
    %v2131 = vunpack.c.h.b16 %v506
    %v2132 = vunpack.c.l.b16 %v507
    %v2133 = vunpack.c.h.b16 %v507
    %v2134 = vunpack.c.l.b16 %v508
    %v2135 = vunpack.c.h.b16 %v508
    %v2136 = vunpack.c.l.b16 %v509
    %v2137 = vunpack.c.h.b16 %v509
    %v2138 = vunpack.c.l.b16 %v510
    %v2139 = vunpack.c.h.b16 %v510
    %v2140 = vunpack.c.l.b16 %v511
    %v2141 = vunpack.c.h.b16 %v511
    %v2142 = vunpack.c.l.b16 %v512
    %v2143 = vunpack.c.h.b16 %v512
    %v2144 = vunpack.c.l.b16 %v513
    %v2145 = vunpack.c.h.b16 %v513
    %v2146 = vunpack.c.l.b16 %v514
    %v2147 = vunpack.c.h.b16 %v514
    %v2148 = vunpack.c.l.b16 %v515
    %v2149 = vunpack.c.h.b16 %v515
    %v2150 = vunpack.c.l.b16 %v516
    %v2151 = vunpack.c.h.b16 %v516
    %v2152 = vunpack.c.l.b16 %v517
    %v2153 = vunpack.c.h.b16 %v517
    %v2154 = vunpack.c.l.b16 %v518
    %v2155 = vunpack.c.h.b16 %v518
    %v2156 = vunpack.c.l.b16 %v519
    %v2157 = vunpack.c.h.b16 %v519
    %v2158 = vunpack.c.l.b16 %v520
    %v2159 = vunpack.c.h.b16 %v520
    %v2160 = vunpack.c.l.b16 %v521
    %v2161 = vunpack.c.h.b16 %v521
    %v2162 = vunpack.c.l.b16 %v522
    %v2163 = vunpack.c.h.b16 %v522
    %v2164 = vunpack.c.l.b16 %v523
    %v2165 = vunpack.c.h.b16 %v523
    %v2166 = vunpack.c.l.b16 %v524
    %v2167 = vunpack.c.h.b16 %v524
    %v2168 = vunpack.c.l.b16 %v525
    %v2169 = vunpack.c.h.b16 %v525
    %v2170 = vunpack.c.l.b16 %v526
    %v2171 = vunpack.c.h.b16 %v526
    %v2172 = vunpack.c.l.b16 %v527
    %v2173 = vunpack.c.h.b16 %v527
    %v2174 = vunpack.c.l.b16 %v528
    %v2175 = vunpack.c.h.b16 %v528
    %v2176 = vunpack.c.l.b16 %v529
    %v2177 = vunpack.c.h.b16 %v529
    %v2178 = vunpack.c.l.b16 %v530
    %v2179 = vunpack.c.h.b16 %v530
    %v2180 = vunpack.c.l.b16 %v531
    %v2181 = vunpack.c.h.b16 %v531
    %v2182 = vunpack.c.l.b16 %v532
    %v2183 = vunpack.c.h.b16 %v532
    %v2184 = vunpack.c.l.b16 %v533
    %v2185 = vunpack.c.h.b16 %v533
    %v2186 = vunpack.c.l.b16 %v534
    %v2187 = vunpack.c.h.b16 %v534
    %v2188 = vunpack.c.l.b16 %v535
    %v2189 = vunpack.c.h.b16 %v535
    %v2190 = vunpack.c.l.b16 %v536
    %v2191 = vunpack.c.h.b16 %v536
    %v2192 = vunpack.c.l.b16 %v537
    %v2193 = vunpack.c.h.b16 %v537
    %v2194 = vunpack.c.l.b16 %v538
    %v2195 = vunpack.c.h.b16 %v538
    %v2196 = vunpack.c.l.b16 %v539
    %v2197 = vunpack.c.h.b16 %v539
    %v2198 = vunpack.c.l.b16 %v540
    %v2199 = vunpack.c.h.b16 %v540
    %v2200 = vunpack.c.l.b16 %v541
    %v2201 = vunpack.c.h.b16 %v541
    %v2202 = vunpack.c.l.b16 %v542
    %v2203 = vunpack.c.h.b16 %v542
    %v2204 = vunpack.c.l.b16 %v543
    %v2205 = vunpack.c.h.b16 %v543
    %v2206 = vunpack.c.l.b16 %v544
    %v2207 = vunpack.c.h.b16 %v544
    %v2208 = vunpack.c.l.b16 %v545
    %v2209 = vunpack.c.h.b16 %v545
    %v2210 = vunpack.c.l.b16 %v546
    %v2211 = vunpack.c.h.b16 %v546
    %v2212 = vunpack.c.l.b16 %v547
    %v2213 = vunpack.c.h.b16 %v547
    %v2214 = vunpack.c.l.b16 %v548
    %v2215 = vunpack.c.h.b16 %v548
    %v2216 = vunpack.c.l.b16 %v549
    %v2217 = vunpack.c.h.b16 %v549
    %v2218 = vunpack.c.l.b16 %v550
    %v2219 = vunpack.c.h.b16 %v550
    %v2220 = vunpack.c.l.b16 %v551
    %v2221 = vunpack.c.h.b16 %v551
    %v2222 = vunpack.c.l.b16 %v552
    %v2223 = vunpack.c.h.b16 %v552
    %v2224 = vunpack.c.l.b16 %v553
    %v2225 = vunpack.c.h.b16 %v553
    %v2226 = vunpack.c.l.b16 %v554
    %v2227 = vunpack.c.h.b16 %v554
    %v2228 = vunpack.c.l.b16 %v555
    %v2229 = vunpack.c.h.b16 %v555
    %v2230 = vunpack.c.l.b16 %v556
    %v2231 = vunpack.c.h.b16 %v556
    %v2232 = vunpack.c.l.b16 %v557
    %v2233 = vunpack.c.h.b16 %v557
    %v2234 = vunpack.c.l.b16 %v558
    %v2235 = vunpack.c.h.b16 %v558
    %v2236 = vunpack.c.l.b16 %v559
    %v2237 = vunpack.c.h.b16 %v559
    %v2238 = vunpack.c.l.b16 %v560
    %v2239 = vunpack.c.h.b16 %v560
    %v2240 = vunpack.c.l.b16 %v561
    %v2241 = vunpack.c.h.b16 %v561
    %v2242 = vunpack.c.l.b16 %v562
    %v2243 = vunpack.c.h.b16 %v562
    %v2244 = vunpack.c.l.b16 %v563
    %v2245 = vunpack.c.h.b16 %v563
    %v2246 = vunpack.c.l.b16 %v564
    %v2247 = vunpack.c.h.b16 %v564
    %v2248 = vunpack.c.l.b16 %v565
    %v2249 = vunpack.c.h.b16 %v565
    %v2250 = vunpack.c.l.b16 %v566
    %v2251 = vunpack.c.h.b16 %v566
    %v2252 = vunpack.c.l.b16 %v567
    %v2253 = vunpack.c.h.b16 %v567
    %v2254 = vunpack.c.l.b16 %v568
    %v2255 = vunpack.c.h.b16 %v568
    %v2256 = vunpack.c.l.b16 %v569
    %v2257 = vunpack.c.h.b16 %v569
    %v2258 = vunpack.c.l.b16 %v570
    %v2259 = vunpack.c.h.b16 %v570
    %v2260 = vunpack.c.l.b16 %v571
    %v2261 = vunpack.c.h.b16 %v571
    %v2262 = vunpack.c.l.b16 %v572
    %v2263 = vunpack.c.h.b16 %v572
    %v2264 = vunpack.c.l.b16 %v573
    %v2265 = vunpack.c.h.b16 %v573
    %v2266 = vunpack.c.l.b16 %v574
    %v2267 = vunpack.c.h.b16 %v574
    %v2268 = vunpack.c.l.b16 %v575
    %v2269 = vunpack.c.h.b16 %v575
    %v2270 = vunpack.c.l.b16 %v576
    %v2271 = vunpack.c.h.b16 %v576
    %v2272 = vunpack.c.l.b16 %v577
    %v2273 = vunpack.c.h.b16 %v577
    %v2274 = vunpack.c.l.b16 %v578
    %v2275 = vunpack.c.h.b16 %v578
    %v2276 = vunpack.c.l.b16 %v579
    %v2277 = vunpack.c.h.b16 %v579
    %v2278 = vunpack.c.l.b16 %v580
    %v2279 = vunpack.c.h.b16 %v580
    %v2280 = vunpack.c.l.b16 %v581
    %v2281 = vunpack.c.h.b16 %v581
    %v2282 = vunpack.c.l.b16 %v582
    %v2283 = vunpack.c.h.b16 %v582
    %v2284 = vunpack.c.l.b16 %v583
    %v2285 = vunpack.c.h.b16 %v583
    %v2286 = vunpack.c.l.b16 %v584
    %v2287 = vunpack.c.h.b16 %v584
    %v2288 = vunpack.c.l.b16 %v585
    %v2289 = vunpack.c.h.b16 %v585
    %v2290 = vunpack.c.l.b16 %v586
    %v2291 = vunpack.c.h.b16 %v586
    %v2292 = vunpack.c.l.b16 %v587
    %v2293 = vunpack.c.h.b16 %v587
    %v2294 = vunpack.c.l.b16 %v588
    %v2295 = vunpack.c.h.b16 %v588
    %v2296 = vunpack.c.l.b16 %v589
    %v2297 = vunpack.c.h.b16 %v589
    %v2298 = vunpack.c.l.b16 %v590
    %v2299 = vunpack.c.h.b16 %v590
    %v2300 = vunpack.c.l.b16 %v591
    %v2301 = vunpack.c.h.b16 %v591
    %v2302 = vunpack.c.l.b16 %v592
    %v2303 = vunpack.c.h.b16 %v592
    %v2304 = vunpack.c.l.b16 %v593
    %v2305 = vunpack.c.h.b16 %v593
    %v2306 = vunpack.c.l.b16 %v594
    %v2307 = vunpack.c.h.b16 %v594
    %v2308 = vunpack.c.l.b16 %v595
    %v2309 = vunpack.c.h.b16 %v595
    %v2310 = vunpack.c.l.b16 %v596
    %v2311 = vunpack.c.h.b16 %v596
    %v2312 = vunpack.c.l.b16 %v597
    %v2313 = vunpack.c.h.b16 %v597
    %v2314 = vunpack.c.l.b16 %v598
    %v2315 = vunpack.c.h.b16 %v598
    %v2316 = vunpack.c.l.b16 %v599
    %v2317 = vunpack.c.h.b16 %v599
    %v2318 = vunpack.c.l.b16 %v600
    %v2319 = vunpack.c.h.b16 %v600
    %v2320 = vunpack.c.l.b16 %v601
    %v2321 = vunpack.c.h.b16 %v601
    %v2322 = vunpack.c.l.b16 %v602
    %v2323 = vunpack.c.h.b16 %v602
    %v2324 = vunpack.c.l.b16 %v603
    %v2325 = vunpack.c.h.b16 %v603
    %v2326 = vunpack.c.l.b16 %v604
    %v2327 = vunpack.c.h.b16 %v604
    %v2328 = vunpack.c.l.b16 %v605
    %v2329 = vunpack.c.h.b16 %v605
    %v2330 = vunpack.c.l.b16 %v606
    %v2331 = vunpack.c.h.b16 %v606
    %v2332 = vunpack.c.l.b16 %v607
    %v2333 = vunpack.c.h.b16 %v607
    %v2334 = vunpack.c.l.b16 %v608
    %v2335 = vunpack.c.h.b16 %v608
    %v2336 = vunpack.c.l.b16 %v609
    %v2337 = vunpack.c.h.b16 %v609
    %v2338 = vunpack.c.l.b16 %v610
    %v2339 = vunpack.c.h.b16 %v610
    %v2340 = vunpack.c.l.b16 %v611
    %v2341 = vunpack.c.h.b16 %v611
    %v2342 = vunpack.c.l.b16 %v612
    %v2343 = vunpack.c.h.b16 %v612
    %v2344 = vunpack.c.l.b16 %v613
    %v2345 = vunpack.c.h.b16 %v613
    %v2346 = vunpack.c.l.b16 %v614
    %v2347 = vunpack.c.h.b16 %v614
    %v2348 = vunpack.c.l.b16 %v615
    %v2349 = vunpack.c.h.b16 %v615
    %v2350 = vunpack.c.l.b16 %v616
    %v2351 = vunpack.c.h.b16 %v616
    %v2352 = vunpack.c.l.b16 %v617
    %v2353 = vunpack.c.h.b16 %v617
    %v2354 = vunpack.c.l.b16 %v618
    %v2355 = vunpack.c.h.b16 %v618
    %v2356 = vunpack.c.l.b16 %v619
    %v2357 = vunpack.c.h.b16 %v619
    %v2358 = vunpack.c.l.b16 %v620
    %v2359 = vunpack.c.h.b16 %v620
    %v2360 = vunpack.c.l.b16 %v621
    %v2361 = vunpack.c.h.b16 %v621
    %v2362 = vunpack.c.l.b16 %v622
    %v2363 = vunpack.c.h.b16 %v622
    %v2364 = vunpack.c.l.b16 %v623
    %v2365 = vunpack.c.h.b16 %v623
    %v2366 = vunpack.c.l.b16 %v624
    %v2367 = vunpack.c.h.b16 %v624
    %v2368 = vunpack.c.l.b16 %v625
    %v2369 = vunpack.c.h.b16 %v625
    %v2370 = vunpack.c.l.b16 %v626
    %v2371 = vunpack.c.h.b16 %v626
    %v2372 = vunpack.c.l.b16 %v627
    %v2373 = vunpack.c.h.b16 %v627
    %v2374 = vunpack.c.l.b16 %v628
    %v2375 = vunpack.c.h.b16 %v628
    %v2376 = vunpack.c.l.b16 %v629
    %v2377 = vunpack.c.h.b16 %v629
    %v2378 = vunpack.c.l.b16 %v630
    %v2379 = vunpack.c.h.b16 %v630
    %v2380 = vunpack.c.l.b16 %v631
    %v2381 = vunpack.c.h.b16 %v631
    %v2382 = vunpack.c.l.b16 %v632
    %v2383 = vunpack.c.h.b16 %v632
    %v2384 = vunpack.c.l.b16 %v633
    %v2385 = vunpack.c.h.b16 %v633
    %v2386 = vunpack.c.l.b16 %v634
    %v2387 = vunpack.c.h.b16 %v634
    %v2388 = vunpack.c.l.b16 %v635
    %v2389 = vunpack.c.h.b16 %v635
    %v2390 = vunpack.c.l.b16 %v636
    %v2391 = vunpack.c.h.b16 %v636
    %v2392 = vunpack.c.l.b16 %v637
    %v2393 = vunpack.c.h.b16 %v637
    %v2394 = vunpack.c.l.b16 %v638
    %v2395 = vunpack.c.h.b16 %v638
    %v2396 = vunpack.c.l.b16 %v639
    %v2397 = vunpack.c.h.b16 %v639
    %v2398 = vunpack.c.l.b16 %v640
    %v2399 = vunpack.c.h.b16 %v640
    %v2400 = vunpack.c.l.b16 %v641
    %v2401 = vunpack.c.h.b16 %v641
    %v2402 = vunpack.c.l.b16 %v642
    %v2403 = vunpack.c.h.b16 %v642
    %v2404 = vunpack.c.l.b16 %v643
    %v2405 = vunpack.c.h.b16 %v643
    %v2406 = vunpack.c.l.b16 %v644
    %v2407 = vunpack.c.h.b16 %v644
    %v2408 = vunpack.c.l.b16 %v645
    %v2409 = vunpack.c.h.b16 %v645
    %v2410 = vunpack.c.l.b16 %v646
    %v2411 = vunpack.c.h.b16 %v646
    %v2412 = vunpack.c.l.b16 %v647
    %v2413 = vunpack.c.h.b16 %v647
    %v2414 = vunpack.c.l.b16 %v648
    %v2415 = vunpack.c.h.b16 %v648
    %v2416 = vunpack.c.l.b16 %v649
    %v2417 = vunpack.c.h.b16 %v649
    %v2418 = vunpack.c.l.b16 %v650
    %v2419 = vunpack.c.h.b16 %v650
    %v2420 = vunpack.c.l.b16 %v651
    %v2421 = vunpack.c.h.b16 %v651
    %v2422 = vunpack.c.l.b16 %v652
    %v2423 = vunpack.c.h.b16 %v652
    %v2424 = vunpack.c.l.b16 %v653
    %v2425 = vunpack.c.h.b16 %v653
    %v2426 = vunpack.c.l.b16 %v654
    %v2427 = vunpack.c.h.b16 %v654
    %v2428 = vunpack.c.l.b16 %v655
    %v2429 = vunpack.c.h.b16 %v655
    %v2430 = vunpack.c.l.b16 %v656
    %v2431 = vunpack.c.h.b16 %v656
    %v2432 = vunpack.c.l.b16 %v657
    %v2433 = vunpack.c.h.b16 %v657
    %v2434 = vunpack.c.l.b16 %v658
    %v2435 = vunpack.c.h.b16 %v658
    %v2436 = vunpack.c.l.b16 %v659
    %v2437 = vunpack.c.h.b16 %v659
    %v2438 = vunpack.c.l.b16 %v660
    %v2439 = vunpack.c.h.b16 %v660
    %v2440 = vunpack.c.l.b16 %v661
    %v2441 = vunpack.c.h.b16 %v661
    %v2442 = vpack.c.b16 %v1420, %v1418
    %v2443 = vpack.c.b16 %v1421, %v1419
    %v2444 = vpack.c.b16 %v1424, %v1422
    %v2445 = vpack.c.b16 %v1425, %v1423
    %v2446 = vpack.c.b16 %v1428, %v1426
    %v2447 = vpack.c.b16 %v1429, %v1427
    %v2448 = vpack.c.b16 %v1432, %v1430
    %v2449 = vpack.c.b16 %v1433, %v1431
    %v2450 = vpack.c.b16 %v1436, %v1434
    %v2451 = vpack.c.b16 %v1437, %v1435
    %v2452 = vpack.c.b16 %v1440, %v1438
    %v2453 = vpack.c.b16 %v1441, %v1439
    %v2454 = vpack.c.b16 %v1444, %v1442
    %v2455 = vpack.c.b16 %v1445, %v1443
    %v2456 = vpack.c.b16 %v1448, %v1446
    %v2457 = vpack.c.b16 %v1449, %v1447
    %v2458 = vpack.c.b16 %v1452, %v1450
    %v2459 = vpack.c.b16 %v1453, %v1451
    %v2460 = vpack.c.b16 %v1456, %v1454
    %v2461 = vpack.c.b16 %v1457, %v1455
    %v2462 = vpack.c.b16 %v1460, %v1458
    %v2463 = vpack.c.b16 %v1461, %v1459
    %v2464 = vpack.c.b16 %v1464, %v1462
    %v2465 = vpack.c.b16 %v1465, %v1463
    %v2466 = vpack.c.b16 %v1468, %v1466
    %v2467 = vpack.c.b16 %v1469, %v1467
    %v2468 = vpack.c.b16 %v1472, %v1470
    %v2469 = vpack.c.b16 %v1473, %v1471
    %v2470 = vpack.c.b16 %v1476, %v1474
    %v2471 = vpack.c.b16 %v1477, %v1475
    %v2472 = vpack.c.b16 %v1480, %v1478
    %v2473 = vpack.c.b16 %v1481, %v1479
    %v2474 = vpack.c.b16 %v1484, %v1482
    %v2475 = vpack.c.b16 %v1485, %v1483
    %v2476 = vpack.c.b16 %v1488, %v1486
    %v2477 = vpack.c.b16 %v1489, %v1487
    %v2478 = vpack.c.b16 %v1492, %v1490
    %v2479 = vpack.c.b16 %v1493, %v1491
    %v2480 = vpack.c.b16 %v1496, %v1494
    %v2481 = vpack.c.b16 %v1497, %v1495
    %v2482 = vpack.c.b16 %v1500, %v1498
    %v2483 = vpack.c.b16 %v1501, %v1499
    %v2484 = vpack.c.b16 %v1504, %v1502
    %v2485 = vpack.c.b16 %v1505, %v1503
    %v2486 = vpack.c.b16 %v1508, %v1506
    %v2487 = vpack.c.b16 %v1509, %v1507
    %v2488 = vpack.c.b16 %v1512, %v1510
    %v2489 = vpack.c.b16 %v1513, %v1511
    %v2490 = vpack.c.b16 %v1516, %v1514
    %v2491 = vpack.c.b16 %v1517, %v1515
    %v2492 = vpack.c.b16 %v1520, %v1518
    %v2493 = vpack.c.b16 %v1521, %v1519
    %v2494 = vpack.c.b16 %v1524, %v1522
    %v2495 = vpack.c.b16 %v1525, %v1523
    %v2496 = vpack.c.b16 %v1528, %v1526
    %v2497 = vpack.c.b16 %v1529, %v1527
    %v2498 = vpack.c.b16 %v1532, %v1530
    %v2499 = vpack.c.b16 %v1533, %v1531
    %v2500 = vpack.c.b16 %v1536, %v1534
    %v2501 = vpack.c.b16 %v1537, %v1535
    %v2502 = vpack.c.b16 %v1540, %v1538
    %v2503 = vpack.c.b16 %v1541, %v1539
    %v2504 = vpack.c.b16 %v1544, %v1542
    %v2505 = vpack.c.b16 %v1545, %v1543
    %v2506 = vpack.c.b16 %v1548, %v1546
    %v2507 = vpack.c.b16 %v1549, %v1547
    %v2508 = vpack.c.b16 %v1552, %v1550
    %v2509 = vpack.c.b16 %v1553, %v1551
    %v2510 = vpack.c.b16 %v1556, %v1554
    %v2511 = vpack.c.b16 %v1557, %v1555
    %v2512 = vpack.c.b16 %v1560, %v1558
    %v2513 = vpack.c.b16 %v1561, %v1559
    %v2514 = vpack.c.b16 %v1564, %v1562
    %v2515 = vpack.c.b16 %v1565, %v1563
    %v2516 = vpack.c.b16 %v1568, %v1566
    %v2517 = vpack.c.b16 %v1569, %v1567
    %v2518 = vpack.c.b16 %v1572, %v1570
    %v2519 = vpack.c.b16 %v1573, %v1571
    %v2520 = vpack.c.b16 %v1576, %v1574
    %v2521 = vpack.c.b16 %v1577, %v1575
    %v2522 = vpack.c.b16 %v1580, %v1578
    %v2523 = vpack.c.b16 %v1581, %v1579
    %v2524 = vpack.c.b16 %v1584, %v1582
    %v2525 = vpack.c.b16 %v1585, %v1583
    %v2526 = vpack.c.b16 %v1588, %v1586
    %v2527 = vpack.c.b16 %v1589, %v1587
    %v2528 = vpack.c.b16 %v1592, %v1590
    %v2529 = vpack.c.b16 %v1593, %v1591
    %v2530 = vpack.c.b16 %v1596, %v1594
    %v2531 = vpack.c.b16 %v1597, %v1595
    %v2532 = vpack.c.b16 %v1600, %v1598
    %v2533 = vpack.c.b16 %v1601, %v1599
    %v2534 = vpack.c.b16 %v1604, %v1602
    %v2535 = vpack.c.b16 %v1605, %v1603
    %v2536 = vpack.c.b16 %v1608, %v1606
    %v2537 = vpack.c.b16 %v1609, %v1607
    %v2538 = vpack.c.b16 %v1612, %v1610
    %v2539 = vpack.c.b16 %v1613, %v1611
    %v2540 = vpack.c.b16 %v1616, %v1614
    %v2541 = vpack.c.b16 %v1617, %v1615
    %v2542 = vpack.c.b16 %v1620, %v1618
    %v2543 = vpack.c.b16 %v1621, %v1619
    %v2544 = vpack.c.b16 %v1624, %v1622
    %v2545 = vpack.c.b16 %v1625, %v1623
    %v2546 = vpack.c.b16 %v1628, %v1626
    %v2547 = vpack.c.b16 %v1629, %v1627
    %v2548 = vpack.c.b16 %v1632, %v1630
    %v2549 = vpack.c.b16 %v1633, %v1631
    %v2550 = vpack.c.b16 %v1636, %v1634
    %v2551 = vpack.c.b16 %v1637, %v1635
    %v2552 = vpack.c.b16 %v1640, %v1638
    %v2553 = vpack.c.b16 %v1641, %v1639
    %v2554 = vpack.c.b16 %v1644, %v1642
    %v2555 = vpack.c.b16 %v1645, %v1643
    %v2556 = vpack.c.b16 %v1648, %v1646
    %v2557 = vpack.c.b16 %v1649, %v1647
    %v2558 = vpack.c.b16 %v1652, %v1650
    %v2559 = vpack.c.b16 %v1653, %v1651
    %v2560 = vpack.c.b16 %v1656, %v1654
    %v2561 = vpack.c.b16 %v1657, %v1655
    %v2562 = vpack.c.b16 %v1660, %v1658
    %v2563 = vpack.c.b16 %v1661, %v1659
    %v2564 = vpack.c.b16 %v1664, %v1662
    %v2565 = vpack.c.b16 %v1665, %v1663
    %v2566 = vpack.c.b16 %v1668, %v1666
    %v2567 = vpack.c.b16 %v1669, %v1667
    %v2568 = vpack.c.b16 %v1672, %v1670
    %v2569 = vpack.c.b16 %v1673, %v1671
    %v2570 = vpack.c.b16 %v1676, %v1674
    %v2571 = vpack.c.b16 %v1677, %v1675
    %v2572 = vpack.c.b16 %v1680, %v1678
    %v2573 = vpack.c.b16 %v1681, %v1679
    %v2574 = vpack.c.b16 %v1684, %v1682
    %v2575 = vpack.c.b16 %v1685, %v1683
    %v2576 = vpack.c.b16 %v1688, %v1686
    %v2577 = vpack.c.b16 %v1689, %v1687
    %v2578 = vpack.c.b16 %v1692, %v1690
    %v2579 = vpack.c.b16 %v1693, %v1691
    %v2580 = vpack.c.b16 %v1696, %v1694
    %v2581 = vpack.c.b16 %v1697, %v1695
    %v2582 = vpack.c.b16 %v1700, %v1698
    %v2583 = vpack.c.b16 %v1701, %v1699
    %v2584 = vpack.c.b16 %v1704, %v1702
    %v2585 = vpack.c.b16 %v1705, %v1703
    %v2586 = vpack.c.b16 %v1708, %v1706
    %v2587 = vpack.c.b16 %v1709, %v1707
    %v2588 = vpack.c.b16 %v1712, %v1710
    %v2589 = vpack.c.b16 %v1713, %v1711
    %v2590 = vpack.c.b16 %v1716, %v1714
    %v2591 = vpack.c.b16 %v1717, %v1715
    %v2592 = vpack.c.b16 %v1720, %v1718
    %v2593 = vpack.c.b16 %v1721, %v1719
    %v2594 = vpack.c.b16 %v1724, %v1722
    %v2595 = vpack.c.b16 %v1725, %v1723
    %v2596 = vpack.c.b16 %v1728, %v1726
    %v2597 = vpack.c.b16 %v1729, %v1727
    %v2598 = vpack.c.b16 %v1732, %v1730
    %v2599 = vpack.c.b16 %v1733, %v1731
    %v2600 = vpack.c.b16 %v1736, %v1734
    %v2601 = vpack.c.b16 %v1737, %v1735
    %v2602 = vpack.c.b16 %v1740, %v1738
    %v2603 = vpack.c.b16 %v1741, %v1739
    %v2604 = vpack.c.b16 %v1744, %v1742
    %v2605 = vpack.c.b16 %v1745, %v1743
    %v2606 = vpack.c.b16 %v1748, %v1746
    %v2607 = vpack.c.b16 %v1749, %v1747
    %v2608 = vpack.c.b16 %v1752, %v1750
    %v2609 = vpack.c.b16 %v1753, %v1751
    %v2610 = vpack.c.b16 %v1756, %v1754
    %v2611 = vpack.c.b16 %v1757, %v1755
    %v2612 = vpack.c.b16 %v1760, %v1758
    %v2613 = vpack.c.b16 %v1761, %v1759
    %v2614 = vpack.c.b16 %v1764, %v1762
    %v2615 = vpack.c.b16 %v1765, %v1763
    %v2616 = vpack.c.b16 %v1768, %v1766
    %v2617 = vpack.c.b16 %v1769, %v1767
    %v2618 = vpack.c.b16 %v1772, %v1770
    %v2619 = vpack.c.b16 %v1773, %v1771
    %v2620 = vpack.c.b16 %v1776, %v1774
    %v2621 = vpack.c.b16 %v1777, %v1775
    %v2622 = vpack.c.b16 %v1780, %v1778
    %v2623 = vpack.c.b16 %v1781, %v1779
    %v2624 = vpack.c.b16 %v1784, %v1782
    %v2625 = vpack.c.b16 %v1785, %v1783
    %v2626 = vpack.c.b16 %v1788, %v1786
    %v2627 = vpack.c.b16 %v1789, %v1787
    %v2628 = vpack.c.b16 %v1792, %v1790
    %v2629 = vpack.c.b16 %v1793, %v1791
    %v2630 = vpack.c.b16 %v1796, %v1794
    %v2631 = vpack.c.b16 %v1797, %v1795
    %v2632 = vpack.c.b16 %v1800, %v1798
    %v2633 = vpack.c.b16 %v1801, %v1799
    %v2634 = vpack.c.b16 %v1804, %v1802
    %v2635 = vpack.c.b16 %v1805, %v1803
    %v2636 = vpack.c.b16 %v1808, %v1806
    %v2637 = vpack.c.b16 %v1809, %v1807
    %v2638 = vpack.c.b16 %v1812, %v1810
    %v2639 = vpack.c.b16 %v1813, %v1811
    %v2640 = vpack.c.b16 %v1816, %v1814
    %v2641 = vpack.c.b16 %v1817, %v1815
    %v2642 = vpack.c.b16 %v1820, %v1818
    %v2643 = vpack.c.b16 %v1821, %v1819
    %v2644 = vpack.c.b16 %v1824, %v1822
    %v2645 = vpack.c.b16 %v1825, %v1823
    %v2646 = vpack.c.b16 %v1828, %v1826
    %v2647 = vpack.c.b16 %v1829, %v1827
    %v2648 = vpack.c.b16 %v1832, %v1830
    %v2649 = vpack.c.b16 %v1833, %v1831
    %v2650 = vpack.c.b16 %v1836, %v1834
    %v2651 = vpack.c.b16 %v1837, %v1835
    %v2652 = vpack.c.b16 %v1840, %v1838
    %v2653 = vpack.c.b16 %v1841, %v1839
    %v2654 = vpack.c.b16 %v1844, %v1842
    %v2655 = vpack.c.b16 %v1845, %v1843
    %v2656 = vpack.c.b16 %v1848, %v1846
    %v2657 = vpack.c.b16 %v1849, %v1847
    %v2658 = vpack.c.b16 %v1852, %v1850
    %v2659 = vpack.c.b16 %v1853, %v1851
    %v2660 = vpack.c.b16 %v1856, %v1854
    %v2661 = vpack.c.b16 %v1857, %v1855
    %v2662 = vpack.c.b16 %v1860, %v1858
    %v2663 = vpack.c.b16 %v1861, %v1859
    %v2664 = vpack.c.b16 %v1864, %v1862
    %v2665 = vpack.c.b16 %v1865, %v1863
    %v2666 = vpack.c.b16 %v1868, %v1866
    %v2667 = vpack.c.b16 %v1869, %v1867
    %v2668 = vpack.c.b16 %v1872, %v1870
    %v2669 = vpack.c.b16 %v1873, %v1871
    %v2670 = vpack.c.b16 %v1876, %v1874
    %v2671 = vpack.c.b16 %v1877, %v1875
    %v2672 = vpack.c.b16 %v1880, %v1878
    %v2673 = vpack.c.b16 %v1881, %v1879
    %v2674 = vpack.c.b16 %v1884, %v1882
    %v2675 = vpack.c.b16 %v1885, %v1883
    %v2676 = vpack.c.b16 %v1888, %v1886
    %v2677 = vpack.c.b16 %v1889, %v1887
    %v2678 = vpack.c.b16 %v1892, %v1890
    %v2679 = vpack.c.b16 %v1893, %v1891
    %v2680 = vpack.c.b16 %v1896, %v1894
    %v2681 = vpack.c.b16 %v1897, %v1895
    %v2682 = vpack.c.b16 %v1900, %v1898
    %v2683 = vpack.c.b16 %v1901, %v1899
    %v2684 = vpack.c.b16 %v1904, %v1902
    %v2685 = vpack.c.b16 %v1905, %v1903
    %v2686 = vpack.c.b16 %v1908, %v1906
    %v2687 = vpack.c.b16 %v1909, %v1907
    %v2688 = vpack.c.b16 %v1912, %v1910
    %v2689 = vpack.c.b16 %v1913, %v1911
    %v2690 = vpack.c.b16 %v1916, %v1914
    %v2691 = vpack.c.b16 %v1917, %v1915
    %v2692 = vpack.c.b16 %v1920, %v1918
    %v2693 = vpack.c.b16 %v1921, %v1919
    %v2694 = vpack.c.b16 %v1924, %v1922
    %v2695 = vpack.c.b16 %v1925, %v1923
    %v2696 = vpack.c.b16 %v1928, %v1926
    %v2697 = vpack.c.b16 %v1929, %v1927
    %v2698 = vpack.c.b16 %v1932, %v1930
    %v2699 = vpack.c.b16 %v1933, %v1931
    %v2700 = vpack.c.b16 %v1936, %v1934
    %v2701 = vpack.c.b16 %v1937, %v1935
    %v2702 = vpack.c.b16 %v1940, %v1938
    %v2703 = vpack.c.b16 %v1941, %v1939
    %v2704 = vpack.c.b16 %v1944, %v1942
    %v2705 = vpack.c.b16 %v1945, %v1943
    %v2706 = vpack.c.b16 %v1948, %v1946
    %v2707 = vpack.c.b16 %v1949, %v1947
    %v2708 = vpack.c.b16 %v1952, %v1950
    %v2709 = vpack.c.b16 %v1953, %v1951
    %v2710 = vpack.c.b16 %v1956, %v1954
    %v2711 = vpack.c.b16 %v1957, %v1955
    %v2712 = vpack.c.b16 %v1960, %v1958
    %v2713 = vpack.c.b16 %v1961, %v1959
    %v2714 = vpack.c.b16 %v1964, %v1962
    %v2715 = vpack.c.b16 %v1965, %v1963
    %v2716 = vpack.c.b16 %v1968, %v1966
    %v2717 = vpack.c.b16 %v1969, %v1967
    %v2718 = vpack.c.b16 %v1972, %v1970
    %v2719 = vpack.c.b16 %v1973, %v1971
    %v2720 = vpack.c.b16 %v1976, %v1974
    %v2721 = vpack.c.b16 %v1977, %v1975
    %v2722 = vpack.c.b16 %v1980, %v1978
    %v2723 = vpack.c.b16 %v1981, %v1979
    %v2724 = vpack.c.b16 %v1984, %v1982
    %v2725 = vpack.c.b16 %v1985, %v1983
    %v2726 = vpack.c.b16 %v1988, %v1986
    %v2727 = vpack.c.b16 %v1989, %v1987
    %v2728 = vpack.c.b16 %v1992, %v1990
    %v2729 = vpack.c.b16 %v1993, %v1991
    %v2730 = vpack.c.b16 %v1996, %v1994
    %v2731 = vpack.c.b16 %v1997, %v1995
    %v2732 = vpack.c.b16 %v2000, %v1998
    %v2733 = vpack.c.b16 %v2001, %v1999
    %v2734 = vpack.c.b16 %v2004, %v2002
    %v2735 = vpack.c.b16 %v2005, %v2003
    %v2736 = vpack.c.b16 %v2008, %v2006
    %v2737 = vpack.c.b16 %v2009, %v2007
    %v2738 = vpack.c.b16 %v2012, %v2010
    %v2739 = vpack.c.b16 %v2013, %v2011
    %v2740 = vpack.c.b16 %v2016, %v2014
    %v2741 = vpack.c.b16 %v2017, %v2015
    %v2742 = vpack.c.b16 %v2020, %v2018
    %v2743 = vpack.c.b16 %v2021, %v2019
    %v2744 = vpack.c.b16 %v2024, %v2022
    %v2745 = vpack.c.b16 %v2025, %v2023
    %v2746 = vpack.c.b16 %v2028, %v2026
    %v2747 = vpack.c.b16 %v2029, %v2027
    %v2748 = vpack.c.b16 %v2032, %v2030
    %v2749 = vpack.c.b16 %v2033, %v2031
    %v2750 = vpack.c.b16 %v2036, %v2034
    %v2751 = vpack.c.b16 %v2037, %v2035
    %v2752 = vpack.c.b16 %v2040, %v2038
    %v2753 = vpack.c.b16 %v2041, %v2039
    %v2754 = vpack.c.b16 %v2044, %v2042
    %v2755 = vpack.c.b16 %v2045, %v2043
    %v2756 = vpack.c.b16 %v2048, %v2046
    %v2757 = vpack.c.b16 %v2049, %v2047
    %v2758 = vpack.c.b16 %v2052, %v2050
    %v2759 = vpack.c.b16 %v2053, %v2051
    %v2760 = vpack.c.b16 %v2056, %v2054
    %v2761 = vpack.c.b16 %v2057, %v2055
    %v2762 = vpack.c.b16 %v2060, %v2058
    %v2763 = vpack.c.b16 %v2061, %v2059
    %v2764 = vpack.c.b16 %v2064, %v2062
    %v2765 = vpack.c.b16 %v2065, %v2063
    %v2766 = vpack.c.b16 %v2068, %v2066
    %v2767 = vpack.c.b16 %v2069, %v2067
    %v2768 = vpack.c.b16 %v2072, %v2070
    %v2769 = vpack.c.b16 %v2073, %v2071
    %v2770 = vpack.c.b16 %v2076, %v2074
    %v2771 = vpack.c.b16 %v2077, %v2075
    %v2772 = vpack.c.b16 %v2080, %v2078
    %v2773 = vpack.c.b16 %v2081, %v2079
    %v2774 = vpack.c.b16 %v2084, %v2082
    %v2775 = vpack.c.b16 %v2085, %v2083
    %v2776 = vpack.c.b16 %v2088, %v2086
    %v2777 = vpack.c.b16 %v2089, %v2087
    %v2778 = vpack.c.b16 %v2092, %v2090
    %v2779 = vpack.c.b16 %v2093, %v2091
    %v2780 = vpack.c.b16 %v2096, %v2094
    %v2781 = vpack.c.b16 %v2097, %v2095
    %v2782 = vpack.c.b16 %v2100, %v2098
    %v2783 = vpack.c.b16 %v2101, %v2099
    %v2784 = vpack.c.b16 %v2104, %v2102
    %v2785 = vpack.c.b16 %v2105, %v2103
    %v2786 = vpack.c.b16 %v2108, %v2106
    %v2787 = vpack.c.b16 %v2109, %v2107
    %v2788 = vpack.c.b16 %v2112, %v2110
    %v2789 = vpack.c.b16 %v2113, %v2111
    %v2790 = vpack.c.b16 %v2116, %v2114
    %v2791 = vpack.c.b16 %v2117, %v2115
    %v2792 = vpack.c.b16 %v2120, %v2118
    %v2793 = vpack.c.b16 %v2121, %v2119
    %v2794 = vpack.c.b16 %v2124, %v2122
    %v2795 = vpack.c.b16 %v2125, %v2123
    %v2796 = vpack.c.b16 %v2128, %v2126
    %v2797 = vpack.c.b16 %v2129, %v2127
    %v2798 = vpack.c.b16 %v2132, %v2130
    %v2799 = vpack.c.b16 %v2133, %v2131
    %v2800 = vpack.c.b16 %v2136, %v2134
    %v2801 = vpack.c.b16 %v2137, %v2135
    %v2802 = vpack.c.b16 %v2140, %v2138
    %v2803 = vpack.c.b16 %v2141, %v2139
    %v2804 = vpack.c.b16 %v2144, %v2142
    %v2805 = vpack.c.b16 %v2145, %v2143
    %v2806 = vpack.c.b16 %v2148, %v2146
    %v2807 = vpack.c.b16 %v2149, %v2147
    %v2808 = vpack.c.b16 %v2152, %v2150
    %v2809 = vpack.c.b16 %v2153, %v2151
    %v2810 = vpack.c.b16 %v2156, %v2154
    %v2811 = vpack.c.b16 %v2157, %v2155
    %v2812 = vpack.c.b16 %v2160, %v2158
    %v2813 = vpack.c.b16 %v2161, %v2159
    %v2814 = vpack.c.b16 %v2164, %v2162
    %v2815 = vpack.c.b16 %v2165, %v2163
    %v2816 = vpack.c.b16 %v2168, %v2166
    %v2817 = vpack.c.b16 %v2169, %v2167
    %v2818 = vpack.c.b16 %v2172, %v2170
    %v2819 = vpack.c.b16 %v2173, %v2171
    %v2820 = vpack.c.b16 %v2176, %v2174
    %v2821 = vpack.c.b16 %v2177, %v2175
    %v2822 = vpack.c.b16 %v2180, %v2178
    %v2823 = vpack.c.b16 %v2181, %v2179
    %v2824 = vpack.c.b16 %v2184, %v2182
    %v2825 = vpack.c.b16 %v2185, %v2183
    %v2826 = vpack.c.b16 %v2188, %v2186
    %v2827 = vpack.c.b16 %v2189, %v2187
    %v2828 = vpack.c.b16 %v2192, %v2190
    %v2829 = vpack.c.b16 %v2193, %v2191
    %v2830 = vpack.c.b16 %v2196, %v2194
    %v2831 = vpack.c.b16 %v2197, %v2195
    %v2832 = vpack.c.b16 %v2200, %v2198
    %v2833 = vpack.c.b16 %v2201, %v2199
    %v2834 = vpack.c.b16 %v2204, %v2202
    %v2835 = vpack.c.b16 %v2205, %v2203
    %v2836 = vpack.c.b16 %v2208, %v2206
    %v2837 = vpack.c.b16 %v2209, %v2207
    %v2838 = vpack.c.b16 %v2212, %v2210
    %v2839 = vpack.c.b16 %v2213, %v2211
    %v2840 = vpack.c.b16 %v2216, %v2214
    %v2841 = vpack.c.b16 %v2217, %v2215
    %v2842 = vpack.c.b16 %v2220, %v2218
    %v2843 = vpack.c.b16 %v2221, %v2219
    %v2844 = vpack.c.b16 %v2224, %v2222
    %v2845 = vpack.c.b16 %v2225, %v2223
    %v2846 = vpack.c.b16 %v2228, %v2226
    %v2847 = vpack.c.b16 %v2229, %v2227
    %v2848 = vpack.c.b16 %v2232, %v2230
    %v2849 = vpack.c.b16 %v2233, %v2231
    %v2850 = vpack.c.b16 %v2236, %v2234
    %v2851 = vpack.c.b16 %v2237, %v2235
    %v2852 = vpack.c.b16 %v2240, %v2238
    %v2853 = vpack.c.b16 %v2241, %v2239
    %v2854 = vpack.c.b16 %v2244, %v2242
    %v2855 = vpack.c.b16 %v2245, %v2243
    %v2856 = vpack.c.b16 %v2248, %v2246
    %v2857 = vpack.c.b16 %v2249, %v2247
    %v2858 = vpack.c.b16 %v2252, %v2250
    %v2859 = vpack.c.b16 %v2253, %v2251
    %v2860 = vpack.c.b16 %v2256, %v2254
    %v2861 = vpack.c.b16 %v2257, %v2255
    %v2862 = vpack.c.b16 %v2260, %v2258
    %v2863 = vpack.c.b16 %v2261, %v2259
    %v2864 = vpack.c.b16 %v2264, %v2262
    %v2865 = vpack.c.b16 %v2265, %v2263
    %v2866 = vpack.c.b16 %v2268, %v2266
    %v2867 = vpack.c.b16 %v2269, %v2267
    %v2868 = vpack.c.b16 %v2272, %v2270
    %v2869 = vpack.c.b16 %v2273, %v2271
    %v2870 = vpack.c.b16 %v2276, %v2274
    %v2871 = vpack.c.b16 %v2277, %v2275
    %v2872 = vpack.c.b16 %v2280, %v2278
    %v2873 = vpack.c.b16 %v2281, %v2279
    %v2874 = vpack.c.b16 %v2284, %v2282
    %v2875 = vpack.c.b16 %v2285, %v2283
    %v2876 = vpack.c.b16 %v2288, %v2286
    %v2877 = vpack.c.b16 %v2289, %v2287
    %v2878 = vpack.c.b16 %v2292, %v2290
    %v2879 = vpack.c.b16 %v2293, %v2291
    %v2880 = vpack.c.b16 %v2296, %v2294
    %v2881 = vpack.c.b16 %v2297, %v2295
    %v2882 = vpack.c.b16 %v2300, %v2298
    %v2883 = vpack.c.b16 %v2301, %v2299
    %v2884 = vpack.c.b16 %v2304, %v2302
    %v2885 = vpack.c.b16 %v2305, %v2303
    %v2886 = vpack.c.b16 %v2308, %v2306
    %v2887 = vpack.c.b16 %v2309, %v2307
    %v2888 = vpack.c.b16 %v2312, %v2310
    %v2889 = vpack.c.b16 %v2313, %v2311
    %v2890 = vpack.c.b16 %v2316, %v2314
    %v2891 = vpack.c.b16 %v2317, %v2315
    %v2892 = vpack.c.b16 %v2320, %v2318
    %v2893 = vpack.c.b16 %v2321, %v2319
    %v2894 = vpack.c.b16 %v2324, %v2322
    %v2895 = vpack.c.b16 %v2325, %v2323
    %v2896 = vpack.c.b16 %v2328, %v2326
    %v2897 = vpack.c.b16 %v2329, %v2327
    %v2898 = vpack.c.b16 %v2332, %v2330
    %v2899 = vpack.c.b16 %v2333, %v2331
    %v2900 = vpack.c.b16 %v2336, %v2334
    %v2901 = vpack.c.b16 %v2337, %v2335
    %v2902 = vpack.c.b16 %v2340, %v2338
    %v2903 = vpack.c.b16 %v2341, %v2339
    %v2904 = vpack.c.b16 %v2344, %v2342
    %v2905 = vpack.c.b16 %v2345, %v2343
    %v2906 = vpack.c.b16 %v2348, %v2346
    %v2907 = vpack.c.b16 %v2349, %v2347
    %v2908 = vpack.c.b16 %v2352, %v2350
    %v2909 = vpack.c.b16 %v2353, %v2351
    %v2910 = vpack.c.b16 %v2356, %v2354
    %v2911 = vpack.c.b16 %v2357, %v2355
    %v2912 = vpack.c.b16 %v2360, %v2358
    %v2913 = vpack.c.b16 %v2361, %v2359
    %v2914 = vpack.c.b16 %v2364, %v2362
    %v2915 = vpack.c.b16 %v2365, %v2363
    %v2916 = vpack.c.b16 %v2368, %v2366
    %v2917 = vpack.c.b16 %v2369, %v2367
    %v2918 = vpack.c.b16 %v2372, %v2370
    %v2919 = vpack.c.b16 %v2373, %v2371
    %v2920 = vpack.c.b16 %v2376, %v2374
    %v2921 = vpack.c.b16 %v2377, %v2375
    %v2922 = vpack.c.b16 %v2380, %v2378
    %v2923 = vpack.c.b16 %v2381, %v2379
    %v2924 = vpack.c.b16 %v2384, %v2382
    %v2925 = vpack.c.b16 %v2385, %v2383
    %v2926 = vpack.c.b16 %v2388, %v2386
    %v2927 = vpack.c.b16 %v2389, %v2387
    %v2928 = vpack.c.b16 %v2392, %v2390
    %v2929 = vpack.c.b16 %v2393, %v2391
    %v2930 = vpack.c.b16 %v2396, %v2394
    %v2931 = vpack.c.b16 %v2397, %v2395
    %v2932 = vpack.c.b16 %v2400, %v2398
    %v2933 = vpack.c.b16 %v2401, %v2399
    %v2934 = vpack.c.b16 %v2404, %v2402
    %v2935 = vpack.c.b16 %v2405, %v2403
    %v2936 = vpack.c.b16 %v2408, %v2406
    %v2937 = vpack.c.b16 %v2409, %v2407
    %v2938 = vpack.c.b16 %v2412, %v2410
    %v2939 = vpack.c.b16 %v2413, %v2411
    %v2940 = vpack.c.b16 %v2416, %v2414
    %v2941 = vpack.c.b16 %v2417, %v2415
    %v2942 = vpack.c.b16 %v2420, %v2418
    %v2943 = vpack.c.b16 %v2421, %v2419
    %v2944 = vpack.c.b16 %v2424, %v2422
    %v2945 = vpack.c.b16 %v2425, %v2423
    %v2946 = vpack.c.b16 %v2428, %v2426
    %v2947 = vpack.c.b16 %v2429, %v2427
    %v2948 = vpack.c.b16 %v2432, %v2430
    %v2949 = vpack.c.b16 %v2433, %v2431
    %v2950 = vpack.c.b16 %v2436, %v2434
    %v2951 = vpack.c.b16 %v2437, %v2435
    %v2952 = vpack.c.b16 %v2440, %v2438
    %v2953 = vpack.c.b16 %v2441, %v2439
    %3466 = vmatprep.subr.bf16.mxu0 %v2443
    %3467 = vmatpush1.bf16.msra.mxu0 %v2442
    %3468 = vmatprep.subr.bf16.mxu0 %v2445
    %3469 = vmatpush1.bf16.msra.mxu0 %v2444
    %3470 = vmatprep.subr.bf16.mxu0 %v2447
    %3471 = vmatpush1.bf16.msra.mxu0 %v2446
    %3472 = vmatprep.subr.bf16.mxu0 %v2449
    %3473 = vmatpush1.bf16.msra.mxu0 %v2448
    %3474 = vmatprep.subr.bf16.mxu0 %v2451
    %3475 = vmatpush1.bf16.msra.mxu0 %v2450
    %3476 = vmatprep.subr.bf16.mxu0 %v2453
    %3477 = vmatpush1.bf16.msra.mxu0 %v2452
    %3478 = vmatprep.subr.bf16.mxu0 %v2455
    %3479 = vmatpush1.bf16.msra.mxu0 %v2454
    %3480 = vmatprep.subr.bf16.mxu0 %v2457
    %3481 = vmatpush1.bf16.msra.mxu0 %v2456
    %3482 = vmatprep.subr.bf16.mxu0 %v2459
    %3483 = vmatpush1.bf16.msra.mxu0 %v2458
    %3484 = vmatprep.subr.bf16.mxu0 %v2461
    %3485 = vmatpush1.bf16.msra.mxu0 %v2460
    %3486 = vmatprep.subr.bf16.mxu0 %v2463
    %3487 = vmatpush1.bf16.msra.mxu0 %v2462
    %3488 = vmatprep.subr.bf16.mxu0 %v2465
    %3489 = vmatpush1.bf16.msra.mxu0 %v2464
    %3490 = vmatprep.subr.bf16.mxu0 %v2467
    %3491 = vmatpush1.bf16.msra.mxu0 %v2466
    %3492 = vmatprep.subr.bf16.mxu0 %v2469
    %3493 = vmatpush1.bf16.msra.mxu0 %v2468
    %3494 = vmatprep.subr.bf16.mxu0 %v2471
    %3495 = vmatpush1.bf16.msra.mxu0 %v2470
    %3496 = vmatprep.subr.bf16.mxu0 %v2473
    %3497 = vmatpush1.bf16.msra.mxu0 %v2472
    %3498 = vmatprep.mubr.bf16.mxu0 %v715
    %3499 = vmatmul.mubr.bf16.gmra.mrb[0].mxu0 %v701
    %v3500 = vpop.f32.mrb[0].mxu0
    %v3501 = vadd.f32 %v667, %v3500
    %v3502 = vpop.f32.mrb[0].mxu0
    %v3503 = vadd.f32 %v671, %v3502
    %v3504 = vpop.f32.mrb[0].mxu0
    %v3505 = vpop.f32.mrb[0].mxu0
    %3506 = vdwg.mxu0
    %3507 = vmatprep.subr.bf16.mxu0 %v2475
    %3508 = vmatpush1.bf16.msra.mxu0 %v2474
    %3509 = vmatprep.subr.bf16.mxu0 %v2477
    %3510 = vmatpush1.bf16.msra.mxu0 %v2476
    %3511 = vmatprep.subr.bf16.mxu0 %v2479
    %3512 = vmatpush1.bf16.msra.mxu0 %v2478
    %3513 = vmatprep.subr.bf16.mxu0 %v2481
    %3514 = vmatpush1.bf16.msra.mxu0 %v2480
    %3515 = vmatprep.subr.bf16.mxu0 %v2483
    %3516 = vmatpush1.bf16.msra.mxu0 %v2482
    %3517 = vmatprep.subr.bf16.mxu0 %v2485
    %3518 = vmatpush1.bf16.msra.mxu0 %v2484
    %3519 = vmatprep.subr.bf16.mxu0 %v2487
    %3520 = vmatpush1.bf16.msra.mxu0 %v2486
    %3521 = vmatprep.subr.bf16.mxu0 %v2489
    %3522 = vmatpush1.bf16.msra.mxu0 %v2488
    %3523 = vmatprep.subr.bf16.mxu0 %v2491
    %3524 = vmatpush1.bf16.msra.mxu0 %v2490
    %3525 = vmatprep.subr.bf16.mxu0 %v2493
    %3526 = vmatpush1.bf16.msra.mxu0 %v2492
    %3527 = vmatprep.subr.bf16.mxu0 %v2495
    %3528 = vmatpush1.bf16.msra.mxu0 %v2494
    %3529 = vmatprep.subr.bf16.mxu0 %v2497
    %3530 = vmatpush1.bf16.msra.mxu0 %v2496
    %3531 = vmatprep.subr.bf16.mxu0 %v2499
    %3532 = vmatpush1.bf16.msra.mxu0 %v2498
    %3533 = vmatprep.subr.bf16.mxu0 %v2501
    %3534 = vmatpush1.bf16.msra.mxu0 %v2500
    %3535 = vmatprep.subr.bf16.mxu0 %v2503
    %3536 = vmatpush1.bf16.msra.mxu0 %v2502
    %3537 = vmatprep.subr.bf16.mxu0 %v2505
    %3538 = vmatpush1.bf16.msra.mxu0 %v2504
    %3539 = vmatprep.mubr.bf16.mxu0 %v725
    %3540 = vmatmul.mubr.bf16.gmra.mrb[0].mxu0 %v723
    %v3541 = vpop.f32.mrb[0].mxu0
    %v3542 = vadd.f32 %v3501, %v3541
    %v3543 = vpop.f32.mrb[0].mxu0
    %v3544 = vadd.f32 %v3503, %v3543
    %v3545 = vpop.f32.mrb[0].mxu0
    %v3546 = vpop.f32.mrb[0].mxu0
    %3547 = vdwg.mxu0
    %3548 = vmatprep.subr.bf16.mxu0 %v2507
    %3549 = vmatpush1.bf16.msra.mxu0 %v2506
    %3550 = vmatprep.subr.bf16.mxu0 %v2509
    %3551 = vmatpush1.bf16.msra.mxu0 %v2508
    %3552 = vmatprep.subr.bf16.mxu0 %v2511
    %3553 = vmatpush1.bf16.msra.mxu0 %v2510
    %3554 = vmatprep.subr.bf16.mxu0 %v2513
    %3555 = vmatpush1.bf16.msra.mxu0 %v2512
    %3556 = vmatprep.subr.bf16.mxu0 %v2515
    %3557 = vmatpush1.bf16.msra.mxu0 %v2514
    %3558 = vmatprep.subr.bf16.mxu0 %v2517
    %3559 = vmatpush1.bf16.msra.mxu0 %v2516
    %3560 = vmatprep.subr.bf16.mxu0 %v2519
    %3561 = vmatpush1.bf16.msra.mxu0 %v2518
    %3562 = vmatprep.subr.bf16.mxu0 %v2521
    %3563 = vmatpush1.bf16.msra.mxu0 %v2520
    %3564 = vmatprep.subr.bf16.mxu0 %v2523
    %3565 = vmatpush1.bf16.msra.mxu0 %v2522
    %3566 = vmatprep.subr.bf16.mxu0 %v2525
    %3567 = vmatpush1.bf16.msra.mxu0 %v2524
    %3568 = vmatprep.subr.bf16.mxu0 %v2527
    %3569 = vmatpush1.bf16.msra.mxu0 %v2526
    %3570 = vmatprep.subr.bf16.mxu0 %v2529
    %3571 = vmatpush1.bf16.msra.mxu0 %v2528
    %3572 = vmatprep.subr.bf16.mxu0 %v2531
    %3573 = vmatpush1.bf16.msra.mxu0 %v2530
    %3574 = vmatprep.subr.bf16.mxu0 %v2533
    %3575 = vmatpush1.bf16.msra.mxu0 %v2532
    %3576 = vmatprep.subr.bf16.mxu0 %v2535
    %3577 = vmatpush1.bf16.msra.mxu0 %v2534
    %3578 = vmatprep.subr.bf16.mxu0 %v2537
    %3579 = vmatpush1.bf16.msra.mxu0 %v2536
    %3580 = vmatprep.mubr.bf16.mxu0 %v722
    %3581 = vmatmul.mubr.bf16.gmra.mrb[0].mxu0 %v708
    %v3582 = vpop.f32.mrb[0].mxu0
    %v3583 = vadd.f32 %v3542, %v3582
    %v3584 = vpop.f32.mrb[0].mxu0
    %v3585 = vadd.f32 %v3544, %v3584
    %v3586 = vpop.f32.mrb[0].mxu0
    %v3587 = vpop.f32.mrb[0].mxu0
    %3588 = vdwg.mxu0
    %3589 = vmatprep.subr.bf16.mxu0 %v2539
    %3590 = vmatpush1.bf16.msra.mxu0 %v2538
    %3591 = vmatprep.subr.bf16.mxu0 %v2541
    %3592 = vmatpush1.bf16.msra.mxu0 %v2540
    %3593 = vmatprep.subr.bf16.mxu0 %v2543
    %3594 = vmatpush1.bf16.msra.mxu0 %v2542
    %3595 = vmatprep.subr.bf16.mxu0 %v2545
    %3596 = vmatpush1.bf16.msra.mxu0 %v2544
    %3597 = vmatprep.subr.bf16.mxu0 %v2547
    %3598 = vmatpush1.bf16.msra.mxu0 %v2546
    %3599 = vmatprep.subr.bf16.mxu0 %v2549
    %3600 = vmatpush1.bf16.msra.mxu0 %v2548
    %3601 = vmatprep.subr.bf16.mxu0 %v2551
    %3602 = vmatpush1.bf16.msra.mxu0 %v2550
    %3603 = vmatprep.subr.bf16.mxu0 %v2553
    %3604 = vmatpush1.bf16.msra.mxu0 %v2552
    %3605 = vmatprep.subr.bf16.mxu0 %v2555
    %3606 = vmatpush1.bf16.msra.mxu0 %v2554
    %3607 = vmatprep.subr.bf16.mxu0 %v2557
    %3608 = vmatpush1.bf16.msra.mxu0 %v2556
    %3609 = vmatprep.subr.bf16.mxu0 %v2559
    %3610 = vmatpush1.bf16.msra.mxu0 %v2558
    %3611 = vmatprep.subr.bf16.mxu0 %v2561
    %3612 = vmatpush1.bf16.msra.mxu0 %v2560
    %3613 = vmatprep.subr.bf16.mxu0 %v2563
    %3614 = vmatpush1.bf16.msra.mxu0 %v2562
    %3615 = vmatprep.subr.bf16.mxu0 %v2565
    %3616 = vmatpush1.bf16.msra.mxu0 %v2564
    %3617 = vmatprep.subr.bf16.mxu0 %v2567
    %3618 = vmatpush1.bf16.msra.mxu0 %v2566
    %3619 = vmatprep.subr.bf16.mxu0 %v2569
    %3620 = vmatpush1.bf16.msra.mxu0 %v2568
    %3621 = vmatprep.mubr.bf16.mxu0 %v726
    %3622 = vmatmul.mubr.bf16.gmra.mrb[0].mxu0 %v724
    %v3623 = vpop.f32.mrb[0].mxu0
    %v3624 = vadd.f32 %v3583, %v3623
    %v3625 = vpop.f32.mrb[0].mxu0
    %v3626 = vadd.f32 %v3585, %v3625
    %v3627 = vpop.f32.mrb[0].mxu0
    %v3628 = vpop.f32.mrb[0].mxu0
    %3629 = vdwg.mxu0
    %3630 = vmatprep.subr.bf16.mxu0 %v2571
    %3631 = vmatpush1.bf16.msra.mxu0 %v2570
    %3632 = vmatprep.subr.bf16.mxu0 %v2573
    %3633 = vmatpush1.bf16.msra.mxu0 %v2572
    %3634 = vmatprep.subr.bf16.mxu0 %v2575
    %3635 = vmatpush1.bf16.msra.mxu0 %v2574
    %3636 = vmatprep.subr.bf16.mxu0 %v2577
    %3637 = vmatpush1.bf16.msra.mxu0 %v2576
    %3638 = vmatprep.subr.bf16.mxu0 %v2579
    %3639 = vmatpush1.bf16.msra.mxu0 %v2578
    %3640 = vmatprep.subr.bf16.mxu0 %v2581
    %3641 = vmatpush1.bf16.msra.mxu0 %v2580
    %3642 = vmatprep.subr.bf16.mxu0 %v2583
    %3643 = vmatpush1.bf16.msra.mxu0 %v2582
    %3644 = vmatprep.subr.bf16.mxu0 %v2585
    %3645 = vmatpush1.bf16.msra.mxu0 %v2584
    %3646 = vmatprep.subr.bf16.mxu0 %v2587
    %3647 = vmatpush1.bf16.msra.mxu0 %v2586
    %3648 = vmatprep.subr.bf16.mxu0 %v2589
    %3649 = vmatpush1.bf16.msra.mxu0 %v2588
    %3650 = vmatprep.subr.bf16.mxu0 %v2591
    %3651 = vmatpush1.bf16.msra.mxu0 %v2590
    %3652 = vmatprep.subr.bf16.mxu0 %v2593
    %3653 = vmatpush1.bf16.msra.mxu0 %v2592
    %3654 = vmatprep.subr.bf16.mxu0 %v2595
    %3655 = vmatpush1.bf16.msra.mxu0 %v2594
    %3656 = vmatprep.subr.bf16.mxu0 %v2597
    %3657 = vmatpush1.bf16.msra.mxu0 %v2596
    %3658 = vmatprep.subr.bf16.mxu0 %v2599
    %3659 = vmatpush1.bf16.msra.mxu0 %v2598
    %3660 = vmatprep.subr.bf16.mxu0 %v2601
    %3661 = vmatpush1.bf16.msra.mxu0 %v2600
    %3662 = vmatprep.mubr.bf16.mxu0 %v764
    %3663 = vmatmul.mubr.bf16.gmra.mrb[0].mxu0 %v750
    %v3664 = vpop.f32.mrb[0].mxu0
    %v3665 = vadd.f32 %v3624, %v3664
    %v3666 = vpop.f32.mrb[0].mxu0
    %v3667 = vadd.f32 %v3626, %v3666
    %v3668 = vpop.f32.mrb[0].mxu0
    %v3669 = vpop.f32.mrb[0].mxu0
    %3670 = vdwg.mxu0
    %3671 = vmatprep.subr.bf16.mxu0 %v2603
    %3672 = vmatpush1.bf16.msra.mxu0 %v2602
    %3673 = vmatprep.subr.bf16.mxu0 %v2605
    %3674 = vmatpush1.bf16.msra.mxu0 %v2604
    %3675 = vmatprep.subr.bf16.mxu0 %v2607
    %3676 = vmatpush1.bf16.msra.mxu0 %v2606
    %3677 = vmatprep.subr.bf16.mxu0 %v2609
    %3678 = vmatpush1.bf16.msra.mxu0 %v2608
    %3679 = vmatprep.subr.bf16.mxu0 %v2611
    %3680 = vmatpush1.bf16.msra.mxu0 %v2610
    %3681 = vmatprep.subr.bf16.mxu0 %v2613
    %3682 = vmatpush1.bf16.msra.mxu0 %v2612
    %3683 = vmatprep.subr.bf16.mxu0 %v2615
    %3684 = vmatpush1.bf16.msra.mxu0 %v2614
    %3685 = vmatprep.subr.bf16.mxu0 %v2617
    %3686 = vmatpush1.bf16.msra.mxu0 %v2616
    %3687 = vmatprep.subr.bf16.mxu0 %v2619
    %3688 = vmatpush1.bf16.msra.mxu0 %v2618
    %3689 = vmatprep.subr.bf16.mxu0 %v2621
    %3690 = vmatpush1.bf16.msra.mxu0 %v2620
    %3691 = vmatprep.subr.bf16.mxu0 %v2623
    %3692 = vmatpush1.bf16.msra.mxu0 %v2622
    %3693 = vmatprep.subr.bf16.mxu0 %v2625
    %3694 = vmatpush1.bf16.msra.mxu0 %v2624
    %3695 = vmatprep.subr.bf16.mxu0 %v2627
    %3696 = vmatpush1.bf16.msra.mxu0 %v2626
    %3697 = vmatprep.subr.bf16.mxu0 %v2629
    %3698 = vmatpush1.bf16.msra.mxu0 %v2628
    %3699 = vmatprep.subr.bf16.mxu0 %v2631
    %3700 = vmatpush1.bf16.msra.mxu0 %v2630
    %3701 = vmatprep.subr.bf16.mxu0 %v2633
    %3702 = vmatpush1.bf16.msra.mxu0 %v2632
    %3703 = vmatprep.mubr.bf16.mxu0 %v774
    %3704 = vmatmul.mubr.bf16.gmra.mrb[0].mxu0 %v772
    %v3705 = vpop.f32.mrb[0].mxu0
    %v3706 = vadd.f32 %v3665, %v3705
    %v3707 = vpop.f32.mrb[0].mxu0
    %v3708 = vadd.f32 %v3667, %v3707
    %v3709 = vpop.f32.mrb[0].mxu0
    %v3710 = vpop.f32.mrb[0].mxu0
    %3711 = vdwg.mxu0
    %3712 = vmatprep.subr.bf16.mxu0 %v2635
    %3713 = vmatpush1.bf16.msra.mxu0 %v2634
    %3714 = vmatprep.subr.bf16.mxu0 %v2637
    %3715 = vmatpush1.bf16.msra.mxu0 %v2636
    %3716 = vmatprep.subr.bf16.mxu0 %v2639
    %3717 = vmatpush1.bf16.msra.mxu0 %v2638
    %3718 = vmatprep.subr.bf16.mxu0 %v2641
    %3719 = vmatpush1.bf16.msra.mxu0 %v2640
    %3720 = vmatprep.subr.bf16.mxu0 %v2643
    %3721 = vmatpush1.bf16.msra.mxu0 %v2642
    %3722 = vmatprep.subr.bf16.mxu0 %v2645
    %3723 = vmatpush1.bf16.msra.mxu0 %v2644
    %3724 = vmatprep.subr.bf16.mxu0 %v2647
    %3725 = vmatpush1.bf16.msra.mxu0 %v2646
    %3726 = vmatprep.subr.bf16.mxu0 %v2649
    %3727 = vmatpush1.bf16.msra.mxu0 %v2648
    %3728 = vmatprep.subr.bf16.mxu0 %v2651
    %3729 = vmatpush1.bf16.msra.mxu0 %v2650
    %3730 = vmatprep.subr.bf16.mxu0 %v2653
    %3731 = vmatpush1.bf16.msra.mxu0 %v2652
    %3732 = vmatprep.subr.bf16.mxu0 %v2655
    %3733 = vmatpush1.bf16.msra.mxu0 %v2654
    %3734 = vmatprep.subr.bf16.mxu0 %v2657
    %3735 = vmatpush1.bf16.msra.mxu0 %v2656
    %3736 = vmatprep.subr.bf16.mxu0 %v2659
    %3737 = vmatpush1.bf16.msra.mxu0 %v2658
    %3738 = vmatprep.subr.bf16.mxu0 %v2661
    %3739 = vmatpush1.bf16.msra.mxu0 %v2660
    %3740 = vmatprep.subr.bf16.mxu0 %v2663
    %3741 = vmatpush1.bf16.msra.mxu0 %v2662
    %3742 = vmatprep.subr.bf16.mxu0 %v2665
    %3743 = vmatpush1.bf16.msra.mxu0 %v2664
    %3744 = vmatprep.mubr.bf16.mxu0 %v771
    %3745 = vmatmul.mubr.bf16.gmra.mrb[0].mxu0 %v757
    %v3746 = vpop.f32.mrb[0].mxu0
    %v3747 = vadd.f32 %v3706, %v3746
    %v3748 = vpop.f32.mrb[0].mxu0
    %v3749 = vadd.f32 %v3708, %v3748
    %v3750 = vpop.f32.mrb[0].mxu0
    %v3751 = vpop.f32.mrb[0].mxu0
    %3752 = vdwg.mxu0
    %3753 = vmatprep.subr.bf16.mxu0 %v2667
    %3754 = vmatpush1.bf16.msra.mxu0 %v2666
    %3755 = vmatprep.subr.bf16.mxu0 %v2669
    %3756 = vmatpush1.bf16.msra.mxu0 %v2668
    %3757 = vmatprep.subr.bf16.mxu0 %v2671
    %3758 = vmatpush1.bf16.msra.mxu0 %v2670
    %3759 = vmatprep.subr.bf16.mxu0 %v2673
    %3760 = vmatpush1.bf16.msra.mxu0 %v2672
    %3761 = vmatprep.subr.bf16.mxu0 %v2675
    %3762 = vmatpush1.bf16.msra.mxu0 %v2674
    %3763 = vmatprep.subr.bf16.mxu0 %v2677
    %3764 = vmatpush1.bf16.msra.mxu0 %v2676
    %3765 = vmatprep.subr.bf16.mxu0 %v2679
    %3766 = vmatpush1.bf16.msra.mxu0 %v2678
    %3767 = vmatprep.subr.bf16.mxu0 %v2681
    %3768 = vmatpush1.bf16.msra.mxu0 %v2680
    %3769 = vmatprep.subr.bf16.mxu0 %v2683
    %3770 = vmatpush1.bf16.msra.mxu0 %v2682
    %3771 = vmatprep.subr.bf16.mxu0 %v2685
    %3772 = vmatpush1.bf16.msra.mxu0 %v2684
    %3773 = vmatprep.subr.bf16.mxu0 %v2687
    %3774 = vmatpush1.bf16.msra.mxu0 %v2686
    %3775 = vmatprep.subr.bf16.mxu0 %v2689
    %3776 = vmatpush1.bf16.msra.mxu0 %v2688
    %3777 = vmatprep.subr.bf16.mxu0 %v2691
    %3778 = vmatpush1.bf16.msra.mxu0 %v2690
    %3779 = vmatprep.subr.bf16.mxu0 %v2693
    %3780 = vmatpush1.bf16.msra.mxu0 %v2692
    %3781 = vmatprep.subr.bf16.mxu0 %v2695
    %3782 = vmatpush1.bf16.msra.mxu0 %v2694
    %3783 = vmatprep.subr.bf16.mxu0 %v2697
    %3784 = vmatpush1.bf16.msra.mxu0 %v2696
    %3785 = vmatprep.mubr.bf16.mxu0 %v775
    %3786 = vmatmul.mubr.bf16.gmra.mrb[0].mxu0 %v773
    %v3787 = vpop.f32.mrb[0].mxu0
    %v3788 = vadd.f32 %v3747, %v3787
    %v3789 = vpop.f32.mrb[0].mxu0
    %v3790 = vadd.f32 %v3749, %v3789
    %v3791 = vpop.f32.mrb[0].mxu0
    %v3792 = vpop.f32.mrb[0].mxu0
    %3793 = vdwg.mxu0
    %3794 = vmatprep.subr.bf16.mxu0 %v2699
    %3795 = vmatpush1.bf16.msra.mxu0 %v2698
    %3796 = vmatprep.subr.bf16.mxu0 %v2701
    %3797 = vmatpush1.bf16.msra.mxu0 %v2700
    %3798 = vmatprep.subr.bf16.mxu0 %v2703
    %3799 = vmatpush1.bf16.msra.mxu0 %v2702
    %3800 = vmatprep.subr.bf16.mxu0 %v2705
    %3801 = vmatpush1.bf16.msra.mxu0 %v2704
    %3802 = vmatprep.subr.bf16.mxu0 %v2707
    %3803 = vmatpush1.bf16.msra.mxu0 %v2706
    %3804 = vmatprep.subr.bf16.mxu0 %v2709
    %3805 = vmatpush1.bf16.msra.mxu0 %v2708
    %3806 = vmatprep.subr.bf16.mxu0 %v2711
    %3807 = vmatpush1.bf16.msra.mxu0 %v2710
    %3808 = vmatprep.subr.bf16.mxu0 %v2713
    %3809 = vmatpush1.bf16.msra.mxu0 %v2712
    %3810 = vmatprep.subr.bf16.mxu0 %v2715
    %3811 = vmatpush1.bf16.msra.mxu0 %v2714
    %3812 = vmatprep.subr.bf16.mxu0 %v2717
    %3813 = vmatpush1.bf16.msra.mxu0 %v2716
    %3814 = vmatprep.subr.bf16.mxu0 %v2719
    %3815 = vmatpush1.bf16.msra.mxu0 %v2718
    %3816 = vmatprep.subr.bf16.mxu0 %v2721
    %3817 = vmatpush1.bf16.msra.mxu0 %v2720
    %3818 = vmatprep.subr.bf16.mxu0 %v2723
    %3819 = vmatpush1.bf16.msra.mxu0 %v2722
    %3820 = vmatprep.subr.bf16.mxu0 %v2725
    %3821 = vmatpush1.bf16.msra.mxu0 %v2724
    %3822 = vmatprep.subr.bf16.mxu0 %v2727
    %3823 = vmatpush1.bf16.msra.mxu0 %v2726
    %3824 = vmatprep.subr.bf16.mxu0 %v2729
    %3825 = vmatpush1.bf16.msra.mxu0 %v2728
    %3826 = vmatprep.mubr.bf16.mxu0 %v813
    %3827 = vmatmul.mubr.bf16.gmra.mrb[0].mxu0 %v799
    %v3828 = vpop.f32.mrb[0].mxu0
    %v3829 = vadd.f32 %v3788, %v3828
    %v3830 = vpop.f32.mrb[0].mxu0
    %v3831 = vadd.f32 %v3790, %v3830
    %v3832 = vpop.f32.mrb[0].mxu0
    %v3833 = vpop.f32.mrb[0].mxu0
    %3834 = vdwg.mxu0
    %3835 = vmatprep.subr.bf16.mxu0 %v2731
    %3836 = vmatpush1.bf16.msra.mxu0 %v2730
    %3837 = vmatprep.subr.bf16.mxu0 %v2733
    %3838 = vmatpush1.bf16.msra.mxu0 %v2732
    %3839 = vmatprep.subr.bf16.mxu0 %v2735
    %3840 = vmatpush1.bf16.msra.mxu0 %v2734
    %3841 = vmatprep.subr.bf16.mxu0 %v2737
    %3842 = vmatpush1.bf16.msra.mxu0 %v2736
    %3843 = vmatprep.subr.bf16.mxu0 %v2739
    %3844 = vmatpush1.bf16.msra.mxu0 %v2738
    %3845 = vmatprep.subr.bf16.mxu0 %v2741
    %3846 = vmatpush1.bf16.msra.mxu0 %v2740
    %3847 = vmatprep.subr.bf16.mxu0 %v2743
    %3848 = vmatpush1.bf16.msra.mxu0 %v2742
    %3849 = vmatprep.subr.bf16.mxu0 %v2745
    %3850 = vmatpush1.bf16.msra.mxu0 %v2744
    %3851 = vmatprep.subr.bf16.mxu0 %v2747
    %3852 = vmatpush1.bf16.msra.mxu0 %v2746
    %3853 = vmatprep.subr.bf16.mxu0 %v2749
    %3854 = vmatpush1.bf16.msra.mxu0 %v2748
    %3855 = vmatprep.subr.bf16.mxu0 %v2751
    %3856 = vmatpush1.bf16.msra.mxu0 %v2750
    %3857 = vmatprep.subr.bf16.mxu0 %v2753
    %3858 = vmatpush1.bf16.msra.mxu0 %v2752
    %3859 = vmatprep.subr.bf16.mxu0 %v2755
    %3860 = vmatpush1.bf16.msra.mxu0 %v2754
    %3861 = vmatprep.subr.bf16.mxu0 %v2757
    %3862 = vmatpush1.bf16.msra.mxu0 %v2756
    %3863 = vmatprep.subr.bf16.mxu0 %v2759
    %3864 = vmatpush1.bf16.msra.mxu0 %v2758
    %3865 = vmatprep.subr.bf16.mxu0 %v2761
    %3866 = vmatpush1.bf16.msra.mxu0 %v2760
    %3867 = vmatprep.mubr.bf16.mxu0 %v823
    %3868 = vmatmul.mubr.bf16.gmra.mrb[0].mxu0 %v821
    %v3869 = vpop.f32.mrb[0].mxu0
    %v3870 = vadd.f32 %v3829, %v3869
    %v3871 = vpop.f32.mrb[0].mxu0
    %v3872 = vadd.f32 %v3831, %v3871
    %v3873 = vpop.f32.mrb[0].mxu0
    %v3874 = vpop.f32.mrb[0].mxu0
    %3875 = vdwg.mxu0
    %3876 = vmatprep.subr.bf16.mxu0 %v2763
    %3877 = vmatpush1.bf16.msra.mxu0 %v2762
    %3878 = vmatprep.subr.bf16.mxu0 %v2765
    %3879 = vmatpush1.bf16.msra.mxu0 %v2764
    %3880 = vmatprep.subr.bf16.mxu0 %v2767
    %3881 = vmatpush1.bf16.msra.mxu0 %v2766
    %3882 = vmatprep.subr.bf16.mxu0 %v2769
    %3883 = vmatpush1.bf16.msra.mxu0 %v2768
    %3884 = vmatprep.subr.bf16.mxu0 %v2771
    %3885 = vmatpush1.bf16.msra.mxu0 %v2770
    %3886 = vmatprep.subr.bf16.mxu0 %v2773
    %3887 = vmatpush1.bf16.msra.mxu0 %v2772
    %3888 = vmatprep.subr.bf16.mxu0 %v2775
    %3889 = vmatpush1.bf16.msra.mxu0 %v2774
    %3890 = vmatprep.subr.bf16.mxu0 %v2777
    %3891 = vmatpush1.bf16.msra.mxu0 %v2776
    %3892 = vmatprep.subr.bf16.mxu0 %v2779
    %3893 = vmatpush1.bf16.msra.mxu0 %v2778
    %3894 = vmatprep.subr.bf16.mxu0 %v2781
    %3895 = vmatpush1.bf16.msra.mxu0 %v2780
    %3896 = vmatprep.subr.bf16.mxu0 %v2783
    %3897 = vmatpush1.bf16.msra.mxu0 %v2782
    %3898 = vmatprep.subr.bf16.mxu0 %v2785
    %3899 = vmatpush1.bf16.msra.mxu0 %v2784
    %3900 = vmatprep.subr.bf16.mxu0 %v2787
    %3901 = vmatpush1.bf16.msra.mxu0 %v2786
    %3902 = vmatprep.subr.bf16.mxu0 %v2789
    %3903 = vmatpush1.bf16.msra.mxu0 %v2788
    %3904 = vmatprep.subr.bf16.mxu0 %v2791
    %3905 = vmatpush1.bf16.msra.mxu0 %v2790
    %3906 = vmatprep.subr.bf16.mxu0 %v2793
    %3907 = vmatpush1.bf16.msra.mxu0 %v2792
    %3908 = vmatprep.mubr.bf16.mxu0 %v820
    %3909 = vmatmul.mubr.bf16.gmra.mrb[0].mxu0 %v806
    %v3910 = vpop.f32.mrb[0].mxu0
    %v3911 = vadd.f32 %v3870, %v3910
    %v3912 = vpop.f32.mrb[0].mxu0
    %v3913 = vadd.f32 %v3872, %v3912
    %v3914 = vpop.f32.mrb[0].mxu0
    %v3915 = vpop.f32.mrb[0].mxu0
    %3916 = vdwg.mxu0
    %3917 = vmatprep.subr.bf16.mxu0 %v2795
    %3918 = vmatpush1.bf16.msra.mxu0 %v2794
    %3919 = vmatprep.subr.bf16.mxu0 %v2797
    %3920 = vmatpush1.bf16.msra.mxu0 %v2796
    %3921 = vmatprep.subr.bf16.mxu0 %v2799
    %3922 = vmatpush1.bf16.msra.mxu0 %v2798
    %3923 = vmatprep.subr.bf16.mxu0 %v2801
    %3924 = vmatpush1.bf16.msra.mxu0 %v2800
    %3925 = vmatprep.subr.bf16.mxu0 %v2803
    %3926 = vmatpush1.bf16.msra.mxu0 %v2802
    %3927 = vmatprep.subr.bf16.mxu0 %v2805
    %3928 = vmatpush1.bf16.msra.mxu0 %v2804
    %3929 = vmatprep.subr.bf16.mxu0 %v2807
    %3930 = vmatpush1.bf16.msra.mxu0 %v2806
    %3931 = vmatprep.subr.bf16.mxu0 %v2809
    %3932 = vmatpush1.bf16.msra.mxu0 %v2808
    %3933 = vmatprep.subr.bf16.mxu0 %v2811
    %3934 = vmatpush1.bf16.msra.mxu0 %v2810
    %3935 = vmatprep.subr.bf16.mxu0 %v2813
    %3936 = vmatpush1.bf16.msra.mxu0 %v2812
    %3937 = vmatprep.subr.bf16.mxu0 %v2815
    %3938 = vmatpush1.bf16.msra.mxu0 %v2814
    %3939 = vmatprep.subr.bf16.mxu0 %v2817
    %3940 = vmatpush1.bf16.msra.mxu0 %v2816
    %3941 = vmatprep.subr.bf16.mxu0 %v2819
    %3942 = vmatpush1.bf16.msra.mxu0 %v2818
    %3943 = vmatprep.subr.bf16.mxu0 %v2821
    %3944 = vmatpush1.bf16.msra.mxu0 %v2820
    %3945 = vmatprep.subr.bf16.mxu0 %v2823
    %3946 = vmatpush1.bf16.msra.mxu0 %v2822
    %3947 = vmatprep.subr.bf16.mxu0 %v2825
    %3948 = vmatpush1.bf16.msra.mxu0 %v2824
    %3949 = vmatprep.mubr.bf16.mxu0 %v824
    %3950 = vmatmul.mubr.bf16.gmra.mrb[0].mxu0 %v822
    %v3951 = vpop.f32.mrb[0].mxu0
    %v3952 = vadd.f32 %v3911, %v3951
    %v3953 = vpop.f32.mrb[0].mxu0
    %v3954 = vadd.f32 %v3913, %v3953
    %v3955 = vpop.f32.mrb[0].mxu0
    %v3956 = vpop.f32.mrb[0].mxu0
    %3957 = vdwg.mxu0
    %3958 = vmatprep.subr.bf16.mxu0 %v2827
    %3959 = vmatpush1.bf16.msra.mxu0 %v2826
    %3960 = vmatprep.subr.bf16.mxu0 %v2829
    %3961 = vmatpush1.bf16.msra.mxu0 %v2828
    %3962 = vmatprep.subr.bf16.mxu0 %v2831
    %3963 = vmatpush1.bf16.msra.mxu0 %v2830
    %3964 = vmatprep.subr.bf16.mxu0 %v2833
    %3965 = vmatpush1.bf16.msra.mxu0 %v2832
    %3966 = vmatprep.subr.bf16.mxu0 %v2835
    %3967 = vmatpush1.bf16.msra.mxu0 %v2834
    %3968 = vmatprep.subr.bf16.mxu0 %v2837
    %3969 = vmatpush1.bf16.msra.mxu0 %v2836
    %3970 = vmatprep.subr.bf16.mxu0 %v2839
    %3971 = vmatpush1.bf16.msra.mxu0 %v2838
    %3972 = vmatprep.subr.bf16.mxu0 %v2841
    %3973 = vmatpush1.bf16.msra.mxu0 %v2840
    %3974 = vmatprep.subr.bf16.mxu0 %v2843
    %3975 = vmatpush1.bf16.msra.mxu0 %v2842
    %3976 = vmatprep.subr.bf16.mxu0 %v2845
    %3977 = vmatpush1.bf16.msra.mxu0 %v2844
    %3978 = vmatprep.subr.bf16.mxu0 %v2847
    %3979 = vmatpush1.bf16.msra.mxu0 %v2846
    %3980 = vmatprep.subr.bf16.mxu0 %v2849
    %3981 = vmatpush1.bf16.msra.mxu0 %v2848
    %3982 = vmatprep.subr.bf16.mxu0 %v2851
    %3983 = vmatpush1.bf16.msra.mxu0 %v2850
    %3984 = vmatprep.subr.bf16.mxu0 %v2853
    %3985 = vmatpush1.bf16.msra.mxu0 %v2852
    %3986 = vmatprep.subr.bf16.mxu0 %v2855
    %3987 = vmatpush1.bf16.msra.mxu0 %v2854
    %3988 = vmatprep.subr.bf16.mxu0 %v2857
    %3989 = vmatpush1.bf16.msra.mxu0 %v2856
    %3990 = vmatprep.mubr.bf16.mxu0 %v862
    %3991 = vmatmul.mubr.bf16.gmra.mrb[0].mxu0 %v848
    %v3992 = vpop.f32.mrb[0].mxu0
    %v3993 = vadd.f32 %v3952, %v3992
    %v3994 = vpop.f32.mrb[0].mxu0
    %v3995 = vadd.f32 %v3954, %v3994
    %v3996 = vpop.f32.mrb[0].mxu0
    %v3997 = vpop.f32.mrb[0].mxu0
    %3998 = vdwg.mxu0
    %3999 = vmatprep.subr.bf16.mxu0 %v2859
    %4000 = vmatpush1.bf16.msra.mxu0 %v2858
    %4001 = vmatprep.subr.bf16.mxu0 %v2861
    %4002 = vmatpush1.bf16.msra.mxu0 %v2860
    %4003 = vmatprep.subr.bf16.mxu0 %v2863
    %4004 = vmatpush1.bf16.msra.mxu0 %v2862
    %4005 = vmatprep.subr.bf16.mxu0 %v2865
    %4006 = vmatpush1.bf16.msra.mxu0 %v2864
    %4007 = vmatprep.subr.bf16.mxu0 %v2867
    %4008 = vmatpush1.bf16.msra.mxu0 %v2866
    %4009 = vmatprep.subr.bf16.mxu0 %v2869
    %4010 = vmatpush1.bf16.msra.mxu0 %v2868
    %4011 = vmatprep.subr.bf16.mxu0 %v2871
    %4012 = vmatpush1.bf16.msra.mxu0 %v2870
    %4013 = vmatprep.subr.bf16.mxu0 %v2873
    %4014 = vmatpush1.bf16.msra.mxu0 %v2872
    %4015 = vmatprep.subr.bf16.mxu0 %v2875
    %4016 = vmatpush1.bf16.msra.mxu0 %v2874
    %4017 = vmatprep.subr.bf16.mxu0 %v2877
    %4018 = vmatpush1.bf16.msra.mxu0 %v2876
    %4019 = vmatprep.subr.bf16.mxu0 %v2879
    %4020 = vmatpush1.bf16.msra.mxu0 %v2878
    %4021 = vmatprep.subr.bf16.mxu0 %v2881
    %4022 = vmatpush1.bf16.msra.mxu0 %v2880
    %4023 = vmatprep.subr.bf16.mxu0 %v2883
    %4024 = vmatpush1.bf16.msra.mxu0 %v2882
    %4025 = vmatprep.subr.bf16.mxu0 %v2885
    %4026 = vmatpush1.bf16.msra.mxu0 %v2884
    %4027 = vmatprep.subr.bf16.mxu0 %v2887
    %4028 = vmatpush1.bf16.msra.mxu0 %v2886
    %4029 = vmatprep.subr.bf16.mxu0 %v2889
    %4030 = vmatpush1.bf16.msra.mxu0 %v2888
    %4031 = vmatprep.mubr.bf16.mxu0 %v872
    %4032 = vmatmul.mubr.bf16.gmra.mrb[0].mxu0 %v870
    %v4033 = vpop.f32.mrb[0].mxu0
    %v4034 = vadd.f32 %v3993, %v4033
    %v4035 = vpop.f32.mrb[0].mxu0
    %v4036 = vadd.f32 %v3995, %v4035
    %v4037 = vpop.f32.mrb[0].mxu0
    %v4038 = vpop.f32.mrb[0].mxu0
    %4039 = vdwg.mxu0
    %4040 = vmatprep.subr.bf16.mxu0 %v2891
    %4041 = vmatpush1.bf16.msra.mxu0 %v2890
    %4042 = vmatprep.subr.bf16.mxu0 %v2893
    %4043 = vmatpush1.bf16.msra.mxu0 %v2892
    %4044 = vmatprep.subr.bf16.mxu0 %v2895
    %4045 = vmatpush1.bf16.msra.mxu0 %v2894
    %4046 = vmatprep.subr.bf16.mxu0 %v2897
    %4047 = vmatpush1.bf16.msra.mxu0 %v2896
    %4048 = vmatprep.subr.bf16.mxu0 %v2899
    %4049 = vmatpush1.bf16.msra.mxu0 %v2898
    %4050 = vmatprep.subr.bf16.mxu0 %v2901
    %4051 = vmatpush1.bf16.msra.mxu0 %v2900
    %4052 = vmatprep.subr.bf16.mxu0 %v2903
    %4053 = vmatpush1.bf16.msra.mxu0 %v2902
    %4054 = vmatprep.subr.bf16.mxu0 %v2905
    %4055 = vmatpush1.bf16.msra.mxu0 %v2904
    %4056 = vmatprep.subr.bf16.mxu0 %v2907
    %4057 = vmatpush1.bf16.msra.mxu0 %v2906
    %4058 = vmatprep.subr.bf16.mxu0 %v2909
    %4059 = vmatpush1.bf16.msra.mxu0 %v2908
    %4060 = vmatprep.subr.bf16.mxu0 %v2911
    %4061 = vmatpush1.bf16.msra.mxu0 %v2910
    %4062 = vmatprep.subr.bf16.mxu0 %v2913
    %4063 = vmatpush1.bf16.msra.mxu0 %v2912
    %4064 = vmatprep.subr.bf16.mxu0 %v2915
    %4065 = vmatpush1.bf16.msra.mxu0 %v2914
    %4066 = vmatprep.subr.bf16.mxu0 %v2917
    %4067 = vmatpush1.bf16.msra.mxu0 %v2916
    %4068 = vmatprep.subr.bf16.mxu0 %v2919
    %4069 = vmatpush1.bf16.msra.mxu0 %v2918
    %4070 = vmatprep.subr.bf16.mxu0 %v2921
    %4071 = vmatpush1.bf16.msra.mxu0 %v2920
    %4072 = vmatprep.mubr.bf16.mxu0 %v869
    %4073 = vmatmul.mubr.bf16.gmra.mrb[0].mxu0 %v855
    %v4074 = vpop.f32.mrb[0].mxu0
    %v4075 = vadd.f32 %v4034, %v4074
    %v4076 = vpop.f32.mrb[0].mxu0
    %v4077 = vadd.f32 %v4036, %v4076
    %v4078 = vpop.f32.mrb[0].mxu0
    %v4079 = vpop.f32.mrb[0].mxu0
    %4080 = vdwg.mxu0
    %4081 = vmatprep.subr.bf16.mxu0 %v2923
    %4082 = vmatpush1.bf16.msra.mxu0 %v2922
    %4083 = vmatprep.subr.bf16.mxu0 %v2925
    %4084 = vmatpush1.bf16.msra.mxu0 %v2924
    %4085 = vmatprep.subr.bf16.mxu0 %v2927
    %4086 = vmatpush1.bf16.msra.mxu0 %v2926
    %4087 = vmatprep.subr.bf16.mxu0 %v2929
    %4088 = vmatpush1.bf16.msra.mxu0 %v2928
    %4089 = vmatprep.subr.bf16.mxu0 %v2931
    %4090 = vmatpush1.bf16.msra.mxu0 %v2930
    %4091 = vmatprep.subr.bf16.mxu0 %v2933
    %4092 = vmatpush1.bf16.msra.mxu0 %v2932
    %4093 = vmatprep.subr.bf16.mxu0 %v2935
    %4094 = vmatpush1.bf16.msra.mxu0 %v2934
    %4095 = vmatprep.subr.bf16.mxu0 %v2937
    %4096 = vmatpush1.bf16.msra.mxu0 %v2936
    %4097 = vmatprep.subr.bf16.mxu0 %v2939
    %4098 = vmatpush1.bf16.msra.mxu0 %v2938
    %4099 = vmatprep.subr.bf16.mxu0 %v2941
    %4100 = vmatpush1.bf16.msra.mxu0 %v2940
    %4101 = vmatprep.subr.bf16.mxu0 %v2943
    %4102 = vmatpush1.bf16.msra.mxu0 %v2942
    %4103 = vmatprep.subr.bf16.mxu0 %v2945
    %4104 = vmatpush1.bf16.msra.mxu0 %v2944
    %4105 = vmatprep.subr.bf16.mxu0 %v2947
    %4106 = vmatpush1.bf16.msra.mxu0 %v2946
    %4107 = vmatprep.subr.bf16.mxu0 %v2949
    %4108 = vmatpush1.bf16.msra.mxu0 %v2948
    %4109 = vmatprep.subr.bf16.mxu0 %v2951
    %4110 = vmatpush1.bf16.msra.mxu0 %v2950
    %4111 = vmatprep.subr.bf16.mxu0 %v2953
    %4112 = vmatpush1.bf16.msra.mxu0 %v2952
    %4113 = vmatprep.mubr.bf16.mxu0 %v873
    %4114 = vmatmul.mubr.bf16.gmra.mrb[0].mxu0 %v871
    %v4115 = vpop.f32.mrb[0].mxu0
    %v4116 = vadd.f32 %v4075, %v4115
    %v4117 = vpop.f32.mrb[0].mxu0
    %v4118 = vadd.f32 %v4077, %v4117
    %v4119 = vpop.f32.mrb[0].mxu0
    %v4120 = vpop.f32.mrb[0].mxu0
    %4121 = vdwg.mxu0
    %v4122 = vmax.f32 %v4116, 0.0
    %v4123 = vmax.f32 %v4118, 0.0
    %v4124 = vpack.c.bf16 %v4122, %v4122
    %v4125 = vpack.c.bf16 %v4123, %v4123
    %v4126 = vld [vmem:[#allocation8] sm:$0xff]
    %v4127 = vld [vmem:[#allocation8 + $0x8] sm:$0xff]
    %v4128 = vld [vmem:[#allocation8 + $0x10] sm:$0xff]
    %v4129 = vld [vmem:[#allocation8 + $0x18] sm:$0xff]
    %v4130 = vld [vmem:[#allocation8 + $0x20] sm:$0xff]
    %v4131 = vld [vmem:[#allocation8 + $0x28] sm:$0xff]
    %v4132 = vld [vmem:[#allocation8 + $0x30] sm:$0xff]
    %v4133 = vld [vmem:[#allocation8 + $0x38] sm:$0xff]
    %v4134 = vld [vmem:[#allocation8 + $0x40] sm:$0xff]
    %v4135 = vld [vmem:[#allocation8 + $0x48] sm:$0xff]
    %v4136 = vld [vmem:[#allocation8 + $0x50] sm:$0xff]
    %v4137 = vld [vmem:[#allocation8 + $0x58] sm:$0xff]
    %v4138 = vld [vmem:[#allocation8 + $0x60] sm:$0xff]
    %v4139 = vld [vmem:[#allocation8 + $0x68] sm:$0xff]
    %v4140 = vld [vmem:[#allocation8 + $0x70] sm:$0xff]
    %v4141 = vld [vmem:[#allocation8 + $0x78] sm:$0xff]
    %v4142 = vld [vmem:[#allocation8 + $0x80] sm:$0xff]
    %v4143 = vld [vmem:[#allocation8 + $0x88] sm:$0xff]
    %v4144 = vld [vmem:[#allocation8 + $0x90] sm:$0xff]
    %v4145 = vld [vmem:[#allocation8 + $0x98] sm:$0xff]
    %v4146 = vld [vmem:[#allocation8 + $0xa0] sm:$0xff]
    %v4147 = vld [vmem:[#allocation8 + $0xa8] sm:$0xff]
    %v4148 = vld [vmem:[#allocation8 + $0xb0] sm:$0xff]
    %v4149 = vld [vmem:[#allocation8 + $0xb8] sm:$0xff]
    %v4150 = vld [vmem:[#allocation8 + $0xc0] sm:$0xff]
    %v4151 = vld [vmem:[#allocation8 + $0xc8] sm:$0xff]
    %v4152 = vld [vmem:[#allocation8 + $0xd0] sm:$0xff]
    %v4153 = vld [vmem:[#allocation8 + $0xd8] sm:$0xff]
    %v4154 = vld [vmem:[#allocation8 + $0xe0] sm:$0xff]
    %v4155 = vld [vmem:[#allocation8 + $0xe8] sm:$0xff]
    %v4156 = vld [vmem:[#allocation8 + $0xf0] sm:$0xff]
    %v4157 = vld [vmem:[#allocation8 + $0xf8] sm:$0xff]
    %v4158 = vld [vmem:[#allocation8 + $0x100] sm:$0xff]
    %v4159 = vld [vmem:[#allocation8 + $0x108] sm:$0xff]
    %v4160 = vld [vmem:[#allocation8 + $0x110] sm:$0xff]
    %v4161 = vld [vmem:[#allocation8 + $0x118] sm:$0xff]
    %v4162 = vld [vmem:[#allocation8 + $0x120] sm:$0xff]
    %v4163 = vld [vmem:[#allocation8 + $0x128] sm:$0xff]
    %v4164 = vld [vmem:[#allocation8 + $0x130] sm:$0xff]
    %v4165 = vld [vmem:[#allocation8 + $0x138] sm:$0xff]
    %v4166 = vld [vmem:[#allocation8 + $0x140] sm:$0xff]
    %v4167 = vld [vmem:[#allocation8 + $0x148] sm:$0xff]
    %v4168 = vld [vmem:[#allocation8 + $0x150] sm:$0xff]
    %v4169 = vld [vmem:[#allocation8 + $0x158] sm:$0xff]
    %v4170 = vld [vmem:[#allocation8 + $0x160] sm:$0xff]
    %v4171 = vld [vmem:[#allocation8 + $0x168] sm:$0xff]
    %v4172 = vld [vmem:[#allocation8 + $0x170] sm:$0xff]
    %v4173 = vld [vmem:[#allocation8 + $0x178] sm:$0xff]
    %v4174 = vld [vmem:[#allocation8 + $0x180] sm:$0xff]
    %v4175 = vld [vmem:[#allocation8 + $0x188] sm:$0xff]
    %v4176 = vld [vmem:[#allocation8 + $0x190] sm:$0xff]
    %v4177 = vld [vmem:[#allocation8 + $0x198] sm:$0xff]
    %v4178 = vld [vmem:[#allocation8 + $0x1a0] sm:$0xff]
    %v4179 = vld [vmem:[#allocation8 + $0x1a8] sm:$0xff]
    %v4180 = vld [vmem:[#allocation8 + $0x1b0] sm:$0xff]
    %v4181 = vld [vmem:[#allocation8 + $0x1b8] sm:$0xff]
    %v4182 = vld [vmem:[#allocation8 + $0x1c0] sm:$0xff]
    %v4183 = vld [vmem:[#allocation8 + $0x1c8] sm:$0xff]
    %v4184 = vld [vmem:[#allocation8 + $0x1d0] sm:$0xff]
    %v4185 = vld [vmem:[#allocation8 + $0x1d8] sm:$0xff]
    %v4186 = vld [vmem:[#allocation8 + $0x1e0] sm:$0xff]
    %v4187 = vld [vmem:[#allocation8 + $0x1e8] sm:$0xff]
    %v4188 = vld [vmem:[#allocation8 + $0x1f0] sm:$0xff]
    %v4189 = vld [vmem:[#allocation8 + $0x1f8] sm:$0xff]
    %v4190 = vld [vmem:[#allocation10] sm:$0xf]
    %v4192 = vlaneseq
    %v4193 = vshrl.u32 %v4192, 7
    %v4194 = vsub.s32 0, %v4193
    %v4195 = vrot.slane %v4190, %v4194
    %v4196 = vlaneseq
    %v4197 = vshrl.u32 %v4196, 7
    %v4198 = vsub.s32 1, %v4197
    %v4199 = vrot.slane %v4190, %v4198
    %v4200 = vlaneseq
    %v4201 = vshrl.u32 %v4200, 7
    %v4202 = vsub.s32 2, %v4201
    %v4203 = vrot.slane %v4190, %v4202
    %v4204 = vlaneseq
    %v4205 = vshrl.u32 %v4204, 7
    %v4206 = vsub.s32 3, %v4205
    %v4207 = vrot.slane %v4190, %v4206
    %v4276 = vunpack.c.l.b16 %v4126
    %v4277 = vunpack.c.h.b16 %v4126
    %v4278 = vunpack.c.l.b16 %v4127
    %v4279 = vunpack.c.h.b16 %v4127
    %v4280 = vunpack.c.l.b16 %v4128
    %v4281 = vunpack.c.h.b16 %v4128
    %v4282 = vunpack.c.l.b16 %v4129
    %v4283 = vunpack.c.h.b16 %v4129
    %v4284 = vunpack.c.l.b16 %v4130
    %v4285 = vunpack.c.h.b16 %v4130
    %v4286 = vunpack.c.l.b16 %v4131
    %v4287 = vunpack.c.h.b16 %v4131
    %v4288 = vunpack.c.l.b16 %v4132
    %v4289 = vunpack.c.h.b16 %v4132
    %v4290 = vunpack.c.l.b16 %v4133
    %v4291 = vunpack.c.h.b16 %v4133
    %v4292 = vunpack.c.l.b16 %v4134
    %v4293 = vunpack.c.h.b16 %v4134
    %v4294 = vunpack.c.l.b16 %v4135
    %v4295 = vunpack.c.h.b16 %v4135
    %v4296 = vunpack.c.l.b16 %v4136
    %v4297 = vunpack.c.h.b16 %v4136
    %v4298 = vunpack.c.l.b16 %v4137
    %v4299 = vunpack.c.h.b16 %v4137
    %v4300 = vunpack.c.l.b16 %v4138
    %v4301 = vunpack.c.h.b16 %v4138
    %v4302 = vunpack.c.l.b16 %v4139
    %v4303 = vunpack.c.h.b16 %v4139
    %v4304 = vunpack.c.l.b16 %v4140
    %v4305 = vunpack.c.h.b16 %v4140
    %v4306 = vunpack.c.l.b16 %v4141
    %v4307 = vunpack.c.h.b16 %v4141
    %v4308 = vunpack.c.l.b16 %v4142
    %v4309 = vunpack.c.h.b16 %v4142
    %v4310 = vunpack.c.l.b16 %v4143
    %v4311 = vunpack.c.h.b16 %v4143
    %v4312 = vunpack.c.l.b16 %v4144
    %v4313 = vunpack.c.h.b16 %v4144
    %v4314 = vunpack.c.l.b16 %v4145
    %v4315 = vunpack.c.h.b16 %v4145
    %v4316 = vunpack.c.l.b16 %v4146
    %v4317 = vunpack.c.h.b16 %v4146
    %v4318 = vunpack.c.l.b16 %v4147
    %v4319 = vunpack.c.h.b16 %v4147
    %v4320 = vunpack.c.l.b16 %v4148
    %v4321 = vunpack.c.h.b16 %v4148
    %v4322 = vunpack.c.l.b16 %v4149
    %v4323 = vunpack.c.h.b16 %v4149
    %v4324 = vunpack.c.l.b16 %v4150
    %v4325 = vunpack.c.h.b16 %v4150
    %v4326 = vunpack.c.l.b16 %v4151
    %v4327 = vunpack.c.h.b16 %v4151
    %v4328 = vunpack.c.l.b16 %v4152
    %v4329 = vunpack.c.h.b16 %v4152
    %v4330 = vunpack.c.l.b16 %v4153
    %v4331 = vunpack.c.h.b16 %v4153
    %v4332 = vunpack.c.l.b16 %v4154
    %v4333 = vunpack.c.h.b16 %v4154
    %v4334 = vunpack.c.l.b16 %v4155
    %v4335 = vunpack.c.h.b16 %v4155
    %v4336 = vunpack.c.l.b16 %v4156
    %v4337 = vunpack.c.h.b16 %v4156
    %v4338 = vunpack.c.l.b16 %v4157
    %v4339 = vunpack.c.h.b16 %v4157
    %v4340 = vunpack.c.l.b16 %v4158
    %v4341 = vunpack.c.h.b16 %v4158
    %v4342 = vunpack.c.l.b16 %v4159
    %v4343 = vunpack.c.h.b16 %v4159
    %v4344 = vunpack.c.l.b16 %v4160
    %v4345 = vunpack.c.h.b16 %v4160
    %v4346 = vunpack.c.l.b16 %v4161
    %v4347 = vunpack.c.h.b16 %v4161
    %v4348 = vunpack.c.l.b16 %v4162
    %v4349 = vunpack.c.h.b16 %v4162
    %v4350 = vunpack.c.l.b16 %v4163
    %v4351 = vunpack.c.h.b16 %v4163
    %v4352 = vunpack.c.l.b16 %v4164
    %v4353 = vunpack.c.h.b16 %v4164
    %v4354 = vunpack.c.l.b16 %v4165
    %v4355 = vunpack.c.h.b16 %v4165
    %v4356 = vunpack.c.l.b16 %v4166
    %v4357 = vunpack.c.h.b16 %v4166
    %v4358 = vunpack.c.l.b16 %v4167
    %v4359 = vunpack.c.h.b16 %v4167
    %v4360 = vunpack.c.l.b16 %v4168
    %v4361 = vunpack.c.h.b16 %v4168
    %v4362 = vunpack.c.l.b16 %v4169
    %v4363 = vunpack.c.h.b16 %v4169
    %v4364 = vunpack.c.l.b16 %v4170
    %v4365 = vunpack.c.h.b16 %v4170
    %v4366 = vunpack.c.l.b16 %v4171
    %v4367 = vunpack.c.h.b16 %v4171
    %v4368 = vunpack.c.l.b16 %v4172
    %v4369 = vunpack.c.h.b16 %v4172
    %v4370 = vunpack.c.l.b16 %v4173
    %v4371 = vunpack.c.h.b16 %v4173
    %v4372 = vunpack.c.l.b16 %v4174
    %v4373 = vunpack.c.h.b16 %v4174
    %v4374 = vunpack.c.l.b16 %v4175
    %v4375 = vunpack.c.h.b16 %v4175
    %v4376 = vunpack.c.l.b16 %v4176
    %v4377 = vunpack.c.h.b16 %v4176
    %v4378 = vunpack.c.l.b16 %v4177
    %v4379 = vunpack.c.h.b16 %v4177
    %v4380 = vunpack.c.l.b16 %v4178
    %v4381 = vunpack.c.h.b16 %v4178
    %v4382 = vunpack.c.l.b16 %v4179
    %v4383 = vunpack.c.h.b16 %v4179
    %v4384 = vunpack.c.l.b16 %v4180
    %v4385 = vunpack.c.h.b16 %v4180
    %v4386 = vunpack.c.l.b16 %v4181
    %v4387 = vunpack.c.h.b16 %v4181
    %v4388 = vunpack.c.l.b16 %v4182
    %v4389 = vunpack.c.h.b16 %v4182
    %v4390 = vunpack.c.l.b16 %v4183
    %v4391 = vunpack.c.h.b16 %v4183
    %v4392 = vunpack.c.l.b16 %v4184
    %v4393 = vunpack.c.h.b16 %v4184
    %v4394 = vunpack.c.l.b16 %v4185
    %v4395 = vunpack.c.h.b16 %v4185
    %v4396 = vunpack.c.l.b16 %v4186
    %v4397 = vunpack.c.h.b16 %v4186
    %v4398 = vunpack.c.l.b16 %v4187
    %v4399 = vunpack.c.h.b16 %v4187
    %v4400 = vunpack.c.l.b16 %v4188
    %v4401 = vunpack.c.h.b16 %v4188
    %v4402 = vunpack.c.l.b16 %v4189
    %v4403 = vunpack.c.h.b16 %v4189
    %v4404 = vpack.c.b16 %v4280, %v4276
    %v4405 = vpack.c.b16 %v4281, %v4277
    %v4406 = vpack.c.b16 %v4282, %v4278
    %v4407 = vpack.c.b16 %v4283, %v4279
    %v4408 = vpack.c.b16 %v4288, %v4284
    %v4409 = vpack.c.b16 %v4289, %v4285
    %v4410 = vpack.c.b16 %v4290, %v4286
    %v4411 = vpack.c.b16 %v4291, %v4287
    %v4412 = vpack.c.b16 %v4296, %v4292
    %v4413 = vpack.c.b16 %v4297, %v4293
    %v4414 = vpack.c.b16 %v4298, %v4294
    %v4415 = vpack.c.b16 %v4299, %v4295
    %v4416 = vpack.c.b16 %v4304, %v4300
    %v4417 = vpack.c.b16 %v4305, %v4301
    %v4418 = vpack.c.b16 %v4306, %v4302
    %v4419 = vpack.c.b16 %v4307, %v4303
    %v4420 = vpack.c.b16 %v4312, %v4308
    %v4421 = vpack.c.b16 %v4313, %v4309
    %v4422 = vpack.c.b16 %v4314, %v4310
    %v4423 = vpack.c.b16 %v4315, %v4311
    %v4424 = vpack.c.b16 %v4320, %v4316
    %v4425 = vpack.c.b16 %v4321, %v4317
    %v4426 = vpack.c.b16 %v4322, %v4318
    %v4427 = vpack.c.b16 %v4323, %v4319
    %v4428 = vpack.c.b16 %v4328, %v4324
    %v4429 = vpack.c.b16 %v4329, %v4325
    %v4430 = vpack.c.b16 %v4330, %v4326
    %v4431 = vpack.c.b16 %v4331, %v4327
    %v4432 = vpack.c.b16 %v4336, %v4332
    %v4433 = vpack.c.b16 %v4337, %v4333
    %v4434 = vpack.c.b16 %v4338, %v4334
    %v4435 = vpack.c.b16 %v4339, %v4335
    %v4436 = vpack.c.b16 %v4344, %v4340
    %v4437 = vpack.c.b16 %v4345, %v4341
    %v4438 = vpack.c.b16 %v4346, %v4342
    %v4439 = vpack.c.b16 %v4347, %v4343
    %v4440 = vpack.c.b16 %v4352, %v4348
    %v4441 = vpack.c.b16 %v4353, %v4349
    %v4442 = vpack.c.b16 %v4354, %v4350
    %v4443 = vpack.c.b16 %v4355, %v4351
    %v4444 = vpack.c.b16 %v4360, %v4356
    %v4445 = vpack.c.b16 %v4361, %v4357
    %v4446 = vpack.c.b16 %v4362, %v4358
    %v4447 = vpack.c.b16 %v4363, %v4359
    %v4448 = vpack.c.b16 %v4368, %v4364
    %v4449 = vpack.c.b16 %v4369, %v4365
    %v4450 = vpack.c.b16 %v4370, %v4366
    %v4451 = vpack.c.b16 %v4371, %v4367
    %v4452 = vpack.c.b16 %v4376, %v4372
    %v4453 = vpack.c.b16 %v4377, %v4373
    %v4454 = vpack.c.b16 %v4378, %v4374
    %v4455 = vpack.c.b16 %v4379, %v4375
    %v4456 = vpack.c.b16 %v4384, %v4380
    %v4457 = vpack.c.b16 %v4385, %v4381
    %v4458 = vpack.c.b16 %v4386, %v4382
    %v4459 = vpack.c.b16 %v4387, %v4383
    %v4460 = vpack.c.b16 %v4392, %v4388
    %v4461 = vpack.c.b16 %v4393, %v4389
    %v4462 = vpack.c.b16 %v4394, %v4390
    %v4463 = vpack.c.b16 %v4395, %v4391
    %v4464 = vpack.c.b16 %v4400, %v4396
    %v4465 = vpack.c.b16 %v4401, %v4397
    %v4466 = vpack.c.b16 %v4402, %v4398
    %v4467 = vpack.c.b16 %v4403, %v4399
    %4532 = vmatprep.subr.bf16.mxu0 %v4405
    %4533 = vmatpush1.bf16.msra.mxu0 %v4404
    %4534 = vmatprep.subr.bf16.mxu0 %v4409
    %4535 = vmatpush1.bf16.msra.mxu0 %v4408
    %4536 = vmatprep.subr.bf16.mxu0 %v4413
    %4537 = vmatpush1.bf16.msra.mxu0 %v4412
    %4538 = vmatprep.subr.bf16.mxu0 %v4417
    %4539 = vmatpush1.bf16.msra.mxu0 %v4416
    %4540 = vmatprep.subr.bf16.mxu0 %v4421
    %4541 = vmatpush1.bf16.msra.mxu0 %v4420
    %4542 = vmatprep.subr.bf16.mxu0 %v4425
    %4543 = vmatpush1.bf16.msra.mxu0 %v4424
    %4544 = vmatprep.subr.bf16.mxu0 %v4429
    %4545 = vmatpush1.bf16.msra.mxu0 %v4428
    %4546 = vmatprep.subr.bf16.mxu0 %v4433
    %4547 = vmatpush1.bf16.msra.mxu0 %v4432
    %4548 = vmatprep.subr.bf16.mxu0 %v4437
    %4549 = vmatpush1.bf16.msra.mxu0 %v4436
    %4550 = vmatprep.subr.bf16.mxu0 %v4441
    %4551 = vmatpush1.bf16.msra.mxu0 %v4440
    %4552 = vmatprep.subr.bf16.mxu0 %v4445
    %4553 = vmatpush1.bf16.msra.mxu0 %v4444
    %4554 = vmatprep.subr.bf16.mxu0 %v4449
    %4555 = vmatpush1.bf16.msra.mxu0 %v4448
    %4556 = vmatprep.subr.bf16.mxu0 %v4453
    %4557 = vmatpush1.bf16.msra.mxu0 %v4452
    %4558 = vmatprep.subr.bf16.mxu0 %v4457
    %4559 = vmatpush1.bf16.msra.mxu0 %v4456
    %4560 = vmatprep.subr.bf16.mxu0 %v4461
    %4561 = vmatpush1.bf16.msra.mxu0 %v4460
    %4562 = vmatprep.subr.bf16.mxu0 %v4465
    %4563 = vmatpush1.bf16.msra.mxu0 %v4464
    %4564 = vmatprep.mubr.bf16.mxu0 %v4125
    %4565 = vmatmul.mubr.bf16.gmra.mrb[0].mxu0 %v4124
    %v4566 = vpop.f32.mrb[0].mxu0
    %v4567 = vadd.f32 %v4195, %v4566
    %v4568 = vpop.f32.mrb[0].mxu0
    %v4569 = vadd.f32 %v4199, %v4568
    %v4570 = vpop.f32.mrb[0].mxu0
    %v4571 = vpop.f32.mrb[0].mxu0
    %4572 = vdwg.mxu0
    %4573 = vmatprep.subr.bf16.mxu0 %v4407
    %4574 = vmatpush1.bf16.msra.mxu0 %v4406
    %4575 = vmatprep.subr.bf16.mxu0 %v4411
    %4576 = vmatpush1.bf16.msra.mxu0 %v4410
    %4577 = vmatprep.subr.bf16.mxu0 %v4415
    %4578 = vmatpush1.bf16.msra.mxu0 %v4414
    %4579 = vmatprep.subr.bf16.mxu0 %v4419
    %4580 = vmatpush1.bf16.msra.mxu0 %v4418
    %4581 = vmatprep.subr.bf16.mxu0 %v4423
    %4582 = vmatpush1.bf16.msra.mxu0 %v4422
    %4583 = vmatprep.subr.bf16.mxu0 %v4427
    %4584 = vmatpush1.bf16.msra.mxu0 %v4426
    %4585 = vmatprep.subr.bf16.mxu0 %v4431
    %4586 = vmatpush1.bf16.msra.mxu0 %v4430
    %4587 = vmatprep.subr.bf16.mxu0 %v4435
    %4588 = vmatpush1.bf16.msra.mxu0 %v4434
    %4589 = vmatprep.subr.bf16.mxu0 %v4439
    %4590 = vmatpush1.bf16.msra.mxu0 %v4438
    %4591 = vmatprep.subr.bf16.mxu0 %v4443
    %4592 = vmatpush1.bf16.msra.mxu0 %v4442
    %4593 = vmatprep.subr.bf16.mxu0 %v4447
    %4594 = vmatpush1.bf16.msra.mxu0 %v4446
    %4595 = vmatprep.subr.bf16.mxu0 %v4451
    %4596 = vmatpush1.bf16.msra.mxu0 %v4450
    %4597 = vmatprep.subr.bf16.mxu0 %v4455
    %4598 = vmatpush1.bf16.msra.mxu0 %v4454
    %4599 = vmatprep.subr.bf16.mxu0 %v4459
    %4600 = vmatpush1.bf16.msra.mxu0 %v4458
    %4601 = vmatprep.subr.bf16.mxu0 %v4463
    %4602 = vmatpush1.bf16.msra.mxu0 %v4462
    %4603 = vmatprep.subr.bf16.mxu0 %v4467
    %4604 = vmatpush1.bf16.msra.mxu0 %v4466
    %4605 = vmatprep.mubr.bf16.mxu0 %v4125
    %4606 = vmatmul.mubr.bf16.gmra.mrb[0].mxu0 %v4124
    %v4607 = vpop.f32.mrb[0].mxu0
    %v4608 = vadd.f32 %v4203, %v4607
    %v4609 = vpop.f32.mrb[0].mxu0
    %v4610 = vadd.f32 %v4207, %v4609
    %v4611 = vpop.f32.mrb[0].mxu0
    %v4612 = vpop.f32.mrb[0].mxu0
    %4613 = vdwg.mxu0
    %v4614 = vmax.f32 %v4567, 0.0
    %v4615 = vmax.f32 %v4569, 0.0
    %v4616 = vmax.f32 %v4608, 0.0
    %v4617 = vmax.f32 %v4610, 0.0
    %v4618 = vpack.c.bf16 %v4614, %v4614
    %v4619 = vpack.c.bf16 %v4615, %v4615
    %v4620 = vpack.c.bf16 %v4616, %v4616
    %v4621 = vpack.c.bf16 %v4617, %v4617
    %v4622 = vld [vmem:[#allocation11] sm:$0xff]
    %v4623 = vld [vmem:[#allocation11 + $0x8] sm:$0xff]
    %v4624 = vld [vmem:[#allocation11 + $0x10] sm:$0xff]
    %v4625 = vld [vmem:[#allocation11 + $0x18] sm:$0xff]
    %v4626 = vld [vmem:[#allocation11 + $0x20] sm:$0xff]
    %v4627 = vld [vmem:[#allocation11 + $0x28] sm:$0xff]
    %v4628 = vld [vmem:[#allocation11 + $0x30] sm:$0xff]
    %v4629 = vld [vmem:[#allocation11 + $0x38] sm:$0xff]
    %v4630 = vld [vmem:[#allocation11 + $0x40] sm:$0xff]
    %v4631 = vld [vmem:[#allocation11 + $0x48] sm:$0xff]
    %v4632 = vld [vmem:[#allocation11 + $0x50] sm:$0xff]
    %v4633 = vld [vmem:[#allocation11 + $0x58] sm:$0xff]
    %v4634 = vld [vmem:[#allocation11 + $0x60] sm:$0xff]
    %v4635 = vld [vmem:[#allocation11 + $0x68] sm:$0xff]
    %v4636 = vld [vmem:[#allocation11 + $0x70] sm:$0xff]
    %v4637 = vld [vmem:[#allocation11 + $0x78] sm:$0xff]
    %v4638 = vld [vmem:[#allocation11 + $0x80] sm:$0xff]
    %v4639 = vld [vmem:[#allocation11 + $0x88] sm:$0xff]
    %v4640 = vld [vmem:[#allocation11 + $0x90] sm:$0xff]
    %v4641 = vld [vmem:[#allocation11 + $0x98] sm:$0xff]
    %v4642 = vld [vmem:[#allocation11 + $0xa0] sm:$0xff]
    %v4643 = vld [vmem:[#allocation11 + $0xa8] sm:$0xff]
    %v4644 = vld [vmem:[#allocation11 + $0xb0] sm:$0xff]
    %v4645 = vld [vmem:[#allocation11 + $0xb8] sm:$0xff]
    %v4646 = vld [vmem:[#allocation11 + $0xc0] sm:$0xff]
    %v4647 = vld [vmem:[#allocation11 + $0xc8] sm:$0xff]
    %v4648 = vld [vmem:[#allocation11 + $0xd0] sm:$0xff]
    %v4649 = vld [vmem:[#allocation11 + $0xd8] sm:$0xff]
    %v4650 = vld [vmem:[#allocation11 + $0xe0] sm:$0xff]
    %v4651 = vld [vmem:[#allocation11 + $0xe8] sm:$0xff]
    %v4652 = vld [vmem:[#allocation11 + $0xf0] sm:$0xff]
    %v4653 = vld [vmem:[#allocation11 + $0xf8] sm:$0xff]
    %v4654 = vld [vmem:[#allocation11 + $0x100] sm:$0xff]
    %v4655 = vld [vmem:[#allocation11 + $0x108] sm:$0xff]
    %v4656 = vld [vmem:[#allocation11 + $0x110] sm:$0xff]
    %v4657 = vld [vmem:[#allocation11 + $0x118] sm:$0xff]
    %v4658 = vld [vmem:[#allocation11 + $0x120] sm:$0xff]
    %v4659 = vld [vmem:[#allocation11 + $0x128] sm:$0xff]
    %v4660 = vld [vmem:[#allocation11 + $0x130] sm:$0xff]
    %v4661 = vld [vmem:[#allocation11 + $0x138] sm:$0xff]
    %v4662 = vld [vmem:[#allocation11 + $0x140] sm:$0xff]
    %v4663 = vld [vmem:[#allocation11 + $0x148] sm:$0xff]
    %v4664 = vld [vmem:[#allocation11 + $0x150] sm:$0xff]
    %v4665 = vld [vmem:[#allocation11 + $0x158] sm:$0xff]
    %v4666 = vld [vmem:[#allocation11 + $0x160] sm:$0xff]
    %v4667 = vld [vmem:[#allocation11 + $0x168] sm:$0xff]
    %v4668 = vld [vmem:[#allocation11 + $0x170] sm:$0xff]
    %v4669 = vld [vmem:[#allocation11 + $0x178] sm:$0xff]
    %v4670 = vld [vmem:[#allocation11 + $0x180] sm:$0xff]
    %v4671 = vld [vmem:[#allocation11 + $0x188] sm:$0xff]
    %v4672 = vld [vmem:[#allocation11 + $0x190] sm:$0xff]
    %v4673 = vld [vmem:[#allocation11 + $0x198] sm:$0xff]
    %v4674 = vld [vmem:[#allocation11 + $0x1a0] sm:$0xff]
    %v4675 = vld [vmem:[#allocation11 + $0x1a8] sm:$0xff]
    %v4676 = vld [vmem:[#allocation11 + $0x1b0] sm:$0xff]
    %v4677 = vld [vmem:[#allocation11 + $0x1b8] sm:$0xff]
    %v4678 = vld [vmem:[#allocation11 + $0x1c0] sm:$0xff]
    %v4679 = vld [vmem:[#allocation11 + $0x1c8] sm:$0xff]
    %v4680 = vld [vmem:[#allocation11 + $0x1d0] sm:$0xff]
    %v4681 = vld [vmem:[#allocation11 + $0x1d8] sm:$0xff]
    %v4682 = vld [vmem:[#allocation11 + $0x1e0] sm:$0xff]
    %v4683 = vld [vmem:[#allocation11 + $0x1e8] sm:$0xff]
    %v4684 = vld [vmem:[#allocation11 + $0x1f0] sm:$0xff]
    %v4685 = vld [vmem:[#allocation11 + $0x1f8] sm:$0xff]
    %v4686 = vld [vmem:[#allocation11 + $0x200] sm:$0xff]
    %v4687 = vld [vmem:[#allocation11 + $0x208] sm:$0xff]
    %v4688 = vld [vmem:[#allocation11 + $0x210] sm:$0xff]
    %v4689 = vld [vmem:[#allocation11 + $0x218] sm:$0xff]
    %v4690 = vld [vmem:[#allocation11 + $0x220] sm:$0xff]
    %v4691 = vld [vmem:[#allocation11 + $0x228] sm:$0xff]
    %v4692 = vld [vmem:[#allocation11 + $0x230] sm:$0xff]
    %v4693 = vld [vmem:[#allocation11 + $0x238] sm:$0xff]
    %v4694 = vld [vmem:[#allocation11 + $0x240] sm:$0xff]
    %v4695 = vld [vmem:[#allocation11 + $0x248] sm:$0xff]
    %v4696 = vld [vmem:[#allocation11 + $0x250] sm:$0xff]
    %v4697 = vld [vmem:[#allocation11 + $0x258] sm:$0xff]
    %v4698 = vld [vmem:[#allocation11 + $0x260] sm:$0xff]
    %v4699 = vld [vmem:[#allocation11 + $0x268] sm:$0xff]
    %v4700 = vld [vmem:[#allocation11 + $0x270] sm:$0xff]
    %v4701 = vld [vmem:[#allocation11 + $0x278] sm:$0xff]
    %v4702 = vld [vmem:[#allocation11 + $0x280] sm:$0xff]
    %v4703 = vld [vmem:[#allocation11 + $0x288] sm:$0xff]
    %v4704 = vld [vmem:[#allocation11 + $0x290] sm:$0xff]
    %v4705 = vld [vmem:[#allocation11 + $0x298] sm:$0xff]
    %v4706 = vld [vmem:[#allocation11 + $0x2a0] sm:$0xff]
    %v4707 = vld [vmem:[#allocation11 + $0x2a8] sm:$0xff]
    %v4708 = vld [vmem:[#allocation11 + $0x2b0] sm:$0xff]
    %v4709 = vld [vmem:[#allocation11 + $0x2b8] sm:$0xff]
    %v4710 = vld [vmem:[#allocation11 + $0x2c0] sm:$0xff]
    %v4711 = vld [vmem:[#allocation11 + $0x2c8] sm:$0xff]
    %v4712 = vld [vmem:[#allocation11 + $0x2d0] sm:$0xff]
    %v4713 = vld [vmem:[#allocation11 + $0x2d8] sm:$0xff]
    %v4714 = vld [vmem:[#allocation11 + $0x2e0] sm:$0xff]
    %v4715 = vld [vmem:[#allocation11 + $0x2e8] sm:$0xff]
    %v4716 = vld [vmem:[#allocation11 + $0x2f0] sm:$0xff]
    %v4717 = vld [vmem:[#allocation11 + $0x2f8] sm:$0xff]
    %v4718 = vld [vmem:[#allocation11 + $0x300] sm:$0xff]
    %v4719 = vld [vmem:[#allocation11 + $0x308] sm:$0xff]
    %v4720 = vld [vmem:[#allocation11 + $0x310] sm:$0xff]
    %v4721 = vld [vmem:[#allocation11 + $0x318] sm:$0xff]
    %v4722 = vld [vmem:[#allocation11 + $0x320] sm:$0xff]
    %v4723 = vld [vmem:[#allocation11 + $0x328] sm:$0xff]
    %v4724 = vld [vmem:[#allocation11 + $0x330] sm:$0xff]
    %v4725 = vld [vmem:[#allocation11 + $0x338] sm:$0xff]
    %v4726 = vld [vmem:[#allocation11 + $0x340] sm:$0xff]
    %v4727 = vld [vmem:[#allocation11 + $0x348] sm:$0xff]
    %v4728 = vld [vmem:[#allocation11 + $0x350] sm:$0xff]
    %v4729 = vld [vmem:[#allocation11 + $0x358] sm:$0xff]
    %v4730 = vld [vmem:[#allocation11 + $0x360] sm:$0xff]
    %v4731 = vld [vmem:[#allocation11 + $0x368] sm:$0xff]
    %v4732 = vld [vmem:[#allocation11 + $0x370] sm:$0xff]
    %v4733 = vld [vmem:[#allocation11 + $0x378] sm:$0xff]
    %v4734 = vld [vmem:[#allocation11 + $0x380] sm:$0xff]
    %v4735 = vld [vmem:[#allocation11 + $0x388] sm:$0xff]
    %v4736 = vld [vmem:[#allocation11 + $0x390] sm:$0xff]
    %v4737 = vld [vmem:[#allocation11 + $0x398] sm:$0xff]
    %v4738 = vld [vmem:[#allocation11 + $0x3a0] sm:$0xff]
    %v4739 = vld [vmem:[#allocation11 + $0x3a8] sm:$0xff]
    %v4740 = vld [vmem:[#allocation11 + $0x3b0] sm:$0xff]
    %v4741 = vld [vmem:[#allocation11 + $0x3b8] sm:$0xff]
    %v4742 = vld [vmem:[#allocation11 + $0x3c0] sm:$0xff]
    %v4743 = vld [vmem:[#allocation11 + $0x3c8] sm:$0xff]
    %v4744 = vld [vmem:[#allocation11 + $0x3d0] sm:$0xff]
    %v4745 = vld [vmem:[#allocation11 + $0x3d8] sm:$0xff]
    %v4746 = vld [vmem:[#allocation11 + $0x3e0] sm:$0xff]
    %v4747 = vld [vmem:[#allocation11 + $0x3e8] sm:$0xff]
    %v4748 = vld [vmem:[#allocation11 + $0x3f0] sm:$0xff]
    %v4749 = vld [vmem:[#allocation11 + $0x3f8] sm:$0xff]
    %v4750 = vld [vmem:[#allocation11 + $0x400] sm:$0xff]
    %v4751 = vld [vmem:[#allocation11 + $0x408] sm:$0xff]
    %v4752 = vld [vmem:[#allocation11 + $0x410] sm:$0xff]
    %v4753 = vld [vmem:[#allocation11 + $0x418] sm:$0xff]
    %v4754 = vld [vmem:[#allocation11 + $0x420] sm:$0xff]
    %v4755 = vld [vmem:[#allocation11 + $0x428] sm:$0xff]
    %v4756 = vld [vmem:[#allocation11 + $0x430] sm:$0xff]
    %v4757 = vld [vmem:[#allocation11 + $0x438] sm:$0xff]
    %v4758 = vld [vmem:[#allocation11 + $0x440] sm:$0xff]
    %v4759 = vld [vmem:[#allocation11 + $0x448] sm:$0xff]
    %v4760 = vld [vmem:[#allocation11 + $0x450] sm:$0xff]
    %v4761 = vld [vmem:[#allocation11 + $0x458] sm:$0xff]
    %v4762 = vld [vmem:[#allocation11 + $0x460] sm:$0xff]
    %v4763 = vld [vmem:[#allocation11 + $0x468] sm:$0xff]
    %v4764 = vld [vmem:[#allocation11 + $0x470] sm:$0xff]
    %v4765 = vld [vmem:[#allocation11 + $0x478] sm:$0xff]
    %v4766 = vld [vmem:[#allocation11 + $0x480] sm:$0xff]
    %v4767 = vld [vmem:[#allocation11 + $0x488] sm:$0xff]
    %v4768 = vld [vmem:[#allocation11 + $0x490] sm:$0xff]
    %v4769 = vld [vmem:[#allocation11 + $0x498] sm:$0xff]
    %v4770 = vld [vmem:[#allocation11 + $0x4a0] sm:$0xff]
    %v4771 = vld [vmem:[#allocation11 + $0x4a8] sm:$0xff]
    %v4772 = vld [vmem:[#allocation11 + $0x4b0] sm:$0xff]
    %v4773 = vld [vmem:[#allocation11 + $0x4b8] sm:$0xff]
    %v4774 = vld [vmem:[#allocation11 + $0x4c0] sm:$0xff]
    %v4775 = vld [vmem:[#allocation11 + $0x4c8] sm:$0xff]
    %v4776 = vld [vmem:[#allocation11 + $0x4d0] sm:$0xff]
    %v4777 = vld [vmem:[#allocation11 + $0x4d8] sm:$0xff]
    %v4778 = vld [vmem:[#allocation11 + $0x4e0] sm:$0xff]
    %v4779 = vld [vmem:[#allocation11 + $0x4e8] sm:$0xff]
    %v4780 = vld [vmem:[#allocation11 + $0x4f0] sm:$0xff]
    %v4781 = vld [vmem:[#allocation11 + $0x4f8] sm:$0xff]
    %v4782 = vld [vmem:[#allocation11 + $0x500] sm:$0xff]
    %v4783 = vld [vmem:[#allocation11 + $0x508] sm:$0xff]
    %v4784 = vld [vmem:[#allocation11 + $0x510] sm:$0xff]
    %v4785 = vld [vmem:[#allocation11 + $0x518] sm:$0xff]
    %v4786 = vld [vmem:[#allocation11 + $0x520] sm:$0xff]
    %v4787 = vld [vmem:[#allocation11 + $0x528] sm:$0xff]
    %v4788 = vld [vmem:[#allocation11 + $0x530] sm:$0xff]
    %v4789 = vld [vmem:[#allocation11 + $0x538] sm:$0xff]
    %v4790 = vld [vmem:[#allocation11 + $0x540] sm:$0xff]
    %v4791 = vld [vmem:[#allocation11 + $0x548] sm:$0xff]
    %v4792 = vld [vmem:[#allocation11 + $0x550] sm:$0xff]
    %v4793 = vld [vmem:[#allocation11 + $0x558] sm:$0xff]
    %v4794 = vld [vmem:[#allocation11 + $0x560] sm:$0xff]
    %v4795 = vld [vmem:[#allocation11 + $0x568] sm:$0xff]
    %v4796 = vld [vmem:[#allocation11 + $0x570] sm:$0xff]
    %v4797 = vld [vmem:[#allocation11 + $0x578] sm:$0xff]
    %v4798 = vld [vmem:[#allocation11 + $0x580] sm:$0xff]
    %v4799 = vld [vmem:[#allocation11 + $0x588] sm:$0xff]
    %v4800 = vld [vmem:[#allocation11 + $0x590] sm:$0xff]
    %v4801 = vld [vmem:[#allocation11 + $0x598] sm:$0xff]
    %v4802 = vld [vmem:[#allocation11 + $0x5a0] sm:$0xff]
    %v4803 = vld [vmem:[#allocation11 + $0x5a8] sm:$0xff]
    %v4804 = vld [vmem:[#allocation11 + $0x5b0] sm:$0xff]
    %v4805 = vld [vmem:[#allocation11 + $0x5b8] sm:$0xff]
    %v4806 = vld [vmem:[#allocation11 + $0x5c0] sm:$0xff]
    %v4807 = vld [vmem:[#allocation11 + $0x5c8] sm:$0xff]
    %v4808 = vld [vmem:[#allocation11 + $0x5d0] sm:$0xff]
    %v4809 = vld [vmem:[#allocation11 + $0x5d8] sm:$0xff]
    %v4810 = vld [vmem:[#allocation11 + $0x5e0] sm:$0xff]
    %v4811 = vld [vmem:[#allocation11 + $0x5e8] sm:$0xff]
    %v4812 = vld [vmem:[#allocation11 + $0x5f0] sm:$0xff]
    %v4813 = vld [vmem:[#allocation11 + $0x5f8] sm:$0xff]
    %v4814 = vld [vmem:[#allocation11 + $0x600] sm:$0xff]
    %v4815 = vld [vmem:[#allocation11 + $0x608] sm:$0xff]
    %v4816 = vld [vmem:[#allocation11 + $0x610] sm:$0xff]
    %v4817 = vld [vmem:[#allocation11 + $0x618] sm:$0xff]
    %v4818 = vld [vmem:[#allocation11 + $0x620] sm:$0xff]
    %v4819 = vld [vmem:[#allocation11 + $0x628] sm:$0xff]
    %v4820 = vld [vmem:[#allocation11 + $0x630] sm:$0xff]
    %v4821 = vld [vmem:[#allocation11 + $0x638] sm:$0xff]
    %v4822 = vld [vmem:[#allocation11 + $0x640] sm:$0xff]
    %v4823 = vld [vmem:[#allocation11 + $0x648] sm:$0xff]
    %v4824 = vld [vmem:[#allocation11 + $0x650] sm:$0xff]
    %v4825 = vld [vmem:[#allocation11 + $0x658] sm:$0xff]
    %v4826 = vld [vmem:[#allocation11 + $0x660] sm:$0xff]
    %v4827 = vld [vmem:[#allocation11 + $0x668] sm:$0xff]
    %v4828 = vld [vmem:[#allocation11 + $0x670] sm:$0xff]
    %v4829 = vld [vmem:[#allocation11 + $0x678] sm:$0xff]
    %v4830 = vld [vmem:[#allocation11 + $0x680] sm:$0xff]
    %v4831 = vld [vmem:[#allocation11 + $0x688] sm:$0xff]
    %v4832 = vld [vmem:[#allocation11 + $0x690] sm:$0xff]
    %v4833 = vld [vmem:[#allocation11 + $0x698] sm:$0xff]
    %v4834 = vld [vmem:[#allocation11 + $0x6a0] sm:$0xff]
    %v4835 = vld [vmem:[#allocation11 + $0x6a8] sm:$0xff]
    %v4836 = vld [vmem:[#allocation11 + $0x6b0] sm:$0xff]
    %v4837 = vld [vmem:[#allocation11 + $0x6b8] sm:$0xff]
    %v4838 = vld [vmem:[#allocation11 + $0x6c0] sm:$0xff]
    %v4839 = vld [vmem:[#allocation11 + $0x6c8] sm:$0xff]
    %v4840 = vld [vmem:[#allocation11 + $0x6d0] sm:$0xff]
    %v4841 = vld [vmem:[#allocation11 + $0x6d8] sm:$0xff]
    %v4842 = vld [vmem:[#allocation11 + $0x6e0] sm:$0xff]
    %v4843 = vld [vmem:[#allocation11 + $0x6e8] sm:$0xff]
    %v4844 = vld [vmem:[#allocation11 + $0x6f0] sm:$0xff]
    %v4845 = vld [vmem:[#allocation11 + $0x6f8] sm:$0xff]
    %v4846 = vld [vmem:[#allocation11 + $0x700] sm:$0xff]
    %v4847 = vld [vmem:[#allocation11 + $0x708] sm:$0xff]
    %v4848 = vld [vmem:[#allocation11 + $0x710] sm:$0xff]
    %v4849 = vld [vmem:[#allocation11 + $0x718] sm:$0xff]
    %v4850 = vld [vmem:[#allocation11 + $0x720] sm:$0xff]
    %v4851 = vld [vmem:[#allocation11 + $0x728] sm:$0xff]
    %v4852 = vld [vmem:[#allocation11 + $0x730] sm:$0xff]
    %v4853 = vld [vmem:[#allocation11 + $0x738] sm:$0xff]
    %v4854 = vld [vmem:[#allocation11 + $0x740] sm:$0xff]
    %v4855 = vld [vmem:[#allocation11 + $0x748] sm:$0xff]
    %v4856 = vld [vmem:[#allocation11 + $0x750] sm:$0xff]
    %v4857 = vld [vmem:[#allocation11 + $0x758] sm:$0xff]
    %v4858 = vld [vmem:[#allocation11 + $0x760] sm:$0xff]
    %v4859 = vld [vmem:[#allocation11 + $0x768] sm:$0xff]
    %v4860 = vld [vmem:[#allocation11 + $0x770] sm:$0xff]
    %v4861 = vld [vmem:[#allocation11 + $0x778] sm:$0xff]
    %v4862 = vld [vmem:[#allocation11 + $0x780] sm:$0xff]
    %v4863 = vld [vmem:[#allocation11 + $0x788] sm:$0xff]
    %v4864 = vld [vmem:[#allocation11 + $0x790] sm:$0xff]
    %v4865 = vld [vmem:[#allocation11 + $0x798] sm:$0xff]
    %v4866 = vld [vmem:[#allocation11 + $0x7a0] sm:$0xff]
    %v4867 = vld [vmem:[#allocation11 + $0x7a8] sm:$0xff]
    %v4868 = vld [vmem:[#allocation11 + $0x7b0] sm:$0xff]
    %v4869 = vld [vmem:[#allocation11 + $0x7b8] sm:$0xff]
    %v4870 = vld [vmem:[#allocation11 + $0x7c0] sm:$0xff]
    %v4871 = vld [vmem:[#allocation11 + $0x7c8] sm:$0xff]
    %v4872 = vld [vmem:[#allocation11 + $0x7d0] sm:$0xff]
    %v4873 = vld [vmem:[#allocation11 + $0x7d8] sm:$0xff]
    %v4874 = vld [vmem:[#allocation11 + $0x7e0] sm:$0xff]
    %v4875 = vld [vmem:[#allocation11 + $0x7e8] sm:$0xff]
    %v4876 = vld [vmem:[#allocation11 + $0x7f0] sm:$0xff]
    %v4877 = vld [vmem:[#allocation11 + $0x7f8] sm:$0xff]
    %v4878 = vld [vmem:[#allocation13] sm:$0xff]
    %v4880 = vlaneseq
    %v4881 = vshrl.u32 %v4880, 7
    %v4882 = vsub.s32 0, %v4881
    %v4883 = vrot.slane %v4878, %v4882
    %v4884 = vlaneseq
    %v4885 = vshrl.u32 %v4884, 7
    %v4886 = vsub.s32 1, %v4885
    %v4887 = vrot.slane %v4878, %v4886
    %v4888 = vlaneseq
    %v4889 = vshrl.u32 %v4888, 7
    %v4890 = vsub.s32 2, %v4889
    %v4891 = vrot.slane %v4878, %v4890
    %v4892 = vlaneseq
    %v4893 = vshrl.u32 %v4892, 7
    %v4894 = vsub.s32 3, %v4893
    %v4895 = vrot.slane %v4878, %v4894
    %v4896 = vlaneseq
    %v4897 = vshrl.u32 %v4896, 7
    %v4898 = vsub.s32 4, %v4897
    %v4899 = vrot.slane %v4878, %v4898
    %v4900 = vlaneseq
    %v4901 = vshrl.u32 %v4900, 7
    %v4902 = vsub.s32 5, %v4901
    %v4903 = vrot.slane %v4878, %v4902
    %v4904 = vlaneseq
    %v4905 = vshrl.u32 %v4904, 7
    %v4906 = vsub.s32 6, %v4905
    %v4907 = vrot.slane %v4878, %v4906
    %v4908 = vlaneseq
    %v4909 = vshrl.u32 %v4908, 7
    %v4910 = vsub.s32 7, %v4909
    %v4911 = vrot.slane %v4878, %v4910
    %v5176 = vunpack.c.l.b16 %v4622
    %v5177 = vunpack.c.h.b16 %v4622
    %v5178 = vunpack.c.l.b16 %v4623
    %v5179 = vunpack.c.h.b16 %v4623
    %v5180 = vunpack.c.l.b16 %v4624
    %v5181 = vunpack.c.h.b16 %v4624
    %v5182 = vunpack.c.l.b16 %v4625
    %v5183 = vunpack.c.h.b16 %v4625
    %v5184 = vunpack.c.l.b16 %v4626
    %v5185 = vunpack.c.h.b16 %v4626
    %v5186 = vunpack.c.l.b16 %v4627
    %v5187 = vunpack.c.h.b16 %v4627
    %v5188 = vunpack.c.l.b16 %v4628
    %v5189 = vunpack.c.h.b16 %v4628
    %v5190 = vunpack.c.l.b16 %v4629
    %v5191 = vunpack.c.h.b16 %v4629
    %v5192 = vunpack.c.l.b16 %v4630
    %v5193 = vunpack.c.h.b16 %v4630
    %v5194 = vunpack.c.l.b16 %v4631
    %v5195 = vunpack.c.h.b16 %v4631
    %v5196 = vunpack.c.l.b16 %v4632
    %v5197 = vunpack.c.h.b16 %v4632
    %v5198 = vunpack.c.l.b16 %v4633
    %v5199 = vunpack.c.h.b16 %v4633
    %v5200 = vunpack.c.l.b16 %v4634
    %v5201 = vunpack.c.h.b16 %v4634
    %v5202 = vunpack.c.l.b16 %v4635
    %v5203 = vunpack.c.h.b16 %v4635
    %v5204 = vunpack.c.l.b16 %v4636
    %v5205 = vunpack.c.h.b16 %v4636
    %v5206 = vunpack.c.l.b16 %v4637
    %v5207 = vunpack.c.h.b16 %v4637
    %v5208 = vunpack.c.l.b16 %v4638
    %v5209 = vunpack.c.h.b16 %v4638
    %v5210 = vunpack.c.l.b16 %v4639
    %v5211 = vunpack.c.h.b16 %v4639
    %v5212 = vunpack.c.l.b16 %v4640
    %v5213 = vunpack.c.h.b16 %v4640
    %v5214 = vunpack.c.l.b16 %v4641
    %v5215 = vunpack.c.h.b16 %v4641
    %v5216 = vunpack.c.l.b16 %v4642
    %v5217 = vunpack.c.h.b16 %v4642
    %v5218 = vunpack.c.l.b16 %v4643
    %v5219 = vunpack.c.h.b16 %v4643
    %v5220 = vunpack.c.l.b16 %v4644
    %v5221 = vunpack.c.h.b16 %v4644
    %v5222 = vunpack.c.l.b16 %v4645
    %v5223 = vunpack.c.h.b16 %v4645
    %v5224 = vunpack.c.l.b16 %v4646
    %v5225 = vunpack.c.h.b16 %v4646
    %v5226 = vunpack.c.l.b16 %v4647
    %v5227 = vunpack.c.h.b16 %v4647
    %v5228 = vunpack.c.l.b16 %v4648
    %v5229 = vunpack.c.h.b16 %v4648
    %v5230 = vunpack.c.l.b16 %v4649
    %v5231 = vunpack.c.h.b16 %v4649
    %v5232 = vunpack.c.l.b16 %v4650
    %v5233 = vunpack.c.h.b16 %v4650
    %v5234 = vunpack.c.l.b16 %v4651
    %v5235 = vunpack.c.h.b16 %v4651
    %v5236 = vunpack.c.l.b16 %v4652
    %v5237 = vunpack.c.h.b16 %v4652
    %v5238 = vunpack.c.l.b16 %v4653
    %v5239 = vunpack.c.h.b16 %v4653
    %v5240 = vunpack.c.l.b16 %v4654
    %v5241 = vunpack.c.h.b16 %v4654
    %v5242 = vunpack.c.l.b16 %v4655
    %v5243 = vunpack.c.h.b16 %v4655
    %v5244 = vunpack.c.l.b16 %v4656
    %v5245 = vunpack.c.h.b16 %v4656
    %v5246 = vunpack.c.l.b16 %v4657
    %v5247 = vunpack.c.h.b16 %v4657
    %v5248 = vunpack.c.l.b16 %v4658
    %v5249 = vunpack.c.h.b16 %v4658
    %v5250 = vunpack.c.l.b16 %v4659
    %v5251 = vunpack.c.h.b16 %v4659
    %v5252 = vunpack.c.l.b16 %v4660
    %v5253 = vunpack.c.h.b16 %v4660
    %v5254 = vunpack.c.l.b16 %v4661
    %v5255 = vunpack.c.h.b16 %v4661
    %v5256 = vunpack.c.l.b16 %v4662
    %v5257 = vunpack.c.h.b16 %v4662
    %v5258 = vunpack.c.l.b16 %v4663
    %v5259 = vunpack.c.h.b16 %v4663
    %v5260 = vunpack.c.l.b16 %v4664
    %v5261 = vunpack.c.h.b16 %v4664
    %v5262 = vunpack.c.l.b16 %v4665
    %v5263 = vunpack.c.h.b16 %v4665
    %v5264 = vunpack.c.l.b16 %v4666
    %v5265 = vunpack.c.h.b16 %v4666
    %v5266 = vunpack.c.l.b16 %v4667
    %v5267 = vunpack.c.h.b16 %v4667
    %v5268 = vunpack.c.l.b16 %v4668
    %v5269 = vunpack.c.h.b16 %v4668
    %v5270 = vunpack.c.l.b16 %v4669
    %v5271 = vunpack.c.h.b16 %v4669
    %v5272 = vunpack.c.l.b16 %v4670
    %v5273 = vunpack.c.h.b16 %v4670
    %v5274 = vunpack.c.l.b16 %v4671
    %v5275 = vunpack.c.h.b16 %v4671
    %v5276 = vunpack.c.l.b16 %v4672
    %v5277 = vunpack.c.h.b16 %v4672
    %v5278 = vunpack.c.l.b16 %v4673
    %v5279 = vunpack.c.h.b16 %v4673
    %v5280 = vunpack.c.l.b16 %v4674
    %v5281 = vunpack.c.h.b16 %v4674
    %v5282 = vunpack.c.l.b16 %v4675
    %v5283 = vunpack.c.h.b16 %v4675
    %v5284 = vunpack.c.l.b16 %v4676
    %v5285 = vunpack.c.h.b16 %v4676
    %v5286 = vunpack.c.l.b16 %v4677
    %v5287 = vunpack.c.h.b16 %v4677
    %v5288 = vunpack.c.l.b16 %v4678
    %v5289 = vunpack.c.h.b16 %v4678
    %v5290 = vunpack.c.l.b16 %v4679
    %v5291 = vunpack.c.h.b16 %v4679
    %v5292 = vunpack.c.l.b16 %v4680
    %v5293 = vunpack.c.h.b16 %v4680
    %v5294 = vunpack.c.l.b16 %v4681
    %v5295 = vunpack.c.h.b16 %v4681
    %v5296 = vunpack.c.l.b16 %v4682
    %v5297 = vunpack.c.h.b16 %v4682
    %v5298 = vunpack.c.l.b16 %v4683
    %v5299 = vunpack.c.h.b16 %v4683
    %v5300 = vunpack.c.l.b16 %v4684
    %v5301 = vunpack.c.h.b16 %v4684
    %v5302 = vunpack.c.l.b16 %v4685
    %v5303 = vunpack.c.h.b16 %v4685
    %v5304 = vunpack.c.l.b16 %v4686
    %v5305 = vunpack.c.h.b16 %v4686
    %v5306 = vunpack.c.l.b16 %v4687
    %v5307 = vunpack.c.h.b16 %v4687
    %v5308 = vunpack.c.l.b16 %v4688
    %v5309 = vunpack.c.h.b16 %v4688
    %v5310 = vunpack.c.l.b16 %v4689
    %v5311 = vunpack.c.h.b16 %v4689
    %v5312 = vunpack.c.l.b16 %v4690
    %v5313 = vunpack.c.h.b16 %v4690
    %v5314 = vunpack.c.l.b16 %v4691
    %v5315 = vunpack.c.h.b16 %v4691
    %v5316 = vunpack.c.l.b16 %v4692
    %v5317 = vunpack.c.h.b16 %v4692
    %v5318 = vunpack.c.l.b16 %v4693
    %v5319 = vunpack.c.h.b16 %v4693
    %v5320 = vunpack.c.l.b16 %v4694
    %v5321 = vunpack.c.h.b16 %v4694
    %v5322 = vunpack.c.l.b16 %v4695
    %v5323 = vunpack.c.h.b16 %v4695
    %v5324 = vunpack.c.l.b16 %v4696
    %v5325 = vunpack.c.h.b16 %v4696
    %v5326 = vunpack.c.l.b16 %v4697
    %v5327 = vunpack.c.h.b16 %v4697
    %v5328 = vunpack.c.l.b16 %v4698
    %v5329 = vunpack.c.h.b16 %v4698
    %v5330 = vunpack.c.l.b16 %v4699
    %v5331 = vunpack.c.h.b16 %v4699
    %v5332 = vunpack.c.l.b16 %v4700
    %v5333 = vunpack.c.h.b16 %v4700
    %v5334 = vunpack.c.l.b16 %v4701
    %v5335 = vunpack.c.h.b16 %v4701
    %v5336 = vunpack.c.l.b16 %v4702
    %v5337 = vunpack.c.h.b16 %v4702
    %v5338 = vunpack.c.l.b16 %v4703
    %v5339 = vunpack.c.h.b16 %v4703
    %v5340 = vunpack.c.l.b16 %v4704
    %v5341 = vunpack.c.h.b16 %v4704
    %v5342 = vunpack.c.l.b16 %v4705
    %v5343 = vunpack.c.h.b16 %v4705
    %v5344 = vunpack.c.l.b16 %v4706
    %v5345 = vunpack.c.h.b16 %v4706
    %v5346 = vunpack.c.l.b16 %v4707
    %v5347 = vunpack.c.h.b16 %v4707
    %v5348 = vunpack.c.l.b16 %v4708
    %v5349 = vunpack.c.h.b16 %v4708
    %v5350 = vunpack.c.l.b16 %v4709
    %v5351 = vunpack.c.h.b16 %v4709
    %v5352 = vunpack.c.l.b16 %v4710
    %v5353 = vunpack.c.h.b16 %v4710
    %v5354 = vunpack.c.l.b16 %v4711
    %v5355 = vunpack.c.h.b16 %v4711
    %v5356 = vunpack.c.l.b16 %v4712
    %v5357 = vunpack.c.h.b16 %v4712
    %v5358 = vunpack.c.l.b16 %v4713
    %v5359 = vunpack.c.h.b16 %v4713
    %v5360 = vunpack.c.l.b16 %v4714
    %v5361 = vunpack.c.h.b16 %v4714
    %v5362 = vunpack.c.l.b16 %v4715
    %v5363 = vunpack.c.h.b16 %v4715
    %v5364 = vunpack.c.l.b16 %v4716
    %v5365 = vunpack.c.h.b16 %v4716
    %v5366 = vunpack.c.l.b16 %v4717
    %v5367 = vunpack.c.h.b16 %v4717
    %v5368 = vunpack.c.l.b16 %v4718
    %v5369 = vunpack.c.h.b16 %v4718
    %v5370 = vunpack.c.l.b16 %v4719
    %v5371 = vunpack.c.h.b16 %v4719
    %v5372 = vunpack.c.l.b16 %v4720
    %v5373 = vunpack.c.h.b16 %v4720
    %v5374 = vunpack.c.l.b16 %v4721
    %v5375 = vunpack.c.h.b16 %v4721
    %v5376 = vunpack.c.l.b16 %v4722
    %v5377 = vunpack.c.h.b16 %v4722
    %v5378 = vunpack.c.l.b16 %v4723
    %v5379 = vunpack.c.h.b16 %v4723
    %v5380 = vunpack.c.l.b16 %v4724
    %v5381 = vunpack.c.h.b16 %v4724
    %v5382 = vunpack.c.l.b16 %v4725
    %v5383 = vunpack.c.h.b16 %v4725
    %v5384 = vunpack.c.l.b16 %v4726
    %v5385 = vunpack.c.h.b16 %v4726
    %v5386 = vunpack.c.l.b16 %v4727
    %v5387 = vunpack.c.h.b16 %v4727
    %v5388 = vunpack.c.l.b16 %v4728
    %v5389 = vunpack.c.h.b16 %v4728
    %v5390 = vunpack.c.l.b16 %v4729
    %v5391 = vunpack.c.h.b16 %v4729
    %v5392 = vunpack.c.l.b16 %v4730
    %v5393 = vunpack.c.h.b16 %v4730
    %v5394 = vunpack.c.l.b16 %v4731
    %v5395 = vunpack.c.h.b16 %v4731
    %v5396 = vunpack.c.l.b16 %v4732
    %v5397 = vunpack.c.h.b16 %v4732
    %v5398 = vunpack.c.l.b16 %v4733
    %v5399 = vunpack.c.h.b16 %v4733
    %v5400 = vunpack.c.l.b16 %v4734
    %v5401 = vunpack.c.h.b16 %v4734
    %v5402 = vunpack.c.l.b16 %v4735
    %v5403 = vunpack.c.h.b16 %v4735
    %v5404 = vunpack.c.l.b16 %v4736
    %v5405 = vunpack.c.h.b16 %v4736
    %v5406 = vunpack.c.l.b16 %v4737
    %v5407 = vunpack.c.h.b16 %v4737
    %v5408 = vunpack.c.l.b16 %v4738
    %v5409 = vunpack.c.h.b16 %v4738
    %v5410 = vunpack.c.l.b16 %v4739
    %v5411 = vunpack.c.h.b16 %v4739
    %v5412 = vunpack.c.l.b16 %v4740
    %v5413 = vunpack.c.h.b16 %v4740
    %v5414 = vunpack.c.l.b16 %v4741
    %v5415 = vunpack.c.h.b16 %v4741
    %v5416 = vunpack.c.l.b16 %v4742
    %v5417 = vunpack.c.h.b16 %v4742
    %v5418 = vunpack.c.l.b16 %v4743
    %v5419 = vunpack.c.h.b16 %v4743
    %v5420 = vunpack.c.l.b16 %v4744
    %v5421 = vunpack.c.h.b16 %v4744
    %v5422 = vunpack.c.l.b16 %v4745
    %v5423 = vunpack.c.h.b16 %v4745
    %v5424 = vunpack.c.l.b16 %v4746
    %v5425 = vunpack.c.h.b16 %v4746
    %v5426 = vunpack.c.l.b16 %v4747
    %v5427 = vunpack.c.h.b16 %v4747
    %v5428 = vunpack.c.l.b16 %v4748
    %v5429 = vunpack.c.h.b16 %v4748
    %v5430 = vunpack.c.l.b16 %v4749
    %v5431 = vunpack.c.h.b16 %v4749
    %v5432 = vunpack.c.l.b16 %v4750
    %v5433 = vunpack.c.h.b16 %v4750
    %v5434 = vunpack.c.l.b16 %v4751
    %v5435 = vunpack.c.h.b16 %v4751
    %v5436 = vunpack.c.l.b16 %v4752
    %v5437 = vunpack.c.h.b16 %v4752
    %v5438 = vunpack.c.l.b16 %v4753
    %v5439 = vunpack.c.h.b16 %v4753
    %v5440 = vunpack.c.l.b16 %v4754
    %v5441 = vunpack.c.h.b16 %v4754
    %v5442 = vunpack.c.l.b16 %v4755
    %v5443 = vunpack.c.h.b16 %v4755
    %v5444 = vunpack.c.l.b16 %v4756
    %v5445 = vunpack.c.h.b16 %v4756
    %v5446 = vunpack.c.l.b16 %v4757
    %v5447 = vunpack.c.h.b16 %v4757
    %v5448 = vunpack.c.l.b16 %v4758
    %v5449 = vunpack.c.h.b16 %v4758
    %v5450 = vunpack.c.l.b16 %v4759
    %v5451 = vunpack.c.h.b16 %v4759
    %v5452 = vunpack.c.l.b16 %v4760
    %v5453 = vunpack.c.h.b16 %v4760
    %v5454 = vunpack.c.l.b16 %v4761
    %v5455 = vunpack.c.h.b16 %v4761
    %v5456 = vunpack.c.l.b16 %v4762
    %v5457 = vunpack.c.h.b16 %v4762
    %v5458 = vunpack.c.l.b16 %v4763
    %v5459 = vunpack.c.h.b16 %v4763
    %v5460 = vunpack.c.l.b16 %v4764
    %v5461 = vunpack.c.h.b16 %v4764
    %v5462 = vunpack.c.l.b16 %v4765
    %v5463 = vunpack.c.h.b16 %v4765
    %v5464 = vunpack.c.l.b16 %v4766
    %v5465 = vunpack.c.h.b16 %v4766
    %v5466 = vunpack.c.l.b16 %v4767
    %v5467 = vunpack.c.h.b16 %v4767
    %v5468 = vunpack.c.l.b16 %v4768
    %v5469 = vunpack.c.h.b16 %v4768
    %v5470 = vunpack.c.l.b16 %v4769
    %v5471 = vunpack.c.h.b16 %v4769
    %v5472 = vunpack.c.l.b16 %v4770
    %v5473 = vunpack.c.h.b16 %v4770
    %v5474 = vunpack.c.l.b16 %v4771
    %v5475 = vunpack.c.h.b16 %v4771
    %v5476 = vunpack.c.l.b16 %v4772
    %v5477 = vunpack.c.h.b16 %v4772
    %v5478 = vunpack.c.l.b16 %v4773
    %v5479 = vunpack.c.h.b16 %v4773
    %v5480 = vunpack.c.l.b16 %v4774
    %v5481 = vunpack.c.h.b16 %v4774
    %v5482 = vunpack.c.l.b16 %v4775
    %v5483 = vunpack.c.h.b16 %v4775
    %v5484 = vunpack.c.l.b16 %v4776
    %v5485 = vunpack.c.h.b16 %v4776
    %v5486 = vunpack.c.l.b16 %v4777
    %v5487 = vunpack.c.h.b16 %v4777
    %v5488 = vunpack.c.l.b16 %v4778
    %v5489 = vunpack.c.h.b16 %v4778
    %v5490 = vunpack.c.l.b16 %v4779
    %v5491 = vunpack.c.h.b16 %v4779
    %v5492 = vunpack.c.l.b16 %v4780
    %v5493 = vunpack.c.h.b16 %v4780
    %v5494 = vunpack.c.l.b16 %v4781
    %v5495 = vunpack.c.h.b16 %v4781
    %v5496 = vunpack.c.l.b16 %v4782
    %v5497 = vunpack.c.h.b16 %v4782
    %v5498 = vunpack.c.l.b16 %v4783
    %v5499 = vunpack.c.h.b16 %v4783
    %v5500 = vunpack.c.l.b16 %v4784
    %v5501 = vunpack.c.h.b16 %v4784
    %v5502 = vunpack.c.l.b16 %v4785
    %v5503 = vunpack.c.h.b16 %v4785
    %v5504 = vunpack.c.l.b16 %v4786
    %v5505 = vunpack.c.h.b16 %v4786
    %v5506 = vunpack.c.l.b16 %v4787
    %v5507 = vunpack.c.h.b16 %v4787
    %v5508 = vunpack.c.l.b16 %v4788
    %v5509 = vunpack.c.h.b16 %v4788
    %v5510 = vunpack.c.l.b16 %v4789
    %v5511 = vunpack.c.h.b16 %v4789
    %v5512 = vunpack.c.l.b16 %v4790
    %v5513 = vunpack.c.h.b16 %v4790
    %v5514 = vunpack.c.l.b16 %v4791
    %v5515 = vunpack.c.h.b16 %v4791
    %v5516 = vunpack.c.l.b16 %v4792
    %v5517 = vunpack.c.h.b16 %v4792
    %v5518 = vunpack.c.l.b16 %v4793
    %v5519 = vunpack.c.h.b16 %v4793
    %v5520 = vunpack.c.l.b16 %v4794
    %v5521 = vunpack.c.h.b16 %v4794
    %v5522 = vunpack.c.l.b16 %v4795
    %v5523 = vunpack.c.h.b16 %v4795
    %v5524 = vunpack.c.l.b16 %v4796
    %v5525 = vunpack.c.h.b16 %v4796
    %v5526 = vunpack.c.l.b16 %v4797
    %v5527 = vunpack.c.h.b16 %v4797
    %v5528 = vunpack.c.l.b16 %v4798
    %v5529 = vunpack.c.h.b16 %v4798
    %v5530 = vunpack.c.l.b16 %v4799
    %v5531 = vunpack.c.h.b16 %v4799
    %v5532 = vunpack.c.l.b16 %v4800
    %v5533 = vunpack.c.h.b16 %v4800
    %v5534 = vunpack.c.l.b16 %v4801
    %v5535 = vunpack.c.h.b16 %v4801
    %v5536 = vunpack.c.l.b16 %v4802
    %v5537 = vunpack.c.h.b16 %v4802
    %v5538 = vunpack.c.l.b16 %v4803
    %v5539 = vunpack.c.h.b16 %v4803
    %v5540 = vunpack.c.l.b16 %v4804
    %v5541 = vunpack.c.h.b16 %v4804
    %v5542 = vunpack.c.l.b16 %v4805
    %v5543 = vunpack.c.h.b16 %v4805
    %v5544 = vunpack.c.l.b16 %v4806
    %v5545 = vunpack.c.h.b16 %v4806
    %v5546 = vunpack.c.l.b16 %v4807
    %v5547 = vunpack.c.h.b16 %v4807
    %v5548 = vunpack.c.l.b16 %v4808
    %v5549 = vunpack.c.h.b16 %v4808
    %v5550 = vunpack.c.l.b16 %v4809
    %v5551 = vunpack.c.h.b16 %v4809
    %v5552 = vunpack.c.l.b16 %v4810
    %v5553 = vunpack.c.h.b16 %v4810
    %v5554 = vunpack.c.l.b16 %v4811
    %v5555 = vunpack.c.h.b16 %v4811
    %v5556 = vunpack.c.l.b16 %v4812
    %v5557 = vunpack.c.h.b16 %v4812
    %v5558 = vunpack.c.l.b16 %v4813
    %v5559 = vunpack.c.h.b16 %v4813
    %v5560 = vunpack.c.l.b16 %v4814
    %v5561 = vunpack.c.h.b16 %v4814
    %v5562 = vunpack.c.l.b16 %v4815
    %v5563 = vunpack.c.h.b16 %v4815
    %v5564 = vunpack.c.l.b16 %v4816
    %v5565 = vunpack.c.h.b16 %v4816
    %v5566 = vunpack.c.l.b16 %v4817
    %v5567 = vunpack.c.h.b16 %v4817
    %v5568 = vunpack.c.l.b16 %v4818
    %v5569 = vunpack.c.h.b16 %v4818
    %v5570 = vunpack.c.l.b16 %v4819
    %v5571 = vunpack.c.h.b16 %v4819
    %v5572 = vunpack.c.l.b16 %v4820
    %v5573 = vunpack.c.h.b16 %v4820
    %v5574 = vunpack.c.l.b16 %v4821
    %v5575 = vunpack.c.h.b16 %v4821
    %v5576 = vunpack.c.l.b16 %v4822
    %v5577 = vunpack.c.h.b16 %v4822
    %v5578 = vunpack.c.l.b16 %v4823
    %v5579 = vunpack.c.h.b16 %v4823
    %v5580 = vunpack.c.l.b16 %v4824
    %v5581 = vunpack.c.h.b16 %v4824
    %v5582 = vunpack.c.l.b16 %v4825
    %v5583 = vunpack.c.h.b16 %v4825
    %v5584 = vunpack.c.l.b16 %v4826
    %v5585 = vunpack.c.h.b16 %v4826
    %v5586 = vunpack.c.l.b16 %v4827
    %v5587 = vunpack.c.h.b16 %v4827
    %v5588 = vunpack.c.l.b16 %v4828
    %v5589 = vunpack.c.h.b16 %v4828
    %v5590 = vunpack.c.l.b16 %v4829
    %v5591 = vunpack.c.h.b16 %v4829
    %v5592 = vunpack.c.l.b16 %v4830
    %v5593 = vunpack.c.h.b16 %v4830
    %v5594 = vunpack.c.l.b16 %v4831
    %v5595 = vunpack.c.h.b16 %v4831
    %v5596 = vunpack.c.l.b16 %v4832
    %v5597 = vunpack.c.h.b16 %v4832
    %v5598 = vunpack.c.l.b16 %v4833
    %v5599 = vunpack.c.h.b16 %v4833
    %v5600 = vunpack.c.l.b16 %v4834
    %v5601 = vunpack.c.h.b16 %v4834
    %v5602 = vunpack.c.l.b16 %v4835
    %v5603 = vunpack.c.h.b16 %v4835
    %v5604 = vunpack.c.l.b16 %v4836
    %v5605 = vunpack.c.h.b16 %v4836
    %v5606 = vunpack.c.l.b16 %v4837
    %v5607 = vunpack.c.h.b16 %v4837
    %v5608 = vunpack.c.l.b16 %v4838
    %v5609 = vunpack.c.h.b16 %v4838
    %v5610 = vunpack.c.l.b16 %v4839
    %v5611 = vunpack.c.h.b16 %v4839
    %v5612 = vunpack.c.l.b16 %v4840
    %v5613 = vunpack.c.h.b16 %v4840
    %v5614 = vunpack.c.l.b16 %v4841
    %v5615 = vunpack.c.h.b16 %v4841
    %v5616 = vunpack.c.l.b16 %v4842
    %v5617 = vunpack.c.h.b16 %v4842
    %v5618 = vunpack.c.l.b16 %v4843
    %v5619 = vunpack.c.h.b16 %v4843
    %v5620 = vunpack.c.l.b16 %v4844
    %v5621 = vunpack.c.h.b16 %v4844
    %v5622 = vunpack.c.l.b16 %v4845
    %v5623 = vunpack.c.h.b16 %v4845
    %v5624 = vunpack.c.l.b16 %v4846
    %v5625 = vunpack.c.h.b16 %v4846
    %v5626 = vunpack.c.l.b16 %v4847
    %v5627 = vunpack.c.h.b16 %v4847
    %v5628 = vunpack.c.l.b16 %v4848
    %v5629 = vunpack.c.h.b16 %v4848
    %v5630 = vunpack.c.l.b16 %v4849
    %v5631 = vunpack.c.h.b16 %v4849
    %v5632 = vunpack.c.l.b16 %v4850
    %v5633 = vunpack.c.h.b16 %v4850
    %v5634 = vunpack.c.l.b16 %v4851
    %v5635 = vunpack.c.h.b16 %v4851
    %v5636 = vunpack.c.l.b16 %v4852
    %v5637 = vunpack.c.h.b16 %v4852
    %v5638 = vunpack.c.l.b16 %v4853
    %v5639 = vunpack.c.h.b16 %v4853
    %v5640 = vunpack.c.l.b16 %v4854
    %v5641 = vunpack.c.h.b16 %v4854
    %v5642 = vunpack.c.l.b16 %v4855
    %v5643 = vunpack.c.h.b16 %v4855
    %v5644 = vunpack.c.l.b16 %v4856
    %v5645 = vunpack.c.h.b16 %v4856
    %v5646 = vunpack.c.l.b16 %v4857
    %v5647 = vunpack.c.h.b16 %v4857
    %v5648 = vunpack.c.l.b16 %v4858
    %v5649 = vunpack.c.h.b16 %v4858
    %v5650 = vunpack.c.l.b16 %v4859
    %v5651 = vunpack.c.h.b16 %v4859
    %v5652 = vunpack.c.l.b16 %v4860
    %v5653 = vunpack.c.h.b16 %v4860
    %v5654 = vunpack.c.l.b16 %v4861
    %v5655 = vunpack.c.h.b16 %v4861
    %v5656 = vunpack.c.l.b16 %v4862
    %v5657 = vunpack.c.h.b16 %v4862
    %v5658 = vunpack.c.l.b16 %v4863
    %v5659 = vunpack.c.h.b16 %v4863
    %v5660 = vunpack.c.l.b16 %v4864
    %v5661 = vunpack.c.h.b16 %v4864
    %v5662 = vunpack.c.l.b16 %v4865
    %v5663 = vunpack.c.h.b16 %v4865
    %v5664 = vunpack.c.l.b16 %v4866
    %v5665 = vunpack.c.h.b16 %v4866
    %v5666 = vunpack.c.l.b16 %v4867
    %v5667 = vunpack.c.h.b16 %v4867
    %v5668 = vunpack.c.l.b16 %v4868
    %v5669 = vunpack.c.h.b16 %v4868
    %v5670 = vunpack.c.l.b16 %v4869
    %v5671 = vunpack.c.h.b16 %v4869
    %v5672 = vunpack.c.l.b16 %v4870
    %v5673 = vunpack.c.h.b16 %v4870
    %v5674 = vunpack.c.l.b16 %v4871
    %v5675 = vunpack.c.h.b16 %v4871
    %v5676 = vunpack.c.l.b16 %v4872
    %v5677 = vunpack.c.h.b16 %v4872
    %v5678 = vunpack.c.l.b16 %v4873
    %v5679 = vunpack.c.h.b16 %v4873
    %v5680 = vunpack.c.l.b16 %v4874
    %v5681 = vunpack.c.h.b16 %v4874
    %v5682 = vunpack.c.l.b16 %v4875
    %v5683 = vunpack.c.h.b16 %v4875
    %v5684 = vunpack.c.l.b16 %v4876
    %v5685 = vunpack.c.h.b16 %v4876
    %v5686 = vunpack.c.l.b16 %v4877
    %v5687 = vunpack.c.h.b16 %v4877
    %v5688 = vpack.c.b16 %v5184, %v5176
    %v5689 = vpack.c.b16 %v5185, %v5177
    %v5690 = vpack.c.b16 %v5186, %v5178
    %v5691 = vpack.c.b16 %v5187, %v5179
    %v5692 = vpack.c.b16 %v5188, %v5180
    %v5693 = vpack.c.b16 %v5189, %v5181
    %v5694 = vpack.c.b16 %v5190, %v5182
    %v5695 = vpack.c.b16 %v5191, %v5183
    %v5696 = vpack.c.b16 %v5200, %v5192
    %v5697 = vpack.c.b16 %v5201, %v5193
    %v5698 = vpack.c.b16 %v5202, %v5194
    %v5699 = vpack.c.b16 %v5203, %v5195
    %v5700 = vpack.c.b16 %v5204, %v5196
    %v5701 = vpack.c.b16 %v5205, %v5197
    %v5702 = vpack.c.b16 %v5206, %v5198
    %v5703 = vpack.c.b16 %v5207, %v5199
    %v5704 = vpack.c.b16 %v5216, %v5208
    %v5705 = vpack.c.b16 %v5217, %v5209
    %v5706 = vpack.c.b16 %v5218, %v5210
    %v5707 = vpack.c.b16 %v5219, %v5211
    %v5708 = vpack.c.b16 %v5220, %v5212
    %v5709 = vpack.c.b16 %v5221, %v5213
    %v5710 = vpack.c.b16 %v5222, %v5214
    %v5711 = vpack.c.b16 %v5223, %v5215
    %v5712 = vpack.c.b16 %v5232, %v5224
    %v5713 = vpack.c.b16 %v5233, %v5225
    %v5714 = vpack.c.b16 %v5234, %v5226
    %v5715 = vpack.c.b16 %v5235, %v5227
    %v5716 = vpack.c.b16 %v5236, %v5228
    %v5717 = vpack.c.b16 %v5237, %v5229
    %v5718 = vpack.c.b16 %v5238, %v5230
    %v5719 = vpack.c.b16 %v5239, %v5231
    %v5720 = vpack.c.b16 %v5248, %v5240
    %v5721 = vpack.c.b16 %v5249, %v5241
    %v5722 = vpack.c.b16 %v5250, %v5242
    %v5723 = vpack.c.b16 %v5251, %v5243
    %v5724 = vpack.c.b16 %v5252, %v5244
    %v5725 = vpack.c.b16 %v5253, %v5245
    %v5726 = vpack.c.b16 %v5254, %v5246
    %v5727 = vpack.c.b16 %v5255, %v5247
    %v5728 = vpack.c.b16 %v5264, %v5256
    %v5729 = vpack.c.b16 %v5265, %v5257
    %v5730 = vpack.c.b16 %v5266, %v5258
    %v5731 = vpack.c.b16 %v5267, %v5259
    %v5732 = vpack.c.b16 %v5268, %v5260
    %v5733 = vpack.c.b16 %v5269, %v5261
    %v5734 = vpack.c.b16 %v5270, %v5262
    %v5735 = vpack.c.b16 %v5271, %v5263
    %v5736 = vpack.c.b16 %v5280, %v5272
    %v5737 = vpack.c.b16 %v5281, %v5273
    %v5738 = vpack.c.b16 %v5282, %v5274
    %v5739 = vpack.c.b16 %v5283, %v5275
    %v5740 = vpack.c.b16 %v5284, %v5276
    %v5741 = vpack.c.b16 %v5285, %v5277
    %v5742 = vpack.c.b16 %v5286, %v5278
    %v5743 = vpack.c.b16 %v5287, %v5279
    %v5744 = vpack.c.b16 %v5296, %v5288
    %v5745 = vpack.c.b16 %v5297, %v5289
    %v5746 = vpack.c.b16 %v5298, %v5290
    %v5747 = vpack.c.b16 %v5299, %v5291
    %v5748 = vpack.c.b16 %v5300, %v5292
    %v5749 = vpack.c.b16 %v5301, %v5293
    %v5750 = vpack.c.b16 %v5302, %v5294
    %v5751 = vpack.c.b16 %v5303, %v5295
    %v5752 = vpack.c.b16 %v5312, %v5304
    %v5753 = vpack.c.b16 %v5313, %v5305
    %v5754 = vpack.c.b16 %v5314, %v5306
    %v5755 = vpack.c.b16 %v5315, %v5307
    %v5756 = vpack.c.b16 %v5316, %v5308
    %v5757 = vpack.c.b16 %v5317, %v5309
    %v5758 = vpack.c.b16 %v5318, %v5310
    %v5759 = vpack.c.b16 %v5319, %v5311
    %v5760 = vpack.c.b16 %v5328, %v5320
    %v5761 = vpack.c.b16 %v5329, %v5321
    %v5762 = vpack.c.b16 %v5330, %v5322
    %v5763 = vpack.c.b16 %v5331, %v5323
    %v5764 = vpack.c.b16 %v5332, %v5324
    %v5765 = vpack.c.b16 %v5333, %v5325
    %v5766 = vpack.c.b16 %v5334, %v5326
    %v5767 = vpack.c.b16 %v5335, %v5327
    %v5768 = vpack.c.b16 %v5344, %v5336
    %v5769 = vpack.c.b16 %v5345, %v5337
    %v5770 = vpack.c.b16 %v5346, %v5338
    %v5771 = vpack.c.b16 %v5347, %v5339
    %v5772 = vpack.c.b16 %v5348, %v5340
    %v5773 = vpack.c.b16 %v5349, %v5341
    %v5774 = vpack.c.b16 %v5350, %v5342
    %v5775 = vpack.c.b16 %v5351, %v5343
    %v5776 = vpack.c.b16 %v5360, %v5352
    %v5777 = vpack.c.b16 %v5361, %v5353
    %v5778 = vpack.c.b16 %v5362, %v5354
    %v5779 = vpack.c.b16 %v5363, %v5355
    %v5780 = vpack.c.b16 %v5364, %v5356
    %v5781 = vpack.c.b16 %v5365, %v5357
    %v5782 = vpack.c.b16 %v5366, %v5358
    %v5783 = vpack.c.b16 %v5367, %v5359
    %v5784 = vpack.c.b16 %v5376, %v5368
    %v5785 = vpack.c.b16 %v5377, %v5369
    %v5786 = vpack.c.b16 %v5378, %v5370
    %v5787 = vpack.c.b16 %v5379, %v5371
    %v5788 = vpack.c.b16 %v5380, %v5372
    %v5789 = vpack.c.b16 %v5381, %v5373
    %v5790 = vpack.c.b16 %v5382, %v5374
    %v5791 = vpack.c.b16 %v5383, %v5375
    %v5792 = vpack.c.b16 %v5392, %v5384
    %v5793 = vpack.c.b16 %v5393, %v5385
    %v5794 = vpack.c.b16 %v5394, %v5386
    %v5795 = vpack.c.b16 %v5395, %v5387
    %v5796 = vpack.c.b16 %v5396, %v5388
    %v5797 = vpack.c.b16 %v5397, %v5389
    %v5798 = vpack.c.b16 %v5398, %v5390
    %v5799 = vpack.c.b16 %v5399, %v5391
    %v5800 = vpack.c.b16 %v5408, %v5400
    %v5801 = vpack.c.b16 %v5409, %v5401
    %v5802 = vpack.c.b16 %v5410, %v5402
    %v5803 = vpack.c.b16 %v5411, %v5403
    %v5804 = vpack.c.b16 %v5412, %v5404
    %v5805 = vpack.c.b16 %v5413, %v5405
    %v5806 = vpack.c.b16 %v5414, %v5406
    %v5807 = vpack.c.b16 %v5415, %v5407
    %v5808 = vpack.c.b16 %v5424, %v5416
    %v5809 = vpack.c.b16 %v5425, %v5417
    %v5810 = vpack.c.b16 %v5426, %v5418
    %v5811 = vpack.c.b16 %v5427, %v5419
    %v5812 = vpack.c.b16 %v5428, %v5420
    %v5813 = vpack.c.b16 %v5429, %v5421
    %v5814 = vpack.c.b16 %v5430, %v5422
    %v5815 = vpack.c.b16 %v5431, %v5423
    %v5816 = vpack.c.b16 %v5440, %v5432
    %v5817 = vpack.c.b16 %v5441, %v5433
    %v5818 = vpack.c.b16 %v5442, %v5434
    %v5819 = vpack.c.b16 %v5443, %v5435
    %v5820 = vpack.c.b16 %v5444, %v5436
    %v5821 = vpack.c.b16 %v5445, %v5437
    %v5822 = vpack.c.b16 %v5446, %v5438
    %v5823 = vpack.c.b16 %v5447, %v5439
    %v5824 = vpack.c.b16 %v5456, %v5448
    %v5825 = vpack.c.b16 %v5457, %v5449
    %v5826 = vpack.c.b16 %v5458, %v5450
    %v5827 = vpack.c.b16 %v5459, %v5451
    %v5828 = vpack.c.b16 %v5460, %v5452
    %v5829 = vpack.c.b16 %v5461, %v5453
    %v5830 = vpack.c.b16 %v5462, %v5454
    %v5831 = vpack.c.b16 %v5463, %v5455
    %v5832 = vpack.c.b16 %v5472, %v5464
    %v5833 = vpack.c.b16 %v5473, %v5465
    %v5834 = vpack.c.b16 %v5474, %v5466
    %v5835 = vpack.c.b16 %v5475, %v5467
    %v5836 = vpack.c.b16 %v5476, %v5468
    %v5837 = vpack.c.b16 %v5477, %v5469
    %v5838 = vpack.c.b16 %v5478, %v5470
    %v5839 = vpack.c.b16 %v5479, %v5471
    %v5840 = vpack.c.b16 %v5488, %v5480
    %v5841 = vpack.c.b16 %v5489, %v5481
    %v5842 = vpack.c.b16 %v5490, %v5482
    %v5843 = vpack.c.b16 %v5491, %v5483
    %v5844 = vpack.c.b16 %v5492, %v5484
    %v5845 = vpack.c.b16 %v5493, %v5485
    %v5846 = vpack.c.b16 %v5494, %v5486
    %v5847 = vpack.c.b16 %v5495, %v5487
    %v5848 = vpack.c.b16 %v5504, %v5496
    %v5849 = vpack.c.b16 %v5505, %v5497
    %v5850 = vpack.c.b16 %v5506, %v5498
    %v5851 = vpack.c.b16 %v5507, %v5499
    %v5852 = vpack.c.b16 %v5508, %v5500
    %v5853 = vpack.c.b16 %v5509, %v5501
    %v5854 = vpack.c.b16 %v5510, %v5502
    %v5855 = vpack.c.b16 %v5511, %v5503
    %v5856 = vpack.c.b16 %v5520, %v5512
    %v5857 = vpack.c.b16 %v5521, %v5513
    %v5858 = vpack.c.b16 %v5522, %v5514
    %v5859 = vpack.c.b16 %v5523, %v5515
    %v5860 = vpack.c.b16 %v5524, %v5516
    %v5861 = vpack.c.b16 %v5525, %v5517
    %v5862 = vpack.c.b16 %v5526, %v5518
    %v5863 = vpack.c.b16 %v5527, %v5519
    %v5864 = vpack.c.b16 %v5536, %v5528
    %v5865 = vpack.c.b16 %v5537, %v5529
    %v5866 = vpack.c.b16 %v5538, %v5530
    %v5867 = vpack.c.b16 %v5539, %v5531
    %v5868 = vpack.c.b16 %v5540, %v5532
    %v5869 = vpack.c.b16 %v5541, %v5533
    %v5870 = vpack.c.b16 %v5542, %v5534
    %v5871 = vpack.c.b16 %v5543, %v5535
    %v5872 = vpack.c.b16 %v5552, %v5544
    %v5873 = vpack.c.b16 %v5553, %v5545
    %v5874 = vpack.c.b16 %v5554, %v5546
    %v5875 = vpack.c.b16 %v5555, %v5547
    %v5876 = vpack.c.b16 %v5556, %v5548
    %v5877 = vpack.c.b16 %v5557, %v5549
    %v5878 = vpack.c.b16 %v5558, %v5550
    %v5879 = vpack.c.b16 %v5559, %v5551
    %v5880 = vpack.c.b16 %v5568, %v5560
    %v5881 = vpack.c.b16 %v5569, %v5561
    %v5882 = vpack.c.b16 %v5570, %v5562
    %v5883 = vpack.c.b16 %v5571, %v5563
    %v5884 = vpack.c.b16 %v5572, %v5564
    %v5885 = vpack.c.b16 %v5573, %v5565
    %v5886 = vpack.c.b16 %v5574, %v5566
    %v5887 = vpack.c.b16 %v5575, %v5567
    %v5888 = vpack.c.b16 %v5584, %v5576
    %v5889 = vpack.c.b16 %v5585, %v5577
    %v5890 = vpack.c.b16 %v5586, %v5578
    %v5891 = vpack.c.b16 %v5587, %v5579
    %v5892 = vpack.c.b16 %v5588, %v5580
    %v5893 = vpack.c.b16 %v5589, %v5581
    %v5894 = vpack.c.b16 %v5590, %v5582
    %v5895 = vpack.c.b16 %v5591, %v5583
    %v5896 = vpack.c.b16 %v5600, %v5592
    %v5897 = vpack.c.b16 %v5601, %v5593
    %v5898 = vpack.c.b16 %v5602, %v5594
    %v5899 = vpack.c.b16 %v5603, %v5595
    %v5900 = vpack.c.b16 %v5604, %v5596
    %v5901 = vpack.c.b16 %v5605, %v5597
    %v5902 = vpack.c.b16 %v5606, %v5598
    %v5903 = vpack.c.b16 %v5607, %v5599
    %v5904 = vpack.c.b16 %v5616, %v5608
    %v5905 = vpack.c.b16 %v5617, %v5609
    %v5906 = vpack.c.b16 %v5618, %v5610
    %v5907 = vpack.c.b16 %v5619, %v5611
    %v5908 = vpack.c.b16 %v5620, %v5612
    %v5909 = vpack.c.b16 %v5621, %v5613
    %v5910 = vpack.c.b16 %v5622, %v5614
    %v5911 = vpack.c.b16 %v5623, %v5615
    %v5912 = vpack.c.b16 %v5632, %v5624
    %v5913 = vpack.c.b16 %v5633, %v5625
    %v5914 = vpack.c.b16 %v5634, %v5626
    %v5915 = vpack.c.b16 %v5635, %v5627
    %v5916 = vpack.c.b16 %v5636, %v5628
    %v5917 = vpack.c.b16 %v5637, %v5629
    %v5918 = vpack.c.b16 %v5638, %v5630
    %v5919 = vpack.c.b16 %v5639, %v5631
    %v5920 = vpack.c.b16 %v5648, %v5640
    %v5921 = vpack.c.b16 %v5649, %v5641
    %v5922 = vpack.c.b16 %v5650, %v5642
    %v5923 = vpack.c.b16 %v5651, %v5643
    %v5924 = vpack.c.b16 %v5652, %v5644
    %v5925 = vpack.c.b16 %v5653, %v5645
    %v5926 = vpack.c.b16 %v5654, %v5646
    %v5927 = vpack.c.b16 %v5655, %v5647
    %v5928 = vpack.c.b16 %v5664, %v5656
    %v5929 = vpack.c.b16 %v5665, %v5657
    %v5930 = vpack.c.b16 %v5666, %v5658
    %v5931 = vpack.c.b16 %v5667, %v5659
    %v5932 = vpack.c.b16 %v5668, %v5660
    %v5933 = vpack.c.b16 %v5669, %v5661
    %v5934 = vpack.c.b16 %v5670, %v5662
    %v5935 = vpack.c.b16 %v5671, %v5663
    %v5936 = vpack.c.b16 %v5680, %v5672
    %v5937 = vpack.c.b16 %v5681, %v5673
    %v5938 = vpack.c.b16 %v5682, %v5674
    %v5939 = vpack.c.b16 %v5683, %v5675
    %v5940 = vpack.c.b16 %v5684, %v5676
    %v5941 = vpack.c.b16 %v5685, %v5677
    %v5942 = vpack.c.b16 %v5686, %v5678
    %v5943 = vpack.c.b16 %v5687, %v5679
    %6200 = vmatprep.subr.bf16.mxu0 %v5689
    %6201 = vmatpush1.bf16.msra.mxu0 %v5688
    %6202 = vmatprep.subr.bf16.mxu0 %v5697
    %6203 = vmatpush1.bf16.msra.mxu0 %v5696
    %6204 = vmatprep.subr.bf16.mxu0 %v5705
    %6205 = vmatpush1.bf16.msra.mxu0 %v5704
    %6206 = vmatprep.subr.bf16.mxu0 %v5713
    %6207 = vmatpush1.bf16.msra.mxu0 %v5712
    %6208 = vmatprep.subr.bf16.mxu0 %v5721
    %6209 = vmatpush1.bf16.msra.mxu0 %v5720
    %6210 = vmatprep.subr.bf16.mxu0 %v5729
    %6211 = vmatpush1.bf16.msra.mxu0 %v5728
    %6212 = vmatprep.subr.bf16.mxu0 %v5737
    %6213 = vmatpush1.bf16.msra.mxu0 %v5736
    %6214 = vmatprep.subr.bf16.mxu0 %v5745
    %6215 = vmatpush1.bf16.msra.mxu0 %v5744
    %6216 = vmatprep.subr.bf16.mxu0 %v5753
    %6217 = vmatpush1.bf16.msra.mxu0 %v5752
    %6218 = vmatprep.subr.bf16.mxu0 %v5761
    %6219 = vmatpush1.bf16.msra.mxu0 %v5760
    %6220 = vmatprep.subr.bf16.mxu0 %v5769
    %6221 = vmatpush1.bf16.msra.mxu0 %v5768
    %6222 = vmatprep.subr.bf16.mxu0 %v5777
    %6223 = vmatpush1.bf16.msra.mxu0 %v5776
    %6224 = vmatprep.subr.bf16.mxu0 %v5785
    %6225 = vmatpush1.bf16.msra.mxu0 %v5784
    %6226 = vmatprep.subr.bf16.mxu0 %v5793
    %6227 = vmatpush1.bf16.msra.mxu0 %v5792
    %6228 = vmatprep.subr.bf16.mxu0 %v5801
    %6229 = vmatpush1.bf16.msra.mxu0 %v5800
    %6230 = vmatprep.subr.bf16.mxu0 %v5809
    %6231 = vmatpush1.bf16.msra.mxu0 %v5808
    %6232 = vmatprep.mubr.bf16.mxu0 %v4619
    %6233 = vmatmul.mubr.bf16.gmra.mrb[0].mxu0 %v4618
    %v6234 = vpop.f32.mrb[0].mxu0
    %v6235 = vadd.f32 %v4883, %v6234
    %v6236 = vpop.f32.mrb[0].mxu0
    %v6237 = vadd.f32 %v4887, %v6236
    %v6238 = vpop.f32.mrb[0].mxu0
    %v6239 = vpop.f32.mrb[0].mxu0
    %6240 = vdwg.mxu0
    %6241 = vmatprep.subr.bf16.mxu0 %v5817
    %6242 = vmatpush1.bf16.msra.mxu0 %v5816
    %6243 = vmatprep.subr.bf16.mxu0 %v5825
    %6244 = vmatpush1.bf16.msra.mxu0 %v5824
    %6245 = vmatprep.subr.bf16.mxu0 %v5833
    %6246 = vmatpush1.bf16.msra.mxu0 %v5832
    %6247 = vmatprep.subr.bf16.mxu0 %v5841
    %6248 = vmatpush1.bf16.msra.mxu0 %v5840
    %6249 = vmatprep.subr.bf16.mxu0 %v5849
    %6250 = vmatpush1.bf16.msra.mxu0 %v5848
    %6251 = vmatprep.subr.bf16.mxu0 %v5857
    %6252 = vmatpush1.bf16.msra.mxu0 %v5856
    %6253 = vmatprep.subr.bf16.mxu0 %v5865
    %6254 = vmatpush1.bf16.msra.mxu0 %v5864
    %6255 = vmatprep.subr.bf16.mxu0 %v5873
    %6256 = vmatpush1.bf16.msra.mxu0 %v5872
    %6257 = vmatprep.subr.bf16.mxu0 %v5881
    %6258 = vmatpush1.bf16.msra.mxu0 %v5880
    %6259 = vmatprep.subr.bf16.mxu0 %v5889
    %6260 = vmatpush1.bf16.msra.mxu0 %v5888
    %6261 = vmatprep.subr.bf16.mxu0 %v5897
    %6262 = vmatpush1.bf16.msra.mxu0 %v5896
    %6263 = vmatprep.subr.bf16.mxu0 %v5905
    %6264 = vmatpush1.bf16.msra.mxu0 %v5904
    %6265 = vmatprep.subr.bf16.mxu0 %v5913
    %6266 = vmatpush1.bf16.msra.mxu0 %v5912
    %6267 = vmatprep.subr.bf16.mxu0 %v5921
    %6268 = vmatpush1.bf16.msra.mxu0 %v5920
    %6269 = vmatprep.subr.bf16.mxu0 %v5929
    %6270 = vmatpush1.bf16.msra.mxu0 %v5928
    %6271 = vmatprep.subr.bf16.mxu0 %v5937
    %6272 = vmatpush1.bf16.msra.mxu0 %v5936
    %6273 = vmatprep.mubr.bf16.mxu0 %v4621
    %6274 = vmatmul.mubr.bf16.gmra.mrb[0].mxu0 %v4620
    %v6275 = vpop.f32.mrb[0].mxu0
    %v6276 = vadd.f32 %v6235, %v6275
    %v6277 = vpop.f32.mrb[0].mxu0
    %v6278 = vadd.f32 %v6237, %v6277
    %v6279 = vpop.f32.mrb[0].mxu0
    %v6280 = vpop.f32.mrb[0].mxu0
    %6281 = vdwg.mxu0
    %6282 = vmatprep.subr.bf16.mxu0 %v5691
    %6283 = vmatpush1.bf16.msra.mxu0 %v5690
    %6284 = vmatprep.subr.bf16.mxu0 %v5699
    %6285 = vmatpush1.bf16.msra.mxu0 %v5698
    %6286 = vmatprep.subr.bf16.mxu0 %v5707
    %6287 = vmatpush1.bf16.msra.mxu0 %v5706
    %6288 = vmatprep.subr.bf16.mxu0 %v5715
    %6289 = vmatpush1.bf16.msra.mxu0 %v5714
    %6290 = vmatprep.subr.bf16.mxu0 %v5723
    %6291 = vmatpush1.bf16.msra.mxu0 %v5722
    %6292 = vmatprep.subr.bf16.mxu0 %v5731
    %6293 = vmatpush1.bf16.msra.mxu0 %v5730
    %6294 = vmatprep.subr.bf16.mxu0 %v5739
    %6295 = vmatpush1.bf16.msra.mxu0 %v5738
    %6296 = vmatprep.subr.bf16.mxu0 %v5747
    %6297 = vmatpush1.bf16.msra.mxu0 %v5746
    %6298 = vmatprep.subr.bf16.mxu0 %v5755
    %6299 = vmatpush1.bf16.msra.mxu0 %v5754
    %6300 = vmatprep.subr.bf16.mxu0 %v5763
    %6301 = vmatpush1.bf16.msra.mxu0 %v5762
    %6302 = vmatprep.subr.bf16.mxu0 %v5771
    %6303 = vmatpush1.bf16.msra.mxu0 %v5770
    %6304 = vmatprep.subr.bf16.mxu0 %v5779
    %6305 = vmatpush1.bf16.msra.mxu0 %v5778
    %6306 = vmatprep.subr.bf16.mxu0 %v5787
    %6307 = vmatpush1.bf16.msra.mxu0 %v5786
    %6308 = vmatprep.subr.bf16.mxu0 %v5795
    %6309 = vmatpush1.bf16.msra.mxu0 %v5794
    %6310 = vmatprep.subr.bf16.mxu0 %v5803
    %6311 = vmatpush1.bf16.msra.mxu0 %v5802
    %6312 = vmatprep.subr.bf16.mxu0 %v5811
    %6313 = vmatpush1.bf16.msra.mxu0 %v5810
    %6314 = vmatprep.mubr.bf16.mxu0 %v4619
    %6315 = vmatmul.mubr.bf16.gmra.mrb[0].mxu0 %v4618
    %v6316 = vpop.f32.mrb[0].mxu0
    %v6317 = vadd.f32 %v4891, %v6316
    %v6318 = vpop.f32.mrb[0].mxu0
    %v6319 = vadd.f32 %v4895, %v6318
    %v6320 = vpop.f32.mrb[0].mxu0
    %v6321 = vpop.f32.mrb[0].mxu0
    %6322 = vdwg.mxu0
    %6323 = vmatprep.subr.bf16.mxu0 %v5819
    %6324 = vmatpush1.bf16.msra.mxu0 %v5818
    %6325 = vmatprep.subr.bf16.mxu0 %v5827
    %6326 = vmatpush1.bf16.msra.mxu0 %v5826
    %6327 = vmatprep.subr.bf16.mxu0 %v5835
    %6328 = vmatpush1.bf16.msra.mxu0 %v5834
    %6329 = vmatprep.subr.bf16.mxu0 %v5843
    %6330 = vmatpush1.bf16.msra.mxu0 %v5842
    %6331 = vmatprep.subr.bf16.mxu0 %v5851
    %6332 = vmatpush1.bf16.msra.mxu0 %v5850
    %6333 = vmatprep.subr.bf16.mxu0 %v5859
    %6334 = vmatpush1.bf16.msra.mxu0 %v5858
    %6335 = vmatprep.subr.bf16.mxu0 %v5867
    %6336 = vmatpush1.bf16.msra.mxu0 %v5866
    %6337 = vmatprep.subr.bf16.mxu0 %v5875
    %6338 = vmatpush1.bf16.msra.mxu0 %v5874
    %6339 = vmatprep.subr.bf16.mxu0 %v5883
    %6340 = vmatpush1.bf16.msra.mxu0 %v5882
    %6341 = vmatprep.subr.bf16.mxu0 %v5891
    %6342 = vmatpush1.bf16.msra.mxu0 %v5890
    %6343 = vmatprep.subr.bf16.mxu0 %v5899
    %6344 = vmatpush1.bf16.msra.mxu0 %v5898
    %6345 = vmatprep.subr.bf16.mxu0 %v5907
    %6346 = vmatpush1.bf16.msra.mxu0 %v5906
    %6347 = vmatprep.subr.bf16.mxu0 %v5915
    %6348 = vmatpush1.bf16.msra.mxu0 %v5914
    %6349 = vmatprep.subr.bf16.mxu0 %v5923
    %6350 = vmatpush1.bf16.msra.mxu0 %v5922
    %6351 = vmatprep.subr.bf16.mxu0 %v5931
    %6352 = vmatpush1.bf16.msra.mxu0 %v5930
    %6353 = vmatprep.subr.bf16.mxu0 %v5939
    %6354 = vmatpush1.bf16.msra.mxu0 %v5938
    %6355 = vmatprep.mubr.bf16.mxu0 %v4621
    %6356 = vmatmul.mubr.bf16.gmra.mrb[0].mxu0 %v4620
    %v6357 = vpop.f32.mrb[0].mxu0
    %v6358 = vadd.f32 %v6317, %v6357
    %v6359 = vpop.f32.mrb[0].mxu0
    %v6360 = vadd.f32 %v6319, %v6359
    %v6361 = vpop.f32.mrb[0].mxu0
    %v6362 = vpop.f32.mrb[0].mxu0
    %6363 = vdwg.mxu0
    %6364 = vmatprep.subr.bf16.mxu0 %v5693
    %6365 = vmatpush1.bf16.msra.mxu0 %v5692
    %6366 = vmatprep.subr.bf16.mxu0 %v5701
    %6367 = vmatpush1.bf16.msra.mxu0 %v5700
    %6368 = vmatprep.subr.bf16.mxu0 %v5709
    %6369 = vmatpush1.bf16.msra.mxu0 %v5708
    %6370 = vmatprep.subr.bf16.mxu0 %v5717
    %6371 = vmatpush1.bf16.msra.mxu0 %v5716
    %6372 = vmatprep.subr.bf16.mxu0 %v5725
    %6373 = vmatpush1.bf16.msra.mxu0 %v5724
    %6374 = vmatprep.subr.bf16.mxu0 %v5733
    %6375 = vmatpush1.bf16.msra.mxu0 %v5732
    %6376 = vmatprep.subr.bf16.mxu0 %v5741
    %6377 = vmatpush1.bf16.msra.mxu0 %v5740
    %6378 = vmatprep.subr.bf16.mxu0 %v5749
    %6379 = vmatpush1.bf16.msra.mxu0 %v5748
    %6380 = vmatprep.subr.bf16.mxu0 %v5757
    %6381 = vmatpush1.bf16.msra.mxu0 %v5756
    %6382 = vmatprep.subr.bf16.mxu0 %v5765
    %6383 = vmatpush1.bf16.msra.mxu0 %v5764
    %6384 = vmatprep.subr.bf16.mxu0 %v5773
    %6385 = vmatpush1.bf16.msra.mxu0 %v5772
    %6386 = vmatprep.subr.bf16.mxu0 %v5781
    %6387 = vmatpush1.bf16.msra.mxu0 %v5780
    %6388 = vmatprep.subr.bf16.mxu0 %v5789
    %6389 = vmatpush1.bf16.msra.mxu0 %v5788
    %6390 = vmatprep.subr.bf16.mxu0 %v5797
    %6391 = vmatpush1.bf16.msra.mxu0 %v5796
    %6392 = vmatprep.subr.bf16.mxu0 %v5805
    %6393 = vmatpush1.bf16.msra.mxu0 %v5804
    %6394 = vmatprep.subr.bf16.mxu0 %v5813
    %6395 = vmatpush1.bf16.msra.mxu0 %v5812
    %6396 = vmatprep.mubr.bf16.mxu0 %v4619
    %6397 = vmatmul.mubr.bf16.gmra.mrb[0].mxu0 %v4618
    %v6398 = vpop.f32.mrb[0].mxu0
    %v6399 = vadd.f32 %v4899, %v6398
    %v6400 = vpop.f32.mrb[0].mxu0
    %v6401 = vadd.f32 %v4903, %v6400
    %v6402 = vpop.f32.mrb[0].mxu0
    %v6403 = vpop.f32.mrb[0].mxu0
    %6404 = vdwg.mxu0
    %6405 = vmatprep.subr.bf16.mxu0 %v5821
    %6406 = vmatpush1.bf16.msra.mxu0 %v5820
    %6407 = vmatprep.subr.bf16.mxu0 %v5829
    %6408 = vmatpush1.bf16.msra.mxu0 %v5828
    %6409 = vmatprep.subr.bf16.mxu0 %v5837
    %6410 = vmatpush1.bf16.msra.mxu0 %v5836
    %6411 = vmatprep.subr.bf16.mxu0 %v5845
    %6412 = vmatpush1.bf16.msra.mxu0 %v5844
    %6413 = vmatprep.subr.bf16.mxu0 %v5853
    %6414 = vmatpush1.bf16.msra.mxu0 %v5852
    %6415 = vmatprep.subr.bf16.mxu0 %v5861
    %6416 = vmatpush1.bf16.msra.mxu0 %v5860
    %6417 = vmatprep.subr.bf16.mxu0 %v5869
    %6418 = vmatpush1.bf16.msra.mxu0 %v5868
    %6419 = vmatprep.subr.bf16.mxu0 %v5877
    %6420 = vmatpush1.bf16.msra.mxu0 %v5876
    %6421 = vmatprep.subr.bf16.mxu0 %v5885
    %6422 = vmatpush1.bf16.msra.mxu0 %v5884
    %6423 = vmatprep.subr.bf16.mxu0 %v5893
    %6424 = vmatpush1.bf16.msra.mxu0 %v5892
    %6425 = vmatprep.subr.bf16.mxu0 %v5901
    %6426 = vmatpush1.bf16.msra.mxu0 %v5900
    %6427 = vmatprep.subr.bf16.mxu0 %v5909
    %6428 = vmatpush1.bf16.msra.mxu0 %v5908
    %6429 = vmatprep.subr.bf16.mxu0 %v5917
    %6430 = vmatpush1.bf16.msra.mxu0 %v5916
    %6431 = vmatprep.subr.bf16.mxu0 %v5925
    %6432 = vmatpush1.bf16.msra.mxu0 %v5924
    %6433 = vmatprep.subr.bf16.mxu0 %v5933
    %6434 = vmatpush1.bf16.msra.mxu0 %v5932
    %6435 = vmatprep.subr.bf16.mxu0 %v5941
    %6436 = vmatpush1.bf16.msra.mxu0 %v5940
    %6437 = vmatprep.mubr.bf16.mxu0 %v4621
    %6438 = vmatmul.mubr.bf16.gmra.mrb[0].mxu0 %v4620
    %v6439 = vpop.f32.mrb[0].mxu0
    %v6440 = vadd.f32 %v6399, %v6439
    %v6441 = vpop.f32.mrb[0].mxu0
    %v6442 = vadd.f32 %v6401, %v6441
    %v6443 = vpop.f32.mrb[0].mxu0
    %v6444 = vpop.f32.mrb[0].mxu0
    %6445 = vdwg.mxu0
    %6446 = vmatprep.subr.bf16.mxu0 %v5695
    %6447 = vmatpush1.bf16.msra.mxu0 %v5694
    %6448 = vmatprep.subr.bf16.mxu0 %v5703
    %6449 = vmatpush1.bf16.msra.mxu0 %v5702
    %6450 = vmatprep.subr.bf16.mxu0 %v5711
    %6451 = vmatpush1.bf16.msra.mxu0 %v5710
    %6452 = vmatprep.subr.bf16.mxu0 %v5719
    %6453 = vmatpush1.bf16.msra.mxu0 %v5718
    %6454 = vmatprep.subr.bf16.mxu0 %v5727
    %6455 = vmatpush1.bf16.msra.mxu0 %v5726
    %6456 = vmatprep.subr.bf16.mxu0 %v5735
    %6457 = vmatpush1.bf16.msra.mxu0 %v5734
    %6458 = vmatprep.subr.bf16.mxu0 %v5743
    %6459 = vmatpush1.bf16.msra.mxu0 %v5742
    %6460 = vmatprep.subr.bf16.mxu0 %v5751
    %6461 = vmatpush1.bf16.msra.mxu0 %v5750
    %6462 = vmatprep.subr.bf16.mxu0 %v5759
    %6463 = vmatpush1.bf16.msra.mxu0 %v5758
    %6464 = vmatprep.subr.bf16.mxu0 %v5767
    %6465 = vmatpush1.bf16.msra.mxu0 %v5766
    %6466 = vmatprep.subr.bf16.mxu0 %v5775
    %6467 = vmatpush1.bf16.msra.mxu0 %v5774
    %6468 = vmatprep.subr.bf16.mxu0 %v5783
    %6469 = vmatpush1.bf16.msra.mxu0 %v5782
    %6470 = vmatprep.subr.bf16.mxu0 %v5791
    %6471 = vmatpush1.bf16.msra.mxu0 %v5790
    %6472 = vmatprep.subr.bf16.mxu0 %v5799
    %6473 = vmatpush1.bf16.msra.mxu0 %v5798
    %6474 = vmatprep.subr.bf16.mxu0 %v5807
    %6475 = vmatpush1.bf16.msra.mxu0 %v5806
    %6476 = vmatprep.subr.bf16.mxu0 %v5815
    %6477 = vmatpush1.bf16.msra.mxu0 %v5814
    %6478 = vmatprep.mubr.bf16.mxu0 %v4619
    %6479 = vmatmul.mubr.bf16.gmra.mrb[0].mxu0 %v4618
    %v6480 = vpop.f32.mrb[0].mxu0
    %v6481 = vadd.f32 %v4907, %v6480
    %v6482 = vpop.f32.mrb[0].mxu0
    %v6483 = vadd.f32 %v4911, %v6482
    %v6484 = vpop.f32.mrb[0].mxu0
    %v6485 = vpop.f32.mrb[0].mxu0
    %6486 = vdwg.mxu0
    %6487 = vmatprep.subr.bf16.mxu0 %v5823
    %6488 = vmatpush1.bf16.msra.mxu0 %v5822
    %6489 = vmatprep.subr.bf16.mxu0 %v5831
    %6490 = vmatpush1.bf16.msra.mxu0 %v5830
    %6491 = vmatprep.subr.bf16.mxu0 %v5839
    %6492 = vmatpush1.bf16.msra.mxu0 %v5838
    %6493 = vmatprep.subr.bf16.mxu0 %v5847
    %6494 = vmatpush1.bf16.msra.mxu0 %v5846
    %6495 = vmatprep.subr.bf16.mxu0 %v5855
    %6496 = vmatpush1.bf16.msra.mxu0 %v5854
    %6497 = vmatprep.subr.bf16.mxu0 %v5863
    %6498 = vmatpush1.bf16.msra.mxu0 %v5862
    %6499 = vmatprep.subr.bf16.mxu0 %v5871
    %6500 = vmatpush1.bf16.msra.mxu0 %v5870
    %6501 = vmatprep.subr.bf16.mxu0 %v5879
    %6502 = vmatpush1.bf16.msra.mxu0 %v5878
    %6503 = vmatprep.subr.bf16.mxu0 %v5887
    %6504 = vmatpush1.bf16.msra.mxu0 %v5886
    %6505 = vmatprep.subr.bf16.mxu0 %v5895
    %6506 = vmatpush1.bf16.msra.mxu0 %v5894
    %6507 = vmatprep.subr.bf16.mxu0 %v5903
    %6508 = vmatpush1.bf16.msra.mxu0 %v5902
    %6509 = vmatprep.subr.bf16.mxu0 %v5911
    %6510 = vmatpush1.bf16.msra.mxu0 %v5910
    %6511 = vmatprep.subr.bf16.mxu0 %v5919
    %6512 = vmatpush1.bf16.msra.mxu0 %v5918
    %6513 = vmatprep.subr.bf16.mxu0 %v5927
    %6514 = vmatpush1.bf16.msra.mxu0 %v5926
    %6515 = vmatprep.subr.bf16.mxu0 %v5935
    %6516 = vmatpush1.bf16.msra.mxu0 %v5934
    %6517 = vmatprep.subr.bf16.mxu0 %v5943
    %6518 = vmatpush1.bf16.msra.mxu0 %v5942
    %6519 = vmatprep.mubr.bf16.mxu0 %v4621
    %6520 = vmatmul.mubr.bf16.gmra.mrb[0].mxu0 %v4620
    %v6521 = vpop.f32.mrb[0].mxu0
    %v6522 = vadd.f32 %v6481, %v6521
    %v6523 = vpop.f32.mrb[0].mxu0
    %v6524 = vadd.f32 %v6483, %v6523
    %v6525 = vpop.f32.mrb[0].mxu0
    %v6526 = vpop.f32.mrb[0].mxu0
    %6527 = vdwg.mxu0
    %v6528 = vmax.f32 %v6276, 0.0
    %v6529 = vmax.f32 %v6278, 0.0
    %v6530 = vmax.f32 %v6358, 0.0
    %v6531 = vmax.f32 %v6360, 0.0
    %v6532 = vmax.f32 %v6440, 0.0
    %v6533 = vmax.f32 %v6442, 0.0
    %v6534 = vmax.f32 %v6522, 0.0
    %v6535 = vmax.f32 %v6524, 0.0
    %v6536 = vpack.c.bf16 %v6528, %v6528
    %v6537 = vpack.c.bf16 %v6529, %v6529
    %v6538 = vpack.c.bf16 %v6530, %v6530
    %v6539 = vpack.c.bf16 %v6531, %v6531
    %v6540 = vpack.c.bf16 %v6532, %v6532
    %v6541 = vpack.c.bf16 %v6533, %v6533
    %v6542 = vpack.c.bf16 %v6534, %v6534
    %v6543 = vpack.c.bf16 %v6535, %v6535
    %v6544 = vld [vmem:[#allocation14] sm:$0xf]
    %v6545 = vld [vmem:[#allocation14 + $0x4] sm:$0xf]
    %v6546 = vld [vmem:[#allocation14 + $0x8] sm:$0xf]
    %v6547 = vld [vmem:[#allocation14 + $0xc] sm:$0xf]
    %v6548 = vld [vmem:[#allocation14 + $0x10] sm:$0xf]
    %v6549 = vld [vmem:[#allocation14 + $0x14] sm:$0xf]
    %v6550 = vld [vmem:[#allocation14 + $0x18] sm:$0xf]
    %v6551 = vld [vmem:[#allocation14 + $0x1c] sm:$0xf]
    %v6552 = vld [vmem:[#allocation14 + $0x20] sm:$0xf]
    %v6553 = vld [vmem:[#allocation14 + $0x24] sm:$0xf]
    %v6554 = vld [vmem:[#allocation14 + $0x28] sm:$0xf]
    %v6555 = vld [vmem:[#allocation14 + $0x2c] sm:$0xf]
    %v6556 = vld [vmem:[#allocation14 + $0x30] sm:$0xf]
    %v6557 = vld [vmem:[#allocation14 + $0x34] sm:$0xf]
    %v6558 = vld [vmem:[#allocation14 + $0x38] sm:$0xf]
    %v6559 = vld [vmem:[#allocation14 + $0x3c] sm:$0xf]
    %v6560 = vld [vmem:[#allocation14 + $0x40] sm:$0xf]
    %v6561 = vld [vmem:[#allocation14 + $0x44] sm:$0xf]
    %v6562 = vld [vmem:[#allocation14 + $0x48] sm:$0xf]
    %v6563 = vld [vmem:[#allocation14 + $0x4c] sm:$0xf]
    %v6564 = vld [vmem:[#allocation14 + $0x50] sm:$0xf]
    %v6565 = vld [vmem:[#allocation14 + $0x54] sm:$0xf]
    %v6566 = vld [vmem:[#allocation14 + $0x58] sm:$0xf]
    %v6567 = vld [vmem:[#allocation14 + $0x5c] sm:$0xf]
    %v6568 = vld [vmem:[#allocation14 + $0x60] sm:$0xf]
    %v6569 = vld [vmem:[#allocation14 + $0x64] sm:$0xf]
    %v6570 = vld [vmem:[#allocation14 + $0x68] sm:$0xf]
    %v6571 = vld [vmem:[#allocation14 + $0x6c] sm:$0xf]
    %v6572 = vld [vmem:[#allocation14 + $0x70] sm:$0xf]
    %v6573 = vld [vmem:[#allocation14 + $0x74] sm:$0xf]
    %v6574 = vld [vmem:[#allocation14 + $0x78] sm:$0xf]
    %v6575 = vld [vmem:[#allocation14 + $0x7c] sm:$0xf]
    %v6576 = vld [vmem:[#allocation14 + $0x80] sm:$0xf]
    %v6577 = vld [vmem:[#allocation14 + $0x84] sm:$0xf]
    %v6578 = vld [vmem:[#allocation14 + $0x88] sm:$0xf]
    %v6579 = vld [vmem:[#allocation14 + $0x8c] sm:$0xf]
    %v6580 = vld [vmem:[#allocation14 + $0x90] sm:$0xf]
    %v6581 = vld [vmem:[#allocation14 + $0x94] sm:$0xf]
    %v6582 = vld [vmem:[#allocation14 + $0x98] sm:$0xf]
    %v6583 = vld [vmem:[#allocation14 + $0x9c] sm:$0xf]
    %v6584 = vld [vmem:[#allocation14 + $0xa0] sm:$0xf]
    %v6585 = vld [vmem:[#allocation14 + $0xa4] sm:$0xf]
    %v6586 = vld [vmem:[#allocation14 + $0xa8] sm:$0xf]
    %v6587 = vld [vmem:[#allocation14 + $0xac] sm:$0xf]
    %v6588 = vld [vmem:[#allocation14 + $0xb0] sm:$0xf]
    %v6589 = vld [vmem:[#allocation14 + $0xb4] sm:$0xf]
    %v6590 = vld [vmem:[#allocation14 + $0xb8] sm:$0xf]
    %v6591 = vld [vmem:[#allocation14 + $0xbc] sm:$0xf]
    %v6592 = vld [vmem:[#allocation14 + $0xc0] sm:$0xf]
    %v6593 = vld [vmem:[#allocation14 + $0xc4] sm:$0xf]
    %v6594 = vld [vmem:[#allocation14 + $0xc8] sm:$0xf]
    %v6595 = vld [vmem:[#allocation14 + $0xcc] sm:$0xf]
    %v6596 = vld [vmem:[#allocation14 + $0xd0] sm:$0xf]
    %v6597 = vld [vmem:[#allocation14 + $0xd4] sm:$0xf]
    %v6598 = vld [vmem:[#allocation14 + $0xd8] sm:$0xf]
    %v6599 = vld [vmem:[#allocation14 + $0xdc] sm:$0xf]
    %v6600 = vld [vmem:[#allocation14 + $0xe0] sm:$0xf]
    %v6601 = vld [vmem:[#allocation14 + $0xe4] sm:$0xf]
    %v6602 = vld [vmem:[#allocation14 + $0xe8] sm:$0xf]
    %v6603 = vld [vmem:[#allocation14 + $0xec] sm:$0xf]
    %v6604 = vld [vmem:[#allocation14 + $0xf0] sm:$0xf]
    %v6605 = vld [vmem:[#allocation14 + $0xf4] sm:$0xf]
    %v6606 = vld [vmem:[#allocation14 + $0xf8] sm:$0xf]
    %v6607 = vld [vmem:[#allocation14 + $0xfc] sm:$0xf]
    %v6608 = vld [vmem:[#allocation14 + $0x100] sm:$0xf]
    %v6609 = vld [vmem:[#allocation14 + $0x104] sm:$0xf]
    %v6610 = vld [vmem:[#allocation14 + $0x108] sm:$0xf]
    %v6611 = vld [vmem:[#allocation14 + $0x10c] sm:$0xf]
    %v6612 = vld [vmem:[#allocation14 + $0x110] sm:$0xf]
    %v6613 = vld [vmem:[#allocation14 + $0x114] sm:$0xf]
    %v6614 = vld [vmem:[#allocation14 + $0x118] sm:$0xf]
    %v6615 = vld [vmem:[#allocation14 + $0x11c] sm:$0xf]
    %v6616 = vld [vmem:[#allocation14 + $0x120] sm:$0xf]
    %v6617 = vld [vmem:[#allocation14 + $0x124] sm:$0xf]
    %v6618 = vld [vmem:[#allocation14 + $0x128] sm:$0xf]
    %v6619 = vld [vmem:[#allocation14 + $0x12c] sm:$0xf]
    %v6620 = vld [vmem:[#allocation14 + $0x130] sm:$0xf]
    %v6621 = vld [vmem:[#allocation14 + $0x134] sm:$0xf]
    %v6622 = vld [vmem:[#allocation14 + $0x138] sm:$0xf]
    %v6623 = vld [vmem:[#allocation14 + $0x13c] sm:$0xf]
    %v6624 = vld [vmem:[#allocation14 + $0x140] sm:$0xf]
    %v6625 = vld [vmem:[#allocation14 + $0x144] sm:$0xf]
    %v6626 = vld [vmem:[#allocation14 + $0x148] sm:$0xf]
    %v6627 = vld [vmem:[#allocation14 + $0x14c] sm:$0xf]
    %v6628 = vld [vmem:[#allocation14 + $0x150] sm:$0xf]
    %v6629 = vld [vmem:[#allocation14 + $0x154] sm:$0xf]
    %v6630 = vld [vmem:[#allocation14 + $0x158] sm:$0xf]
    %v6631 = vld [vmem:[#allocation14 + $0x15c] sm:$0xf]
    %v6632 = vld [vmem:[#allocation14 + $0x160] sm:$0xf]
    %v6633 = vld [vmem:[#allocation14 + $0x164] sm:$0xf]
    %v6634 = vld [vmem:[#allocation14 + $0x168] sm:$0xf]
    %v6635 = vld [vmem:[#allocation14 + $0x16c] sm:$0xf]
    %v6636 = vld [vmem:[#allocation14 + $0x170] sm:$0xf]
    %v6637 = vld [vmem:[#allocation14 + $0x174] sm:$0xf]
    %v6638 = vld [vmem:[#allocation14 + $0x178] sm:$0xf]
    %v6639 = vld [vmem:[#allocation14 + $0x17c] sm:$0xf]
    %v6640 = vld [vmem:[#allocation14 + $0x180] sm:$0xf]
    %v6641 = vld [vmem:[#allocation14 + $0x184] sm:$0xf]
    %v6642 = vld [vmem:[#allocation14 + $0x188] sm:$0xf]
    %v6643 = vld [vmem:[#allocation14 + $0x18c] sm:$0xf]
    %v6644 = vld [vmem:[#allocation14 + $0x190] sm:$0xf]
    %v6645 = vld [vmem:[#allocation14 + $0x194] sm:$0xf]
    %v6646 = vld [vmem:[#allocation14 + $0x198] sm:$0xf]
    %v6647 = vld [vmem:[#allocation14 + $0x19c] sm:$0xf]
    %v6648 = vld [vmem:[#allocation14 + $0x1a0] sm:$0xf]
    %v6649 = vld [vmem:[#allocation14 + $0x1a4] sm:$0xf]
    %v6650 = vld [vmem:[#allocation14 + $0x1a8] sm:$0xf]
    %v6651 = vld [vmem:[#allocation14 + $0x1ac] sm:$0xf]
    %v6652 = vld [vmem:[#allocation14 + $0x1b0] sm:$0xf]
    %v6653 = vld [vmem:[#allocation14 + $0x1b4] sm:$0xf]
    %v6654 = vld [vmem:[#allocation14 + $0x1b8] sm:$0xf]
    %v6655 = vld [vmem:[#allocation14 + $0x1bc] sm:$0xf]
    %v6656 = vld [vmem:[#allocation14 + $0x1c0] sm:$0xf]
    %v6657 = vld [vmem:[#allocation14 + $0x1c4] sm:$0xf]
    %v6658 = vld [vmem:[#allocation14 + $0x1c8] sm:$0xf]
    %v6659 = vld [vmem:[#allocation14 + $0x1cc] sm:$0xf]
    %v6660 = vld [vmem:[#allocation14 + $0x1d0] sm:$0xf]
    %v6661 = vld [vmem:[#allocation14 + $0x1d4] sm:$0xf]
    %v6662 = vld [vmem:[#allocation14 + $0x1d8] sm:$0xf]
    %v6663 = vld [vmem:[#allocation14 + $0x1dc] sm:$0xf]
    %v6664 = vld [vmem:[#allocation14 + $0x1e0] sm:$0xf]
    %v6665 = vld [vmem:[#allocation14 + $0x1e4] sm:$0xf]
    %v6666 = vld [vmem:[#allocation14 + $0x1e8] sm:$0xf]
    %v6667 = vld [vmem:[#allocation14 + $0x1ec] sm:$0xf]
    %v6668 = vld [vmem:[#allocation14 + $0x1f0] sm:$0xf]
    %v6669 = vld [vmem:[#allocation14 + $0x1f4] sm:$0xf]
    %v6670 = vld [vmem:[#allocation14 + $0x1f8] sm:$0xf]
    %v6671 = vld [vmem:[#allocation14 + $0x1fc] sm:$0xf]
    %v6672 = vld [vmem:[#allocation16] sm:$0x1]
    %v6674 = vlaneseq
    %v6675 = vshrl.u32 %v6674, 7
    %v6676 = vsub.s32 0, %v6675
    %v6677 = vrot.slane %v6672, %v6676
    %v6807 = vunpack.c.l.b16 %v6544
    %v6808 = vunpack.c.l.b16 %v6545
    %v6809 = vunpack.c.l.b16 %v6546
    %v6810 = vunpack.c.l.b16 %v6547
    %v6811 = vunpack.c.l.b16 %v6548
    %v6812 = vunpack.c.l.b16 %v6549
    %v6813 = vunpack.c.l.b16 %v6550
    %v6814 = vunpack.c.l.b16 %v6551
    %v6815 = vunpack.c.l.b16 %v6552
    %v6816 = vunpack.c.l.b16 %v6553
    %v6817 = vunpack.c.l.b16 %v6554
    %v6818 = vunpack.c.l.b16 %v6555
    %v6819 = vunpack.c.l.b16 %v6556
    %v6820 = vunpack.c.l.b16 %v6557
    %v6821 = vunpack.c.l.b16 %v6558
    %v6822 = vunpack.c.l.b16 %v6559
    %v6823 = vunpack.c.l.b16 %v6560
    %v6824 = vunpack.c.l.b16 %v6561
    %v6825 = vunpack.c.l.b16 %v6562
    %v6826 = vunpack.c.l.b16 %v6563
    %v6827 = vunpack.c.l.b16 %v6564
    %v6828 = vunpack.c.l.b16 %v6565
    %v6829 = vunpack.c.l.b16 %v6566
    %v6830 = vunpack.c.l.b16 %v6567
    %v6831 = vunpack.c.l.b16 %v6568
    %v6832 = vunpack.c.l.b16 %v6569
    %v6833 = vunpack.c.l.b16 %v6570
    %v6834 = vunpack.c.l.b16 %v6571
    %v6835 = vunpack.c.l.b16 %v6572
    %v6836 = vunpack.c.l.b16 %v6573
    %v6837 = vunpack.c.l.b16 %v6574
    %v6838 = vunpack.c.l.b16 %v6575
    %v6839 = vunpack.c.l.b16 %v6576
    %v6840 = vunpack.c.l.b16 %v6577
    %v6841 = vunpack.c.l.b16 %v6578
    %v6842 = vunpack.c.l.b16 %v6579
    %v6843 = vunpack.c.l.b16 %v6580
    %v6844 = vunpack.c.l.b16 %v6581
    %v6845 = vunpack.c.l.b16 %v6582
    %v6846 = vunpack.c.l.b16 %v6583
    %v6847 = vunpack.c.l.b16 %v6584
    %v6848 = vunpack.c.l.b16 %v6585
    %v6849 = vunpack.c.l.b16 %v6586
    %v6850 = vunpack.c.l.b16 %v6587
    %v6851 = vunpack.c.l.b16 %v6588
    %v6852 = vunpack.c.l.b16 %v6589
    %v6853 = vunpack.c.l.b16 %v6590
    %v6854 = vunpack.c.l.b16 %v6591
    %v6855 = vunpack.c.l.b16 %v6592
    %v6856 = vunpack.c.l.b16 %v6593
    %v6857 = vunpack.c.l.b16 %v6594
    %v6858 = vunpack.c.l.b16 %v6595
    %v6859 = vunpack.c.l.b16 %v6596
    %v6860 = vunpack.c.l.b16 %v6597
    %v6861 = vunpack.c.l.b16 %v6598
    %v6862 = vunpack.c.l.b16 %v6599
    %v6863 = vunpack.c.l.b16 %v6600
    %v6864 = vunpack.c.l.b16 %v6601
    %v6865 = vunpack.c.l.b16 %v6602
    %v6866 = vunpack.c.l.b16 %v6603
    %v6867 = vunpack.c.l.b16 %v6604
    %v6868 = vunpack.c.l.b16 %v6605
    %v6869 = vunpack.c.l.b16 %v6606
    %v6870 = vunpack.c.l.b16 %v6607
    %v6871 = vunpack.c.l.b16 %v6608
    %v6872 = vunpack.c.l.b16 %v6609
    %v6873 = vunpack.c.l.b16 %v6610
    %v6874 = vunpack.c.l.b16 %v6611
    %v6875 = vunpack.c.l.b16 %v6612
    %v6876 = vunpack.c.l.b16 %v6613
    %v6877 = vunpack.c.l.b16 %v6614
    %v6878 = vunpack.c.l.b16 %v6615
    %v6879 = vunpack.c.l.b16 %v6616
    %v6880 = vunpack.c.l.b16 %v6617
    %v6881 = vunpack.c.l.b16 %v6618
    %v6882 = vunpack.c.l.b16 %v6619
    %v6883 = vunpack.c.l.b16 %v6620
    %v6884 = vunpack.c.l.b16 %v6621
    %v6885 = vunpack.c.l.b16 %v6622
    %v6886 = vunpack.c.l.b16 %v6623
    %v6887 = vunpack.c.l.b16 %v6624
    %v6888 = vunpack.c.l.b16 %v6625
    %v6889 = vunpack.c.l.b16 %v6626
    %v6890 = vunpack.c.l.b16 %v6627
    %v6891 = vunpack.c.l.b16 %v6628
    %v6892 = vunpack.c.l.b16 %v6629
    %v6893 = vunpack.c.l.b16 %v6630
    %v6894 = vunpack.c.l.b16 %v6631
    %v6895 = vunpack.c.l.b16 %v6632
    %v6896 = vunpack.c.l.b16 %v6633
    %v6897 = vunpack.c.l.b16 %v6634
    %v6898 = vunpack.c.l.b16 %v6635
    %v6899 = vunpack.c.l.b16 %v6636
    %v6900 = vunpack.c.l.b16 %v6637
    %v6901 = vunpack.c.l.b16 %v6638
    %v6902 = vunpack.c.l.b16 %v6639
    %v6903 = vunpack.c.l.b16 %v6640
    %v6904 = vunpack.c.l.b16 %v6641
    %v6905 = vunpack.c.l.b16 %v6642
    %v6906 = vunpack.c.l.b16 %v6643
    %v6907 = vunpack.c.l.b16 %v6644
    %v6908 = vunpack.c.l.b16 %v6645
    %v6909 = vunpack.c.l.b16 %v6646
    %v6910 = vunpack.c.l.b16 %v6647
    %v6911 = vunpack.c.l.b16 %v6648
    %v6912 = vunpack.c.l.b16 %v6649
    %v6913 = vunpack.c.l.b16 %v6650
    %v6914 = vunpack.c.l.b16 %v6651
    %v6915 = vunpack.c.l.b16 %v6652
    %v6916 = vunpack.c.l.b16 %v6653
    %v6917 = vunpack.c.l.b16 %v6654
    %v6918 = vunpack.c.l.b16 %v6655
    %v6919 = vunpack.c.l.b16 %v6656
    %v6920 = vunpack.c.l.b16 %v6657
    %v6921 = vunpack.c.l.b16 %v6658
    %v6922 = vunpack.c.l.b16 %v6659
    %v6923 = vunpack.c.l.b16 %v6660
    %v6924 = vunpack.c.l.b16 %v6661
    %v6925 = vunpack.c.l.b16 %v6662
    %v6926 = vunpack.c.l.b16 %v6663
    %v6927 = vunpack.c.l.b16 %v6664
    %v6928 = vunpack.c.l.b16 %v6665
    %v6929 = vunpack.c.l.b16 %v6666
    %v6930 = vunpack.c.l.b16 %v6667
    %v6931 = vunpack.c.l.b16 %v6668
    %v6932 = vunpack.c.l.b16 %v6669
    %v6933 = vunpack.c.l.b16 %v6670
    %v6934 = vunpack.c.l.b16 %v6671
    %v6935 = vpack.c.b16 %v6808, %v6807
    %v6936 = vpack.c.b16 %v6810, %v6809
    %v6937 = vpack.c.b16 %v6812, %v6811
    %v6938 = vpack.c.b16 %v6814, %v6813
    %v6939 = vpack.c.b16 %v6816, %v6815
    %v6940 = vpack.c.b16 %v6818, %v6817
    %v6941 = vpack.c.b16 %v6820, %v6819
    %v6942 = vpack.c.b16 %v6822, %v6821
    %v6943 = vpack.c.b16 %v6824, %v6823
    %v6944 = vpack.c.b16 %v6826, %v6825
    %v6945 = vpack.c.b16 %v6828, %v6827
    %v6946 = vpack.c.b16 %v6830, %v6829
    %v6947 = vpack.c.b16 %v6832, %v6831
    %v6948 = vpack.c.b16 %v6834, %v6833
    %v6949 = vpack.c.b16 %v6836, %v6835
    %v6950 = vpack.c.b16 %v6838, %v6837
    %v6951 = vpack.c.b16 %v6840, %v6839
    %v6952 = vpack.c.b16 %v6842, %v6841
    %v6953 = vpack.c.b16 %v6844, %v6843
    %v6954 = vpack.c.b16 %v6846, %v6845
    %v6955 = vpack.c.b16 %v6848, %v6847
    %v6956 = vpack.c.b16 %v6850, %v6849
    %v6957 = vpack.c.b16 %v6852, %v6851
    %v6958 = vpack.c.b16 %v6854, %v6853
    %v6959 = vpack.c.b16 %v6856, %v6855
    %v6960 = vpack.c.b16 %v6858, %v6857
    %v6961 = vpack.c.b16 %v6860, %v6859
    %v6962 = vpack.c.b16 %v6862, %v6861
    %v6963 = vpack.c.b16 %v6864, %v6863
    %v6964 = vpack.c.b16 %v6866, %v6865
    %v6965 = vpack.c.b16 %v6868, %v6867
    %v6966 = vpack.c.b16 %v6870, %v6869
    %v6967 = vpack.c.b16 %v6872, %v6871
    %v6968 = vpack.c.b16 %v6874, %v6873
    %v6969 = vpack.c.b16 %v6876, %v6875
    %v6970 = vpack.c.b16 %v6878, %v6877
    %v6971 = vpack.c.b16 %v6880, %v6879
    %v6972 = vpack.c.b16 %v6882, %v6881
    %v6973 = vpack.c.b16 %v6884, %v6883
    %v6974 = vpack.c.b16 %v6886, %v6885
    %v6975 = vpack.c.b16 %v6888, %v6887
    %v6976 = vpack.c.b16 %v6890, %v6889
    %v6977 = vpack.c.b16 %v6892, %v6891
    %v6978 = vpack.c.b16 %v6894, %v6893
    %v6979 = vpack.c.b16 %v6896, %v6895
    %v6980 = vpack.c.b16 %v6898, %v6897
    %v6981 = vpack.c.b16 %v6900, %v6899
    %v6982 = vpack.c.b16 %v6902, %v6901
    %v6983 = vpack.c.b16 %v6904, %v6903
    %v6984 = vpack.c.b16 %v6906, %v6905
    %v6985 = vpack.c.b16 %v6908, %v6907
    %v6986 = vpack.c.b16 %v6910, %v6909
    %v6987 = vpack.c.b16 %v6912, %v6911
    %v6988 = vpack.c.b16 %v6914, %v6913
    %v6989 = vpack.c.b16 %v6916, %v6915
    %v6990 = vpack.c.b16 %v6918, %v6917
    %v6991 = vpack.c.b16 %v6920, %v6919
    %v6992 = vpack.c.b16 %v6922, %v6921
    %v6993 = vpack.c.b16 %v6924, %v6923
    %v6994 = vpack.c.b16 %v6926, %v6925
    %v6995 = vpack.c.b16 %v6928, %v6927
    %v6996 = vpack.c.b16 %v6930, %v6929
    %v6997 = vpack.c.b16 %v6932, %v6931
    %v6998 = vpack.c.b16 %v6934, %v6933
    %7063 = vmatprep.subr.bf16.mxu0 0
    %7064 = vmatpush1.bf16.msra.mxu0 %v6935
    %7065 = vmatprep.subr.bf16.mxu0 0
    %7066 = vmatpush1.bf16.msra.mxu0 %v6936
    %7067 = vmatprep.subr.bf16.mxu0 0
    %7068 = vmatpush1.bf16.msra.mxu0 %v6937
    %7069 = vmatprep.subr.bf16.mxu0 0
    %7070 = vmatpush1.bf16.msra.mxu0 %v6938
    %7071 = vmatprep.subr.bf16.mxu0 0
    %7072 = vmatpush1.bf16.msra.mxu0 %v6939
    %7073 = vmatprep.subr.bf16.mxu0 0
    %7074 = vmatpush1.bf16.msra.mxu0 %v6940
    %7075 = vmatprep.subr.bf16.mxu0 0
    %7076 = vmatpush1.bf16.msra.mxu0 %v6941
    %7077 = vmatprep.subr.bf16.mxu0 0
    %7078 = vmatpush1.bf16.msra.mxu0 %v6942
    %7079 = vmatprep.subr.bf16.mxu0 0
    %7080 = vmatpush1.bf16.msra.mxu0 %v6943
    %7081 = vmatprep.subr.bf16.mxu0 0
    %7082 = vmatpush1.bf16.msra.mxu0 %v6944
    %7083 = vmatprep.subr.bf16.mxu0 0
    %7084 = vmatpush1.bf16.msra.mxu0 %v6945
    %7085 = vmatprep.subr.bf16.mxu0 0
    %7086 = vmatpush1.bf16.msra.mxu0 %v6946
    %7087 = vmatprep.subr.bf16.mxu0 0
    %7088 = vmatpush1.bf16.msra.mxu0 %v6947
    %7089 = vmatprep.subr.bf16.mxu0 0
    %7090 = vmatpush1.bf16.msra.mxu0 %v6948
    %7091 = vmatprep.subr.bf16.mxu0 0
    %7092 = vmatpush1.bf16.msra.mxu0 %v6949
    %7093 = vmatprep.subr.bf16.mxu0 0
    %7094 = vmatpush1.bf16.msra.mxu0 %v6950
    %7095 = vmatprep.mubr.bf16.mxu0 %v6537
    %7096 = vmatmul.mubr.bf16.gmra.mrb[0].mxu0 %v6536
    %v7097 = vpop.f32.mrb[0].mxu0
    %v7098 = vadd.f32 %v6677, %v7097
    %v7099 = vpop.f32.mrb[0].mxu0
    %v7100 = vpop.f32.mrb[0].mxu0
    %v7101 = vpop.f32.mrb[0].mxu0
    %7102 = vdwg.mxu0
    %7103 = vmatprep.subr.bf16.mxu0 0
    %7104 = vmatpush1.bf16.msra.mxu0 %v6951
    %7105 = vmatprep.subr.bf16.mxu0 0
    %7106 = vmatpush1.bf16.msra.mxu0 %v6952
    %7107 = vmatprep.subr.bf16.mxu0 0
    %7108 = vmatpush1.bf16.msra.mxu0 %v6953
    %7109 = vmatprep.subr.bf16.mxu0 0
    %7110 = vmatpush1.bf16.msra.mxu0 %v6954
    %7111 = vmatprep.subr.bf16.mxu0 0
    %7112 = vmatpush1.bf16.msra.mxu0 %v6955
    %7113 = vmatprep.subr.bf16.mxu0 0
    %7114 = vmatpush1.bf16.msra.mxu0 %v6956
    %7115 = vmatprep.subr.bf16.mxu0 0
    %7116 = vmatpush1.bf16.msra.mxu0 %v6957
    %7117 = vmatprep.subr.bf16.mxu0 0
    %7118 = vmatpush1.bf16.msra.mxu0 %v6958
    %7119 = vmatprep.subr.bf16.mxu0 0
    %7120 = vmatpush1.bf16.msra.mxu0 %v6959
    %7121 = vmatprep.subr.bf16.mxu0 0
    %7122 = vmatpush1.bf16.msra.mxu0 %v6960
    %7123 = vmatprep.subr.bf16.mxu0 0
    %7124 = vmatpush1.bf16.msra.mxu0 %v6961
    %7125 = vmatprep.subr.bf16.mxu0 0
    %7126 = vmatpush1.bf16.msra.mxu0 %v6962
    %7127 = vmatprep.subr.bf16.mxu0 0
    %7128 = vmatpush1.bf16.msra.mxu0 %v6963
    %7129 = vmatprep.subr.bf16.mxu0 0
    %7130 = vmatpush1.bf16.msra.mxu0 %v6964
    %7131 = vmatprep.subr.bf16.mxu0 0
    %7132 = vmatpush1.bf16.msra.mxu0 %v6965
    %7133 = vmatprep.subr.bf16.mxu0 0
    %7134 = vmatpush1.bf16.msra.mxu0 %v6966
    %7135 = vmatprep.mubr.bf16.mxu0 %v6539
    %7136 = vmatmul.mubr.bf16.gmra.mrb[0].mxu0 %v6538
    %v7137 = vpop.f32.mrb[0].mxu0
    %v7138 = vadd.f32 %v7098, %v7137
    %v7139 = vpop.f32.mrb[0].mxu0
    %v7140 = vpop.f32.mrb[0].mxu0
    %v7141 = vpop.f32.mrb[0].mxu0
    %7142 = vdwg.mxu0
    %7143 = vmatprep.subr.bf16.mxu0 0
    %7144 = vmatpush1.bf16.msra.mxu0 %v6967
    %7145 = vmatprep.subr.bf16.mxu0 0
    %7146 = vmatpush1.bf16.msra.mxu0 %v6968
    %7147 = vmatprep.subr.bf16.mxu0 0
    %7148 = vmatpush1.bf16.msra.mxu0 %v6969
    %7149 = vmatprep.subr.bf16.mxu0 0
    %7150 = vmatpush1.bf16.msra.mxu0 %v6970
    %7151 = vmatprep.subr.bf16.mxu0 0
    %7152 = vmatpush1.bf16.msra.mxu0 %v6971
    %7153 = vmatprep.subr.bf16.mxu0 0
    %7154 = vmatpush1.bf16.msra.mxu0 %v6972
    %7155 = vmatprep.subr.bf16.mxu0 0
    %7156 = vmatpush1.bf16.msra.mxu0 %v6973
    %7157 = vmatprep.subr.bf16.mxu0 0
    %7158 = vmatpush1.bf16.msra.mxu0 %v6974
    %7159 = vmatprep.subr.bf16.mxu0 0
    %7160 = vmatpush1.bf16.msra.mxu0 %v6975
    %7161 = vmatprep.subr.bf16.mxu0 0
    %7162 = vmatpush1.bf16.msra.mxu0 %v6976
    %7163 = vmatprep.subr.bf16.mxu0 0
    %7164 = vmatpush1.bf16.msra.mxu0 %v6977
    %7165 = vmatprep.subr.bf16.mxu0 0
    %7166 = vmatpush1.bf16.msra.mxu0 %v6978
    %7167 = vmatprep.subr.bf16.mxu0 0
    %7168 = vmatpush1.bf16.msra.mxu0 %v6979
    %7169 = vmatprep.subr.bf16.mxu0 0
    %7170 = vmatpush1.bf16.msra.mxu0 %v6980
    %7171 = vmatprep.subr.bf16.mxu0 0
    %7172 = vmatpush1.bf16.msra.mxu0 %v6981
    %7173 = vmatprep.subr.bf16.mxu0 0
    %7174 = vmatpush1.bf16.msra.mxu0 %v6982
    %7175 = vmatprep.mubr.bf16.mxu0 %v6541
    %7176 = vmatmul.mubr.bf16.gmra.mrb[0].mxu0 %v6540
    %v7177 = vpop.f32.mrb[0].mxu0
    %v7178 = vadd.f32 %v7138, %v7177
    %v7179 = vpop.f32.mrb[0].mxu0
    %v7180 = vpop.f32.mrb[0].mxu0
    %v7181 = vpop.f32.mrb[0].mxu0
    %7182 = vdwg.mxu0
    %7183 = vmatprep.subr.bf16.mxu0 0
    %7184 = vmatpush1.bf16.msra.mxu0 %v6983
    %7185 = vmatprep.subr.bf16.mxu0 0
    %7186 = vmatpush1.bf16.msra.mxu0 %v6984
    %7187 = vmatprep.subr.bf16.mxu0 0
    %7188 = vmatpush1.bf16.msra.mxu0 %v6985
    %7189 = vmatprep.subr.bf16.mxu0 0
    %7190 = vmatpush1.bf16.msra.mxu0 %v6986
    %7191 = vmatprep.subr.bf16.mxu0 0
    %7192 = vmatpush1.bf16.msra.mxu0 %v6987
    %7193 = vmatprep.subr.bf16.mxu0 0
    %7194 = vmatpush1.bf16.msra.mxu0 %v6988
    %7195 = vmatprep.subr.bf16.mxu0 0
    %7196 = vmatpush1.bf16.msra.mxu0 %v6989
    %7197 = vmatprep.subr.bf16.mxu0 0
    %7198 = vmatpush1.bf16.msra.mxu0 %v6990
    %7199 = vmatprep.subr.bf16.mxu0 0
    %7200 = vmatpush1.bf16.msra.mxu0 %v6991
    %7201 = vmatprep.subr.bf16.mxu0 0
    %7202 = vmatpush1.bf16.msra.mxu0 %v6992
    %7203 = vmatprep.subr.bf16.mxu0 0
    %7204 = vmatpush1.bf16.msra.mxu0 %v6993
    %7205 = vmatprep.subr.bf16.mxu0 0
    %7206 = vmatpush1.bf16.msra.mxu0 %v6994
    %7207 = vmatprep.subr.bf16.mxu0 0
    %7208 = vmatpush1.bf16.msra.mxu0 %v6995
    %7209 = vmatprep.subr.bf16.mxu0 0
    %7210 = vmatpush1.bf16.msra.mxu0 %v6996
    %7211 = vmatprep.subr.bf16.mxu0 0
    %7212 = vmatpush1.bf16.msra.mxu0 %v6997
    %7213 = vmatprep.subr.bf16.mxu0 0
    %7214 = vmatpush1.bf16.msra.mxu0 %v6998
    %7215 = vmatprep.mubr.bf16.mxu0 %v6543
    %7216 = vmatmul.mubr.bf16.gmra.mrb[0].mxu0 %v6542
    %v7217 = vpop.f32.mrb[0].mxu0
    %v7218 = vadd.f32 %v7178, %v7217
    %v7219 = vpop.f32.mrb[0].mxu0
    %v7220 = vpop.f32.mrb[0].mxu0
    %v7221 = vpop.f32.mrb[0].mxu0
    %7222 = vdwg.mxu0
    %7223 = vst [vmem:[#allocation17] sm:$0x3] %v7218
    // Predicated region
    $region74: #{tpu_custom_call.1} parent=1 // pred_check
      _
    $region75: #{tpu_custom_call.1} parent=1 // pred_check_branch
      %7225 = sbr.rel (0) target = $region77
    $region76: #{tpu_custom_call.1} parent=1 // pred_region
      %s7227 = ssub.s32 32, 32
      %7228 = vsyncadd [#allocation4], %s7227
      %s7230 = sshll.u32 [#allocation17], 4
      %s7231 = int_to_ptr.vmem [resolvable:$true] %s7230
      %7233 = dma.vmem_to_hbm [thread:$0]  %s7231, 32, %s9, [#allocation4]
    $region77: #{tpu_custom_call.1} parent=1 // pred_fallthru
      _
    // Predicated region
    $region78: #{tpu_custom_call.1} parent=1 // pred_check
      _
    $region79: #{tpu_custom_call.1} parent=1 // pred_check_branch
      %7235 = sbr.rel (0) target = $region81
    $region80: #{tpu_custom_call.1} parent=1 // pred_region
      %7236 = dma.done [#allocation4], 32
    $region81: #{tpu_custom_call.1} parent=1 // pred_fallthru
      _
    %7237 = vsyncpa [#allocation3], 1
    %7238 = vsyncpa [#allocation6], 1
    %7239 = vsyncpa [#allocation9], 1
    %7240 = vsyncpa [#allocation12], 1
    %7241 = vsyncpa [#allocation15], 1
    %7242 = vsyncpa [#allocation4], 1

</llo_original>
